<compile_context>
chip_gen: v7x
topology: tpu7x:2x2x1
jax: 0.10.0
libtpu: 0.0.40
codegen_flags: <defaults>
</compile_context>

<pallas_src>
import functools

import jax
import jax.numpy as jnp
from jax import lax
from jax.experimental import pallas as pl
from jax.experimental.pallas import tpu as pltpu


# ----------------------------------------------------------------------------
# Fused VarAdaptor kernel (one batch element per grid step)
# ----------------------------------------------------------------------------
def _var_adaptor_kernel(*refs, pitch_scale, energy_scale, eps):
    # inputs
    x_ref, gidx_ref, pitch_ref, energy_ref = refs[0:4]
    dur_p = refs[4:14]
    pit_p = refs[14:24]
    ene_p = refs[24:34]
    pbnd_ref, ebnd_ref, pemb_ref, eemb_ref = refs[34:38]
    # outputs
    out_ref, pd_ref, pp_ref, pe_ref = refs[38:42]
    # scratch: padded conv buffer, (M + 2*pad, C)
    hpad_ref = refs[42]

    T, C = x_ref.shape
    M = out_ref.shape[0]
    K = dur_p[0].shape[0]
    pad = (K - 1) // 2

    def conv_same(h, w_ref, b_ref):
        """'same' Conv1d over time: h (N, C) f32 -> (N, C_out) f32."""
        N = h.shape[0]
        # zero ONLY the halo rows; rows [pad, pad+N) are overwritten just below.
        hpad_ref[pl.ds(0, pad), :] = jnp.zeros((pad, C), jnp.float32)
        hpad_ref[pl.ds(pad + N, pad), :] = jnp.zeros((pad, C), jnp.float32)
        hpad_ref[pl.ds(pad, N), :] = h
        acc = None
        for k in range(K):                      # static unroll over conv taps
            xk = hpad_ref[pl.ds(k, N), :].astype(jnp.bfloat16)
            y = jnp.dot(xk, w_ref[k], preferred_element_type=jnp.float32)
            acc = y if acc is None else acc + y
        return acc + b_ref[...]                 # bias added once, after the loop

    def layer_norm(h, g_ref, b_ref):
        mu = jnp.mean(h, axis=-1, keepdims=True)
        var = jnp.mean((h - mu) ** 2, axis=-1, keepdims=True)
        return (h - mu) * lax.rsqrt(var + eps) * g_ref[...] + b_ref[...]

    def predictor(h, p):
        """conv -> relu -> LN -> conv -> relu -> LN -> linear(C,1), lane-major out."""
        w1, b1, g1, bt1, w2, b2, g2, bt2, wl, bl = p
        h = layer_norm(jnp.maximum(conv_same(h, w1, b1), 0.0), g1, bt1)
        h = layer_norm(jnp.maximum(conv_same(h, w2, b2), 0.0), g2, bt2)
        # C -> 1 projection emitted directly as a lane-dense (1, N) row.
        return jnp.dot(wl[...], h.T, preferred_element_type=jnp.float32) + bl[...]

    x = x_ref[...]                               # (T, C) f32

    # duration predictor on the encoder frames
    pd_ref[...] = predictor(x, dur_p)

    # LengthRegulator: gather rows of x by precomputed frame indices via a
    # one-hot MXU matmul (sentinel index == T -> all-zero padded row).
    t_iota = lax.broadcasted_iota(jnp.int32, (M, T), 1)
    gather = (gidx_ref[...] == t_iota).astype(jnp.float32)             # (M, T)
    x_reg = jnp.dot(gather, x, preferred_element_type=jnp.float32)     # (M, C)

    # pitch / energy predictors share the in-register x_reg tile
    pp_ref[...] = predictor(x_reg, pit_p)
    pe_ref[...] = predictor(x_reg, ene_p)

    # bucketize + embedding lookup + fusion
    Kc = pemb_ref.shape[0]
    kc_iota = lax.broadcasted_iota(jnp.int32, (M, Kc), 1)

    def embed(val_ref, bnd_ref, emb_ref):
        # torch.bucketize(right=False): idx = #{boundaries strictly < value}
        idx = jnp.sum((val_ref[...] > bnd_ref[...]).astype(jnp.int32),
                      axis=1, keepdims=True)                           # (M, 1)
        onehot = (idx == kc_iota).astype(jnp.bfloat16)                 # (M, Kc)
        return jnp.dot(onehot, emb_ref[...],
                       preferred_element_type=jnp.float32)             # (M, C)

    out_ref[...] = (x_reg
                    + pitch_scale * embed(pitch_ref, pbnd_ref, pemb_ref)
                    + energy_scale * embed(energy_ref, ebnd_ref, eemb_ref))


# ----------------------------------------------------------------------------
# Wrapper: host-side glue (tiny index math only) + one pallas_call
# ----------------------------------------------------------------------------
def var_adaptor_forward(params, x, duration, pitch, energy, cfg, max_frames):
    """Training-path (inference=False) VarAdaptor.forward, fully fused."""
    B, T, C = x.shape
    M = int(max_frames)                         # static config value
    K = params["duration"]["w1"].shape[0]
    pad = (K - 1) // 2

    # per-frame gather indices for the length regulator (sentinel T = padding)
    cum = jnp.cumsum(duration.astype(jnp.int32), axis=1)               # (B, T)
    pos = jnp.arange(M, dtype=jnp.int32)                               # (M,)
    idx = jnp.sum((pos[None, :, None] >= cum[:, None, :]).astype(jnp.int32),
                  axis=-1)                                             # (B, M)
    valid = pos[None, :] < cum[:, -1:]
    gidx = jnp.where(valid, idx, T).astype(jnp.int32)[..., None]       # (B, M, 1)

    pbnd = jnp.logspace(cfg["min_pitch"], cfg["max_pitch"],
                        cfg["codebook_size"])[1:-1].astype(jnp.float32)[None, :]
    ebnd = jnp.linspace(cfg["min_energy"], cfg["max_energy"],
                        cfg["codebook_size"])[1:-1].astype(jnp.float32)[None, :]

    # (M, 1) columns are contiguous in HBM and already sublane-major for the
    # (M, Kc) compare / (M, C) embedding math.
    pitch2 = pitch.astype(jnp.float32)[..., None]                      # (B, M, 1)
    energy2 = energy.astype(jnp.float32)[..., None]                    # (B, M, 1)

    def pred_args(p):
        return [p["w1"].astype(jnp.bfloat16), p["b1"], p["g1"], p["bt1"],
                p["w2"].astype(jnp.bfloat16), p["b2"], p["g2"], p["bt2"],
                p["wl"], p["bl"]]

    inputs = ([x, gidx, pitch2, energy2]
              + pred_args(params["duration"])
              + pred_args(params["pitch_pred"])
              + pred_args(params["energy_pred"])
              + [pbnd, ebnd,
                 params["pitch_emb"].astype(jnp.bfloat16),
                 params["energy_emb"].astype(jnp.bfloat16)])

    def full(a):
        return pl.BlockSpec(a.shape, lambda b, n=a.ndim: (0,) * n)

    in_specs = [
        pl.BlockSpec((pl.Squeezed(), T, C), lambda b: (b, 0, 0)),
        pl.BlockSpec((pl.Squeezed(), M, 1), lambda b: (b, 0, 0)),
        pl.BlockSpec((pl.Squeezed(), M, 1), lambda b: (b, 0, 0)),
        pl.BlockSpec((pl.Squeezed(), M, 1), lambda b: (b, 0, 0)),
    ] + [full(a) for a in inputs[4:]]

    out_shape = (
        jax.ShapeDtypeStruct((B, M, C), jnp.float32),   # fused output
        jax.ShapeDtypeStruct((B, 1, T), jnp.float32),   # pred_duration (lane-dense)
        jax.ShapeDtypeStruct((B, 1, M), jnp.float32),   # pred_pitch
        jax.ShapeDtypeStruct((B, 1, M), jnp.float32),   # pred_energy
    )
    out_specs = [
        pl.BlockSpec((pl.Squeezed(), M, C), lambda b: (b, 0, 0)),
        pl.BlockSpec((pl.Squeezed(), 1, T), lambda b: (b, 0, 0)),
        pl.BlockSpec((pl.Squeezed(), 1, M), lambda b: (b, 0, 0)),
        pl.BlockSpec((pl.Squeezed(), 1, M), lambda b: (b, 0, 0)),
    ]

    kernel = functools.partial(_var_adaptor_kernel,
                               pitch_scale=float(cfg["pitch_scale"]),
                               energy_scale=float(cfg["energy_scale"]),
                               eps=1e-5)

    out, pd, pp, pe = pl.pallas_call(
        kernel,
        out_shape=out_shape,
        grid_spec=pltpu.PrefetchScalarGridSpec(
            num_scalar_prefetch=0,
            grid=(B,),
            in_specs=in_specs,
            out_specs=out_specs,
            scratch_shapes=[pltpu.VMEM((M + 2 * pad, C), jnp.float32)],
        ),
        compiler_params=pltpu.CompilerParams(
            dimension_semantics=("parallel",),
            vmem_limit_bytes=64 * 1024 * 1024),
    )(*inputs)

    return out, pd[:, 0, :], pp[:, 0, :], pe[:, 0, :]


# ----------------------------------------------------------------------------
# Pure-JAX reference for correctness checking
# ----------------------------------------------------------------------------
def _length_regulator_ref(x, duration, max_frames):
    def one(xb, db):
        cum = jnp.cumsum(db)
        pos = jnp.arange(max_frames)
        idx = jnp.sum((pos[:, None] >= cum[None, :]).astype(jnp.int32), axis=1)
        valid = pos < cum[-1]
        idx = jnp.clip(idx, 0, xb.shape[0] - 1)
        return xb[idx] * valid[:, None].astype(xb.dtype)
    return jax.vmap(one)(x, duration)


def _feature_predictor_ref(x, p, eps=1e-5):
    K = p["w1"].shape[0]
    pad = (K - 1) // 2
    T = x.shape[1]

    def conv(h, w, b):
        hp = jnp.pad(h, ((0, 0), (pad, pad), (0, 0)))
        acc = jnp.zeros(h.shape[:2] + (w.shape[2],), jnp.float32) + b
        for k in range(K):
            acc = acc + jnp.einsum("btc,cd->btd", hp[:, k:k + T], w[k])
        return acc

    def ln(h, g, bt):
        mu = h.mean(-1, keepdims=True)
        var = ((h - mu) ** 2).mean(-1, keepdims=True)
        return (h - mu) / jnp.sqrt(var + eps) * g + bt

    h = ln(jnp.maximum(conv(x, p["w1"], p["b1"]), 0.0), p["g1"], p["bt1"])
    h = ln(jnp.maximum(conv(h, p["w2"], p["b2"]), 0.0), p["g2"], p["bt2"])
    return (jnp.einsum("btc,oc->bto", h, p["wl"]) + p["bl"])[..., 0]


def _var_adaptor_ref(params, x, duration, pitch, energy, cfg, max_frames):
    pd = _feature_predictor_ref(x, params["duration"])
    xr = _length_regulator_ref(x, duration, max_frames)
    pp = _feature_predictor_ref(xr, params["pitch_pred"])
    pe = _feature_predictor_ref(xr, params["energy_pred"])
    pbnd = jnp.logspace(cfg["min_pitch"], cfg["max_pitch"],
                        cfg["codebook_size"])[1:-1]
    ebnd = jnp.linspace(cfg["min_energy"], cfg["max_energy"],
                        cfg["codebook_size"])[1:-1]
    pidx = jnp.sum(pitch[..., None] > pbnd, axis=-1)
    eidx = jnp.sum(energy[..., None] > ebnd, axis=-1)
    out = (xr + cfg["pitch_scale"] * params["pitch_emb"][pidx]
              + cfg["energy_scale"] * params["energy_emb"][eidx])
    return out, pd, pp, pe


# ----------------------------------------------------------------------------
if __name__ == "__main__":
    key = jax.random.PRNGKey(0)
    B, T, C, K = 2, 8, 32, 3
    codebook = 16
    MAX_FRAMES = 32        # static config (>= max possible sum(duration) = 3*T)
    cfg = dict(min_pitch=0.0, max_pitch=2.0, min_energy=0.0, max_energy=8.0,
               codebook_size=codebook, pitch_scale=1.0, energy_scale=1e-6)

    keys = jax.random.split(key, 12)

    def predictor_params(k):
        ks = jax.random.split(k, 8)
        return {
            "w1": 0.1 * jax.random.normal(ks[0], (K, C, C), jnp.float32),
            "b1": 0.05 * jax.random.normal(ks[1], (1, C), jnp.float32),
            "g1": jnp.ones((1, C), jnp.float32),
            "bt1": 0.05 * jax.random.normal(ks[2], (1, C), jnp.float32),
            "w2": 0.1 * jax.random.normal(ks[3], (K, C, C), jnp.float32),
            "b2": 0.05 * jax.random.normal(ks[4], (1, C), jnp.float32),
            "g2": jnp.ones((1, C), jnp.float32),
            "bt2": 0.05 * jax.random.normal(ks[5], (1, C), jnp.float32),
            "wl": 0.1 * jax.random.normal(ks[6], (1, C), jnp.float32),
            "bl": 0.05 * jax.random.normal(ks[7], (1, 1), jnp.float32),
        }

    params = {
        "duration": predictor_params(keys[0]),
        "pitch_pred": predictor_params(keys[1]),
        "energy_pred": predictor_params(keys[2]),
        "pitch_emb": 0.1 * jax.random.normal(keys[3], (codebook, C), jnp.float32),
        "energy_emb": 0.1 * jax.random.normal(keys[4], (codebook, C), jnp.float32),
    }

    x = jax.random.normal(keys[5], (B, T, C), jnp.float32)
    duration = jax.random.randint(keys[6], (B, T), 1, 4)          # 1..3
    pitch = jax.random.uniform(keys[7], (B, MAX_FRAMES),
                               minval=1.0, maxval=100.0)
    energy = jax.random.uniform(keys[8], (B, MAX_FRAMES),
                                minval=0.0, maxval=8.0)

    out, pd, pp, pe = var_adaptor_forward(params, x, duration, pitch, energy,
                                          cfg, MAX_FRAMES)
    jax.block_until_ready((out, pd, pp, pe))

    ref_out, ref_pd, ref_pp, ref_pe = _var_adaptor_ref(
        params, x, duration, pitch, energy, cfg, MAX_FRAMES)

    assert bool(jnp.allclose(out, ref_out, atol=5e-2, rtol=5e-2)), "out mismatch"
    assert bool(jnp.allclose(pd, ref_pd, atol=5e-2, rtol=5e-2)), "pred_duration mismatch"
    assert bool(jnp.allclose(pp, ref_pp, atol=5e-2, rtol=5e-2)), "pred_pitch mismatch"
    assert bool(jnp.allclose(pe, ref_pe, atol=5e-2, rtol=5e-2)), "pred_energy mismatch"

    print("KERNEL_OK")
</pallas_src>

<mosaic_0001>
module attributes {stable_mosaic.version = 11 : i64} {
  func.func @_var_adaptor_kernel(%arg0: i32, %arg1: memref<1x8x32xf32, #tpu.memory_space<vmem>>, %arg2: memref<1x32x1xi32, #tpu.memory_space<vmem>>, %arg3: memref<1x32x1xf32, #tpu.memory_space<vmem>>, %arg4: memref<1x32x1xf32, #tpu.memory_space<vmem>>, %arg5: memref<3x32x32xbf16, #tpu.memory_space<vmem>>, %arg6: memref<1x32xf32, #tpu.memory_space<vmem>>, %arg7: memref<1x32xf32, #tpu.memory_space<vmem>>, %arg8: memref<1x32xf32, #tpu.memory_space<vmem>>, %arg9: memref<3x32x32xbf16, #tpu.memory_space<vmem>>, %arg10: memref<1x32xf32, #tpu.memory_space<vmem>>, %arg11: memref<1x32xf32, #tpu.memory_space<vmem>>, %arg12: memref<1x32xf32, #tpu.memory_space<vmem>>, %arg13: memref<1x32xf32, #tpu.memory_space<vmem>>, %arg14: memref<1x1xf32, #tpu.memory_space<vmem>>, %arg15: memref<3x32x32xbf16, #tpu.memory_space<vmem>>, %arg16: memref<1x32xf32, #tpu.memory_space<vmem>>, %arg17: memref<1x32xf32, #tpu.memory_space<vmem>>, %arg18: memref<1x32xf32, #tpu.memory_space<vmem>>, %arg19: memref<3x32x32xbf16, #tpu.memory_space<vmem>>, %arg20: memref<1x32xf32, #tpu.memory_space<vmem>>, %arg21: memref<1x32xf32, #tpu.memory_space<vmem>>, %arg22: memref<1x32xf32, #tpu.memory_space<vmem>>, %arg23: memref<1x32xf32, #tpu.memory_space<vmem>>, %arg24: memref<1x1xf32, #tpu.memory_space<vmem>>, %arg25: memref<3x32x32xbf16, #tpu.memory_space<vmem>>, %arg26: memref<1x32xf32, #tpu.memory_space<vmem>>, %arg27: memref<1x32xf32, #tpu.memory_space<vmem>>, %arg28: memref<1x32xf32, #tpu.memory_space<vmem>>, %arg29: memref<3x32x32xbf16, #tpu.memory_space<vmem>>, %arg30: memref<1x32xf32, #tpu.memory_space<vmem>>, %arg31: memref<1x32xf32, #tpu.memory_space<vmem>>, %arg32: memref<1x32xf32, #tpu.memory_space<vmem>>, %arg33: memref<1x32xf32, #tpu.memory_space<vmem>>, %arg34: memref<1x1xf32, #tpu.memory_space<vmem>>, %arg35: memref<1x14xf32, #tpu.memory_space<vmem>>, %arg36: memref<1x14xf32, #tpu.memory_space<vmem>>, %arg37: memref<16x32xbf16, #tpu.memory_space<vmem>>, %arg38: memref<16x32xbf16, #tpu.memory_space<vmem>>, %arg39: memref<1x32x32xf32, #tpu.memory_space<vmem>>, %arg40: memref<1x1x8xf32, #tpu.memory_space<vmem>>, %arg41: memref<1x1x32xf32, #tpu.memory_space<vmem>>, %arg42: memref<1x1x32xf32, #tpu.memory_space<vmem>>, %arg43: memref<34x32xf32, #tpu.memory_space<vmem>>) attributes {dimension_semantics = [#tpu.dimension_semantics<parallel>], iteration_bounds = array<i64: 2>, scalar_prefetch = 0 : i64, scratch_operands = 1 : i64, tpu.core_type = #tpu.core_type<tc>, window_params = [{transform_indices = @transform_0, window_bounds = array<i64: 1, 8, 32>}, {transform_indices = @transform_1, window_bounds = array<i64: 1, 32, 1>}, {transform_indices = @transform_2, window_bounds = array<i64: 1, 32, 1>}, {transform_indices = @transform_3, window_bounds = array<i64: 1, 32, 1>}, {pipeline_mode = #tpu.pipeline_mode<synchronous>, transform_indices = @transform_4, window_bounds = array<i64: 3, 32, 32>}, {pipeline_mode = #tpu.pipeline_mode<synchronous>, transform_indices = @transform_5, window_bounds = array<i64: 1, 32>}, {pipeline_mode = #tpu.pipeline_mode<synchronous>, transform_indices = @transform_6, window_bounds = array<i64: 1, 32>}, {pipeline_mode = #tpu.pipeline_mode<synchronous>, transform_indices = @transform_7, window_bounds = array<i64: 1, 32>}, {pipeline_mode = #tpu.pipeline_mode<synchronous>, transform_indices = @transform_8, window_bounds = array<i64: 3, 32, 32>}, {pipeline_mode = #tpu.pipeline_mode<synchronous>, transform_indices = @transform_9, window_bounds = array<i64: 1, 32>}, {pipeline_mode = #tpu.pipeline_mode<synchronous>, transform_indices = @transform_10, window_bounds = array<i64: 1, 32>}, {pipeline_mode = #tpu.pipeline_mode<synchronous>, transform_indices = @transform_11, window_bounds = array<i64: 1, 32>}, {pipeline_mode = #tpu.pipeline_mode<synchronous>, transform_indices = @transform_12, window_bounds = array<i64: 1, 32>}, {pipeline_mode = #tpu.pipeline_mode<synchronous>, transform_indices = @transform_13, window_bounds = array<i64: 1, 1>}, {pipeline_mode = #tpu.pipeline_mode<synchronous>, transform_indices = @transform_14, window_bounds = array<i64: 3, 32, 32>}, {pipeline_mode = #tpu.pipeline_mode<synchronous>, transform_indices = @transform_15, window_bounds = array<i64: 1, 32>}, {pipeline_mode = #tpu.pipeline_mode<synchronous>, transform_indices = @transform_16, window_bounds = array<i64: 1, 32>}, {pipeline_mode = #tpu.pipeline_mode<synchronous>, transform_indices = @transform_17, window_bounds = array<i64: 1, 32>}, {pipeline_mode = #tpu.pipeline_mode<synchronous>, transform_indices = @transform_18, window_bounds = array<i64: 3, 32, 32>}, {pipeline_mode = #tpu.pipeline_mode<synchronous>, transform_indices = @transform_19, window_bounds = array<i64: 1, 32>}, {pipeline_mode = #tpu.pipeline_mode<synchronous>, transform_indices = @transform_20, window_bounds = array<i64: 1, 32>}, {pipeline_mode = #tpu.pipeline_mode<synchronous>, transform_indices = @transform_21, window_bounds = array<i64: 1, 32>}, {pipeline_mode = #tpu.pipeline_mode<synchronous>, transform_indices = @transform_22, window_bounds = array<i64: 1, 32>}, {pipeline_mode = #tpu.pipeline_mode<synchronous>, transform_indices = @transform_23, window_bounds = array<i64: 1, 1>}, {pipeline_mode = #tpu.pipeline_mode<synchronous>, transform_indices = @transform_24, window_bounds = array<i64: 3, 32, 32>}, {pipeline_mode = #tpu.pipeline_mode<synchronous>, transform_indices = @transform_25, window_bounds = array<i64: 1, 32>}, {pipeline_mode = #tpu.pipeline_mode<synchronous>, transform_indices = @transform_26, window_bounds = array<i64: 1, 32>}, {pipeline_mode = #tpu.pipeline_mode<synchronous>, transform_indices = @transform_27, window_bounds = array<i64: 1, 32>}, {pipeline_mode = #tpu.pipeline_mode<synchronous>, transform_indices = @transform_28, window_bounds = array<i64: 3, 32, 32>}, {pipeline_mode = #tpu.pipeline_mode<synchronous>, transform_indices = @transform_29, window_bounds = array<i64: 1, 32>}, {pipeline_mode = #tpu.pipeline_mode<synchronous>, transform_indices = @transform_30, window_bounds = array<i64: 1, 32>}, {pipeline_mode = #tpu.pipeline_mode<synchronous>, transform_indices = @transform_31, window_bounds = array<i64: 1, 32>}, {pipeline_mode = #tpu.pipeline_mode<synchronous>, transform_indices = @transform_32, window_bounds = array<i64: 1, 32>}, {pipeline_mode = #tpu.pipeline_mode<synchronous>, transform_indices = @transform_33, window_bounds = array<i64: 1, 1>}, {pipeline_mode = #tpu.pipeline_mode<synchronous>, transform_indices = @transform_34, window_bounds = array<i64: 1, 14>}, {pipeline_mode = #tpu.pipeline_mode<synchronous>, transform_indices = @transform_35, window_bounds = array<i64: 1, 14>}, {pipeline_mode = #tpu.pipeline_mode<synchronous>, transform_indices = @transform_36, window_bounds = array<i64: 16, 32>}, {pipeline_mode = #tpu.pipeline_mode<synchronous>, transform_indices = @transform_37, window_bounds = array<i64: 16, 32>}, {transform_indices = @transform_38, window_bounds = array<i64: 1, 32, 32>}, {transform_indices = @transform_39, window_bounds = array<i64: 1, 1, 8>}, {transform_indices = @transform_40, window_bounds = array<i64: 1, 1, 32>}, {transform_indices = @transform_41, window_bounds = array<i64: 1, 1, 32>}]} {
    %c0 = arith.constant 0 : index
    %c0_0 = arith.constant 0 : index
    %c0_1 = arith.constant 0 : index
    %0 = vector.load %arg1[%c0, %c0_0, %c0_1] : memref<1x8x32xf32, #tpu.memory_space<vmem>>, vector<1x8x32xf32>
    %1 = vector.shape_cast %0 : vector<1x8x32xf32> to vector<8x32xf32>
    %cst = arith.constant 0.000000e+00 : f32
    %2 = vector.broadcast %cst : f32 to vector<1x32xf32>
    %c0_2 = arith.constant 0 : index
    %c0_3 = arith.constant 0 : index
    %3 = vector.load %arg43[%c0_2, %c0_3] : memref<34x32xf32, #tpu.memory_space<vmem>>, vector<1x32xf32>
    tpu.vector_store %arg43[%c0_2, %c0_3], %2 {strides = array<i32>} : memref<34x32xf32, #tpu.memory_space<vmem>>, vector<1x32xf32>,
    %cst_4 = arith.constant 0.000000e+00 : f32
    %4 = vector.broadcast %cst_4 : f32 to vector<1x32xf32>
    %c9 = arith.constant 9 : index
    %c0_5 = arith.constant 0 : index
    %5 = vector.load %arg43[%c9, %c0_5] : memref<34x32xf32, #tpu.memory_space<vmem>>, vector<1x32xf32>
    tpu.vector_store %arg43[%c9, %c0_5], %4 {strides = array<i32>} : memref<34x32xf32, #tpu.memory_space<vmem>>, vector<1x32xf32>,
    %c1 = arith.constant 1 : index
    %c0_6 = arith.constant 0 : index
    %6 = vector.load %arg43[%c1, %c0_6] : memref<34x32xf32, #tpu.memory_space<vmem>>, vector<8x32xf32>
    tpu.vector_store %arg43[%c1, %c0_6], %1 {strides = array<i32>} : memref<34x32xf32, #tpu.memory_space<vmem>>, vector<8x32xf32>,
    %c0_7 = arith.constant 0 : index
    %c0_8 = arith.constant 0 : index
    %7 = vector.load %arg43[%c0_7, %c0_8] : memref<34x32xf32, #tpu.memory_space<vmem>>, vector<8x32xf32>
    %8 = arith.truncf %7 : vector<8x32xf32> to vector<8x32xbf16>
    %c0_9 = arith.constant 0 : index
    %c0_10 = arith.constant 0 : index
    %c0_11 = arith.constant 0 : index
    %9 = vector.load %arg5[%c0_9, %c0_10, %c0_11] : memref<3x32x32xbf16, #tpu.memory_space<vmem>>, vector<1x32x32xbf16>
    %10 = vector.shape_cast %9 : vector<1x32x32xbf16> to vector<32x32xbf16>
    %cst_12 = arith.constant dense<0.000000e+00> : vector<8x32xf32>
    %11 = tpu.matmul %8, %10, %cst_12 {dimension_numbers = #tpu.dot_dimension_numbers<[1], [0], [0], [1], [0, 0, 1, 1], [], []>} : vector<8x32xbf16>, vector<32x32xbf16>, vector<8x32xf32> -> vector<8x32xf32>
    %c1_13 = arith.constant 1 : index
    %c0_14 = arith.constant 0 : index
    %12 = vector.load %arg43[%c1_13, %c0_14] : memref<34x32xf32, #tpu.memory_space<vmem>>, vector<8x32xf32>
    %13 = arith.truncf %12 : vector<8x32xf32> to vector<8x32xbf16>
    %c1_15 = arith.constant 1 : index
    %c0_16 = arith.constant 0 : index
    %c0_17 = arith.constant 0 : index
    %14 = vector.load %arg5[%c1_15, %c0_16, %c0_17] : memref<3x32x32xbf16, #tpu.memory_space<vmem>>, vector<1x32x32xbf16>
    %15 = vector.shape_cast %14 : vector<1x32x32xbf16> to vector<32x32xbf16>
    %cst_18 = arith.constant dense<0.000000e+00> : vector<8x32xf32>
    %16 = tpu.matmul %13, %15, %cst_18 {dimension_numbers = #tpu.dot_dimension_numbers<[1], [0], [0], [1], [0, 0, 1, 1], [], []>} : vector<8x32xbf16>, vector<32x32xbf16>, vector<8x32xf32> -> vector<8x32xf32>
    %17 = arith.addf %11, %16 : vector<8x32xf32>
    %c2 = arith.constant 2 : index
    %c0_19 = arith.constant 0 : index
    %18 = vector.load %arg43[%c2, %c0_19] : memref<34x32xf32, #tpu.memory_space<vmem>>, vector<8x32xf32>
    %19 = arith.truncf %18 : vector<8x32xf32> to vector<8x32xbf16>
    %c2_20 = arith.constant 2 : index
    %c0_21 = arith.constant 0 : index
    %c0_22 = arith.constant 0 : index
    %20 = vector.load %arg5[%c2_20, %c0_21, %c0_22] : memref<3x32x32xbf16, #tpu.memory_space<vmem>>, vector<1x32x32xbf16>
    %21 = vector.shape_cast %20 : vector<1x32x32xbf16> to vector<32x32xbf16>
    %cst_23 = arith.constant dense<0.000000e+00> : vector<8x32xf32>
    %22 = tpu.matmul %19, %21, %cst_23 {dimension_numbers = #tpu.dot_dimension_numbers<[1], [0], [0], [1], [0, 0, 1, 1], [], []>} : vector<8x32xbf16>, vector<32x32xbf16>, vector<8x32xf32> -> vector<8x32xf32>
    %23 = arith.addf %17, %22 : vector<8x32xf32>
    %c0_24 = arith.constant 0 : index
    %c0_25 = arith.constant 0 : index
    %24 = vector.load %arg6[%c0_24, %c0_25] : memref<1x32xf32, #tpu.memory_space<vmem>>, vector<1x32xf32>
    %25 = vector.broadcast %24 : vector<1x32xf32> to vector<8x32xf32>
    %26 = arith.addf %23, %25 : vector<8x32xf32>
    %cst_26 = arith.constant 0.000000e+00 : f32
    %27 = vector.broadcast %cst_26 : f32 to vector<8x32xf32>
    %28 = arith.maximumf %26, %27 : vector<8x32xf32>
    %cst_27 = arith.constant dense<0.000000e+00> : vector<8xf32>
    %29 = vector.multi_reduction <add>, %28, %cst_27 [1] : vector<8x32xf32> to vector<8xf32>
    %30 = vector.shape_cast %29 : vector<8xf32> to vector<8x1xf32>
    %cst_28 = arith.constant 3.200000e+01 : f32
    %31 = vector.broadcast %cst_28 : f32 to vector<8x1xf32>
    %32 = arith.divf %30, %31 : vector<8x1xf32>
    %33 = vector.broadcast %32 : vector<8x1xf32> to vector<8x32xf32>
    %34 = arith.subf %28, %33 : vector<8x32xf32>
    %35 = arith.mulf %34, %34 : vector<8x32xf32>
    %cst_29 = arith.constant dense<0.000000e+00> : vector<8xf32>
    %36 = vector.multi_reduction <add>, %35, %cst_29 [1] : vector<8x32xf32> to vector<8xf32>
    %37 = vector.shape_cast %36 : vector<8xf32> to vector<8x1xf32>
    %cst_30 = arith.constant 3.200000e+01 : f32
    %38 = vector.broadcast %cst_30 : f32 to vector<8x1xf32>
    %39 = arith.divf %37, %38 : vector<8x1xf32>
    %40 = vector.broadcast %32 : vector<8x1xf32> to vector<8x32xf32>
    %41 = arith.subf %28, %40 : vector<8x32xf32>
    %cst_31 = arith.constant 9.99999974E-6 : f32
    %42 = vector.broadcast %cst_31 : f32 to vector<8x1xf32>
    %43 = arith.addf %39, %42 : vector<8x1xf32>
    %44 = math.rsqrt %43 : vector<8x1xf32>
    %45 = vector.broadcast %44 : vector<8x1xf32> to vector<8x32xf32>
    %46 = arith.mulf %41, %45 : vector<8x32xf32>
    %c0_32 = arith.constant 0 : index
    %c0_33 = arith.constant 0 : index
    %47 = vector.load %arg7[%c0_32, %c0_33] : memref<1x32xf32, #tpu.memory_space<vmem>>, vector<1x32xf32>
    %48 = vector.broadcast %47 : vector<1x32xf32> to vector<8x32xf32>
    %49 = arith.mulf %46, %48 : vector<8x32xf32>
    %c0_34 = arith.constant 0 : index
    %c0_35 = arith.constant 0 : index
    %50 = vector.load %arg8[%c0_34, %c0_35] : memref<1x32xf32, #tpu.memory_space<vmem>>, vector<1x32xf32>
    %51 = vector.broadcast %50 : vector<1x32xf32> to vector<8x32xf32>
    %52 = arith.addf %49, %51 : vector<8x32xf32>
    %cst_36 = arith.constant 0.000000e+00 : f32
    %53 = vector.broadcast %cst_36 : f32 to vector<1x32xf32>
    %c0_37 = arith.constant 0 : index
    %c0_38 = arith.constant 0 : index
    %54 = vector.load %arg43[%c0_37, %c0_38] : memref<34x32xf32, #tpu.memory_space<vmem>>, vector<1x32xf32>
    tpu.vector_store %arg43[%c0_37, %c0_38], %53 {strides = array<i32>} : memref<34x32xf32, #tpu.memory_space<vmem>>, vector<1x32xf32>,
    %cst_39 = arith.constant 0.000000e+00 : f32
    %55 = vector.broadcast %cst_39 : f32 to vector<1x32xf32>
    %c9_40 = arith.constant 9 : index
    %c0_41 = arith.constant 0 : index
    %56 = vector.load %arg43[%c9_40, %c0_41] : memref<34x32xf32, #tpu.memory_space<vmem>>, vector<1x32xf32>
    tpu.vector_store %arg43[%c9_40, %c0_41], %55 {strides = array<i32>} : memref<34x32xf32, #tpu.memory_space<vmem>>, vector<1x32xf32>,
    %c1_42 = arith.constant 1 : index
    %c0_43 = arith.constant 0 : index
    %57 = vector.load %arg43[%c1_42, %c0_43] : memref<34x32xf32, #tpu.memory_space<vmem>>, vector<8x32xf32>
    tpu.vector_store %arg43[%c1_42, %c0_43], %52 {strides = array<i32>} : memref<34x32xf32, #tpu.memory_space<vmem>>, vector<8x32xf32>,
    %c0_44 = arith.constant 0 : index
    %c0_45 = arith.constant 0 : index
    %58 = vector.load %arg43[%c0_44, %c0_45] : memref<34x32xf32, #tpu.memory_space<vmem>>, vector<8x32xf32>
    %59 = arith.truncf %58 : vector<8x32xf32> to vector<8x32xbf16>
    %c0_46 = arith.constant 0 : index
    %c0_47 = arith.constant 0 : index
    %c0_48 = arith.constant 0 : index
    %60 = vector.load %arg9[%c0_46, %c0_47, %c0_48] : memref<3x32x32xbf16, #tpu.memory_space<vmem>>, vector<1x32x32xbf16>
    %61 = vector.shape_cast %60 : vector<1x32x32xbf16> to vector<32x32xbf16>
    %cst_49 = arith.constant dense<0.000000e+00> : vector<8x32xf32>
    %62 = tpu.matmul %59, %61, %cst_49 {dimension_numbers = #tpu.dot_dimension_numbers<[1], [0], [0], [1], [0, 0, 1, 1], [], []>} : vector<8x32xbf16>, vector<32x32xbf16>, vector<8x32xf32> -> vector<8x32xf32>
    %c1_50 = arith.constant 1 : index
    %c0_51 = arith.constant 0 : index
    %63 = vector.load %arg43[%c1_50, %c0_51] : memref<34x32xf32, #tpu.memory_space<vmem>>, vector<8x32xf32>
    %64 = arith.truncf %63 : vector<8x32xf32> to vector<8x32xbf16>
    %c1_52 = arith.constant 1 : index
    %c0_53 = arith.constant 0 : index
    %c0_54 = arith.constant 0 : index
    %65 = vector.load %arg9[%c1_52, %c0_53, %c0_54] : memref<3x32x32xbf16, #tpu.memory_space<vmem>>, vector<1x32x32xbf16>
    %66 = vector.shape_cast %65 : vector<1x32x32xbf16> to vector<32x32xbf16>
    %cst_55 = arith.constant dense<0.000000e+00> : vector<8x32xf32>
    %67 = tpu.matmul %64, %66, %cst_55 {dimension_numbers = #tpu.dot_dimension_numbers<[1], [0], [0], [1], [0, 0, 1, 1], [], []>} : vector<8x32xbf16>, vector<32x32xbf16>, vector<8x32xf32> -> vector<8x32xf32>
    %68 = arith.addf %62, %67 : vector<8x32xf32>
    %c2_56 = arith.constant 2 : index
    %c0_57 = arith.constant 0 : index
    %69 = vector.load %arg43[%c2_56, %c0_57] : memref<34x32xf32, #tpu.memory_space<vmem>>, vector<8x32xf32>
    %70 = arith.truncf %69 : vector<8x32xf32> to vector<8x32xbf16>
    %c2_58 = arith.constant 2 : index
    %c0_59 = arith.constant 0 : index
    %c0_60 = arith.constant 0 : index
    %71 = vector.load %arg9[%c2_58, %c0_59, %c0_60] : memref<3x32x32xbf16, #tpu.memory_space<vmem>>, vector<1x32x32xbf16>
    %72 = vector.shape_cast %71 : vector<1x32x32xbf16> to vector<32x32xbf16>
    %cst_61 = arith.constant dense<0.000000e+00> : vector<8x32xf32>
    %73 = tpu.matmul %70, %72, %cst_61 {dimension_numbers = #tpu.dot_dimension_numbers<[1], [0], [0], [1], [0, 0, 1, 1], [], []>} : vector<8x32xbf16>, vector<32x32xbf16>, vector<8x32xf32> -> vector<8x32xf32>
    %74 = arith.addf %68, %73 : vector<8x32xf32>
    %c0_62 = arith.constant 0 : index
    %c0_63 = arith.constant 0 : index
    %75 = vector.load %arg10[%c0_62, %c0_63] : memref<1x32xf32, #tpu.memory_space<vmem>>, vector<1x32xf32>
    %76 = vector.broadcast %75 : vector<1x32xf32> to vector<8x32xf32>
    %77 = arith.addf %74, %76 : vector<8x32xf32>
    %cst_64 = arith.constant 0.000000e+00 : f32
    %78 = vector.broadcast %cst_64 : f32 to vector<8x32xf32>
    %79 = arith.maximumf %77, %78 : vector<8x32xf32>
    %cst_65 = arith.constant dense<0.000000e+00> : vector<8xf32>
    %80 = vector.multi_reduction <add>, %79, %cst_65 [1] : vector<8x32xf32> to vector<8xf32>
    %81 = vector.shape_cast %80 : vector<8xf32> to vector<8x1xf32>
    %cst_66 = arith.constant 3.200000e+01 : f32
    %82 = vector.broadcast %cst_66 : f32 to vector<8x1xf32>
    %83 = arith.divf %81, %82 : vector<8x1xf32>
    %84 = vector.broadcast %83 : vector<8x1xf32> to vector<8x32xf32>
    %85 = arith.subf %79, %84 : vector<8x32xf32>
    %86 = arith.mulf %85, %85 : vector<8x32xf32>
    %cst_67 = arith.constant dense<0.000000e+00> : vector<8xf32>
    %87 = vector.multi_reduction <add>, %86, %cst_67 [1] : vector<8x32xf32> to vector<8xf32>
    %88 = vector.shape_cast %87 : vector<8xf32> to vector<8x1xf32>
    %cst_68 = arith.constant 3.200000e+01 : f32
    %89 = vector.broadcast %cst_68 : f32 to vector<8x1xf32>
    %90 = arith.divf %88, %89 : vector<8x1xf32>
    %91 = vector.broadcast %83 : vector<8x1xf32> to vector<8x32xf32>
    %92 = arith.subf %79, %91 : vector<8x32xf32>
    %cst_69 = arith.constant 9.99999974E-6 : f32
    %93 = vector.broadcast %cst_69 : f32 to vector<8x1xf32>
    %94 = arith.addf %90, %93 : vector<8x1xf32>
    %95 = math.rsqrt %94 : vector<8x1xf32>
    %96 = vector.broadcast %95 : vector<8x1xf32> to vector<8x32xf32>
    %97 = arith.mulf %92, %96 : vector<8x32xf32>
    %c0_70 = arith.constant 0 : index
    %c0_71 = arith.constant 0 : index
    %98 = vector.load %arg11[%c0_70, %c0_71] : memref<1x32xf32, #tpu.memory_space<vmem>>, vector<1x32xf32>
    %99 = vector.broadcast %98 : vector<1x32xf32> to vector<8x32xf32>
    %100 = arith.mulf %97, %99 : vector<8x32xf32>
    %c0_72 = arith.constant 0 : index
    %c0_73 = arith.constant 0 : index
    %101 = vector.load %arg12[%c0_72, %c0_73] : memref<1x32xf32, #tpu.memory_space<vmem>>, vector<1x32xf32>
    %102 = vector.broadcast %101 : vector<1x32xf32> to vector<8x32xf32>
    %103 = arith.addf %100, %102 : vector<8x32xf32>
    %c0_74 = arith.constant 0 : index
    %c0_75 = arith.constant 0 : index
    %104 = vector.load %arg13[%c0_74, %c0_75] : memref<1x32xf32, #tpu.memory_space<vmem>>, vector<1x32xf32>
    %105 = tpu.transpose %103, [1, 0] : vector<8x32xf32> -> vector<32x8xf32>
    %cst_76 = arith.constant dense<0.000000e+00> : vector<1x8xf32>
    %106 = tpu.matmul %104, %105, %cst_76 {dimension_numbers = #tpu.dot_dimension_numbers<[1], [0], [0], [1], [0, 0, 1, 1], [], []>} : vector<1x32xf32>, vector<32x8xf32>, vector<1x8xf32> -> vector<1x8xf32>
    %c0_77 = arith.constant 0 : index
    %c0_78 = arith.constant 0 : index
    %107 = vector.load %arg14[%c0_77, %c0_78] : memref<1x1xf32, #tpu.memory_space<vmem>>, vector<1x1xf32>
    %108 = vector.broadcast %107 : vector<1x1xf32> to vector<1x8xf32>
    %109 = arith.addf %106, %108 : vector<1x8xf32>
    %c0_79 = arith.constant 0 : index
    %c0_80 = arith.constant 0 : index
    %c0_81 = arith.constant 0 : index
    %110 = vector.load %arg40[%c0_79, %c0_80, %c0_81] : memref<1x1x8xf32, #tpu.memory_space<vmem>>, vector<1x1x8xf32>
    %111 = vector.shape_cast %110 : vector<1x1x8xf32> to vector<1x8xf32>
    %112 = vector.shape_cast %109 : vector<1x8xf32> to vector<1x1x8xf32>
    tpu.vector_store %arg40[%c0_79, %c0_80, %c0_81], %112 {strides = array<i32>} : memref<1x1x8xf32, #tpu.memory_space<vmem>>, vector<1x1x8xf32>,
    %113 = tpu.iota {dimensions = array<i32: 1>} : vector<32x8xi32>
    %c0_82 = arith.constant 0 : index
    %c0_83 = arith.constant 0 : index
    %c0_84 = arith.constant 0 : index
    %114 = vector.load %arg2[%c0_82, %c0_83, %c0_84] : memref<1x32x1xi32, #tpu.memory_space<vmem>>, vector<1x32x1xi32>
    %115 = vector.shape_cast %114 : vector<1x32x1xi32> to vector<32x1xi32>
    %116 = vector.broadcast %115 : vector<32x1xi32> to vector<32x8xi32>
    %117 = arith.cmpi eq, %116, %113 : vector<32x8xi32>
    %118 = arith.extui %117 : vector<32x8xi1> to vector<32x8xi32>
    %119 = arith.sitofp %118 : vector<32x8xi32> to vector<32x8xf32>
    %cst_85 = arith.constant dense<0.000000e+00> : vector<32x32xf32>
    %120 = tpu.matmul %119, %1, %cst_85 {dimension_numbers = #tpu.dot_dimension_numbers<[1], [0], [0], [1], [0, 0, 1, 1], [], []>} : vector<32x8xf32>, vector<8x32xf32>, vector<32x32xf32> -> vector<32x32xf32>
    %cst_86 = arith.constant 0.000000e+00 : f32
    %121 = vector.broadcast %cst_86 : f32 to vector<1x32xf32>
    %c0_87 = arith.constant 0 : index
    %c0_88 = arith.constant 0 : index
    %122 = vector.load %arg43[%c0_87, %c0_88] : memref<34x32xf32, #tpu.memory_space<vmem>>, vector<1x32xf32>
    tpu.vector_store %arg43[%c0_87, %c0_88], %121 {strides = array<i32>} : memref<34x32xf32, #tpu.memory_space<vmem>>, vector<1x32xf32>,
    %cst_89 = arith.constant 0.000000e+00 : f32
    %123 = vector.broadcast %cst_89 : f32 to vector<1x32xf32>
    %c33 = arith.constant 33 : index
    %c0_90 = arith.constant 0 : index
    %124 = vector.load %arg43[%c33, %c0_90] : memref<34x32xf32, #tpu.memory_space<vmem>>, vector<1x32xf32>
    tpu.vector_store %arg43[%c33, %c0_90], %123 {strides = array<i32>} : memref<34x32xf32, #tpu.memory_space<vmem>>, vector<1x32xf32>,
    %c1_91 = arith.constant 1 : index
    %c0_92 = arith.constant 0 : index
    %125 = vector.load %arg43[%c1_91, %c0_92] : memref<34x32xf32, #tpu.memory_space<vmem>>, vector<32x32xf32>
    tpu.vector_store %arg43[%c1_91, %c0_92], %120 {strides = array<i32>} : memref<34x32xf32, #tpu.memory_space<vmem>>, vector<32x32xf32>,
    %c0_93 = arith.constant 0 : index
    %c0_94 = arith.constant 0 : index
    %126 = vector.load %arg43[%c0_93, %c0_94] : memref<34x32xf32, #tpu.memory_space<vmem>>, vector<32x32xf32>
    %127 = arith.truncf %126 : vector<32x32xf32> to vector<32x32xbf16>
    %c0_95 = arith.constant 0 : index
    %c0_96 = arith.constant 0 : index
    %c0_97 = arith.constant 0 : index
    %128 = vector.load %arg15[%c0_95, %c0_96, %c0_97] : memref<3x32x32xbf16, #tpu.memory_space<vmem>>, vector<1x32x32xbf16>
    %129 = vector.shape_cast %128 : vector<1x32x32xbf16> to vector<32x32xbf16>
    %cst_98 = arith.constant dense<0.000000e+00> : vector<32x32xf32>
    %130 = tpu.matmul %127, %129, %cst_98 {dimension_numbers = #tpu.dot_dimension_numbers<[1], [0], [0], [1], [0, 0, 1, 1], [], []>} : vector<32x32xbf16>, vector<32x32xbf16>, vector<32x32xf32> -> vector<32x32xf32>
    %c1_99 = arith.constant 1 : index
    %c0_100 = arith.constant 0 : index
    %131 = vector.load %arg43[%c1_99, %c0_100] : memref<34x32xf32, #tpu.memory_space<vmem>>, vector<32x32xf32>
    %132 = arith.truncf %131 : vector<32x32xf32> to vector<32x32xbf16>
    %c1_101 = arith.constant 1 : index
    %c0_102 = arith.constant 0 : index
    %c0_103 = arith.constant 0 : index
    %133 = vector.load %arg15[%c1_101, %c0_102, %c0_103] : memref<3x32x32xbf16, #tpu.memory_space<vmem>>, vector<1x32x32xbf16>
    %134 = vector.shape_cast %133 : vector<1x32x32xbf16> to vector<32x32xbf16>
    %cst_104 = arith.constant dense<0.000000e+00> : vector<32x32xf32>
    %135 = tpu.matmul %132, %134, %cst_104 {dimension_numbers = #tpu.dot_dimension_numbers<[1], [0], [0], [1], [0, 0, 1, 1], [], []>} : vector<32x32xbf16>, vector<32x32xbf16>, vector<32x32xf32> -> vector<32x32xf32>
    %136 = arith.addf %130, %135 : vector<32x32xf32>
    %c2_105 = arith.constant 2 : index
    %c0_106 = arith.constant 0 : index
    %137 = vector.load %arg43[%c2_105, %c0_106] : memref<34x32xf32, #tpu.memory_space<vmem>>, vector<32x32xf32>
    %138 = arith.truncf %137 : vector<32x32xf32> to vector<32x32xbf16>
    %c2_107 = arith.constant 2 : index
    %c0_108 = arith.constant 0 : index
    %c0_109 = arith.constant 0 : index
    %139 = vector.load %arg15[%c2_107, %c0_108, %c0_109] : memref<3x32x32xbf16, #tpu.memory_space<vmem>>, vector<1x32x32xbf16>
    %140 = vector.shape_cast %139 : vector<1x32x32xbf16> to vector<32x32xbf16>
    %cst_110 = arith.constant dense<0.000000e+00> : vector<32x32xf32>
    %141 = tpu.matmul %138, %140, %cst_110 {dimension_numbers = #tpu.dot_dimension_numbers<[1], [0], [0], [1], [0, 0, 1, 1], [], []>} : vector<32x32xbf16>, vector<32x32xbf16>, vector<32x32xf32> -> vector<32x32xf32>
    %142 = arith.addf %136, %141 : vector<32x32xf32>
    %c0_111 = arith.constant 0 : index
    %c0_112 = arith.constant 0 : index
    %143 = vector.load %arg16[%c0_111, %c0_112] : memref<1x32xf32, #tpu.memory_space<vmem>>, vector<1x32xf32>
    %144 = vector.broadcast %143 : vector<1x32xf32> to vector<32x32xf32>
    %145 = arith.addf %142, %144 : vector<32x32xf32>
    %cst_113 = arith.constant 0.000000e+00 : f32
    %146 = vector.broadcast %cst_113 : f32 to vector<32x32xf32>
    %147 = arith.maximumf %145, %146 : vector<32x32xf32>
    %cst_114 = arith.constant dense<0.000000e+00> : vector<32xf32>
    %148 = vector.multi_reduction <add>, %147, %cst_114 [1] : vector<32x32xf32> to vector<32xf32>
    %149 = vector.shape_cast %148 : vector<32xf32> to vector<32x1xf32>
    %cst_115 = arith.constant 3.200000e+01 : f32
    %150 = vector.broadcast %cst_115 : f32 to vector<32x1xf32>
    %151 = arith.divf %149, %150 : vector<32x1xf32>
    %152 = vector.broadcast %151 : vector<32x1xf32> to vector<32x32xf32>
    %153 = arith.subf %147, %152 : vector<32x32xf32>
    %154 = arith.mulf %153, %153 : vector<32x32xf32>
    %cst_116 = arith.constant dense<0.000000e+00> : vector<32xf32>
    %155 = vector.multi_reduction <add>, %154, %cst_116 [1] : vector<32x32xf32> to vector<32xf32>
    %156 = vector.shape_cast %155 : vector<32xf32> to vector<32x1xf32>
    %cst_117 = arith.constant 3.200000e+01 : f32
    %157 = vector.broadcast %cst_117 : f32 to vector<32x1xf32>
    %158 = arith.divf %156, %157 : vector<32x1xf32>
    %159 = vector.broadcast %151 : vector<32x1xf32> to vector<32x32xf32>
    %160 = arith.subf %147, %159 : vector<32x32xf32>
    %cst_118 = arith.constant 9.99999974E-6 : f32
    %161 = vector.broadcast %cst_118 : f32 to vector<32x1xf32>
    %162 = arith.addf %158, %161 : vector<32x1xf32>
    %163 = math.rsqrt %162 : vector<32x1xf32>
    %164 = vector.broadcast %163 : vector<32x1xf32> to vector<32x32xf32>
    %165 = arith.mulf %160, %164 : vector<32x32xf32>
    %c0_119 = arith.constant 0 : index
    %c0_120 = arith.constant 0 : index
    %166 = vector.load %arg17[%c0_119, %c0_120] : memref<1x32xf32, #tpu.memory_space<vmem>>, vector<1x32xf32>
    %167 = vector.broadcast %166 : vector<1x32xf32> to vector<32x32xf32>
    %168 = arith.mulf %165, %167 : vector<32x32xf32>
    %c0_121 = arith.constant 0 : index
    %c0_122 = arith.constant 0 : index
    %169 = vector.load %arg18[%c0_121, %c0_122] : memref<1x32xf32, #tpu.memory_space<vmem>>, vector<1x32xf32>
    %170 = vector.broadcast %169 : vector<1x32xf32> to vector<32x32xf32>
    %171 = arith.addf %168, %170 : vector<32x32xf32>
    %cst_123 = arith.constant 0.000000e+00 : f32
    %172 = vector.broadcast %cst_123 : f32 to vector<1x32xf32>
    %c0_124 = arith.constant 0 : index
    %c0_125 = arith.constant 0 : index
    %173 = vector.load %arg43[%c0_124, %c0_125] : memref<34x32xf32, #tpu.memory_space<vmem>>, vector<1x32xf32>
    tpu.vector_store %arg43[%c0_124, %c0_125], %172 {strides = array<i32>} : memref<34x32xf32, #tpu.memory_space<vmem>>, vector<1x32xf32>,
    %cst_126 = arith.constant 0.000000e+00 : f32
    %174 = vector.broadcast %cst_126 : f32 to vector<1x32xf32>
    %c33_127 = arith.constant 33 : index
    %c0_128 = arith.constant 0 : index
    %175 = vector.load %arg43[%c33_127, %c0_128] : memref<34x32xf32, #tpu.memory_space<vmem>>, vector<1x32xf32>
    tpu.vector_store %arg43[%c33_127, %c0_128], %174 {strides = array<i32>} : memref<34x32xf32, #tpu.memory_space<vmem>>, vector<1x32xf32>,
    %c1_129 = arith.constant 1 : index
    %c0_130 = arith.constant 0 : index
    %176 = vector.load %arg43[%c1_129, %c0_130] : memref<34x32xf32, #tpu.memory_space<vmem>>, vector<32x32xf32>
    tpu.vector_store %arg43[%c1_129, %c0_130], %171 {strides = array<i32>} : memref<34x32xf32, #tpu.memory_space<vmem>>, vector<32x32xf32>,
    %c0_131 = arith.constant 0 : index
    %c0_132 = arith.constant 0 : index
    %177 = vector.load %arg43[%c0_131, %c0_132] : memref<34x32xf32, #tpu.memory_space<vmem>>, vector<32x32xf32>
    %178 = arith.truncf %177 : vector<32x32xf32> to vector<32x32xbf16>
    %c0_133 = arith.constant 0 : index
    %c0_134 = arith.constant 0 : index
    %c0_135 = arith.constant 0 : index
    %179 = vector.load %arg19[%c0_133, %c0_134, %c0_135] : memref<3x32x32xbf16, #tpu.memory_space<vmem>>, vector<1x32x32xbf16>
    %180 = vector.shape_cast %179 : vector<1x32x32xbf16> to vector<32x32xbf16>
    %cst_136 = arith.constant dense<0.000000e+00> : vector<32x32xf32>
    %181 = tpu.matmul %178, %180, %cst_136 {dimension_numbers = #tpu.dot_dimension_numbers<[1], [0], [0], [1], [0, 0, 1, 1], [], []>} : vector<32x32xbf16>, vector<32x32xbf16>, vector<32x32xf32> -> vector<32x32xf32>
    %c1_137 = arith.constant 1 : index
    %c0_138 = arith.constant 0 : index
    %182 = vector.load %arg43[%c1_137, %c0_138] : memref<34x32xf32, #tpu.memory_space<vmem>>, vector<32x32xf32>
    %183 = arith.truncf %182 : vector<32x32xf32> to vector<32x32xbf16>
    %c1_139 = arith.constant 1 : index
    %c0_140 = arith.constant 0 : index
    %c0_141 = arith.constant 0 : index
    %184 = vector.load %arg19[%c1_139, %c0_140, %c0_141] : memref<3x32x32xbf16, #tpu.memory_space<vmem>>, vector<1x32x32xbf16>
    %185 = vector.shape_cast %184 : vector<1x32x32xbf16> to vector<32x32xbf16>
    %cst_142 = arith.constant dense<0.000000e+00> : vector<32x32xf32>
    %186 = tpu.matmul %183, %185, %cst_142 {dimension_numbers = #tpu.dot_dimension_numbers<[1], [0], [0], [1], [0, 0, 1, 1], [], []>} : vector<32x32xbf16>, vector<32x32xbf16>, vector<32x32xf32> -> vector<32x32xf32>
    %187 = arith.addf %181, %186 : vector<32x32xf32>
    %c2_143 = arith.constant 2 : index
    %c0_144 = arith.constant 0 : index
    %188 = vector.load %arg43[%c2_143, %c0_144] : memref<34x32xf32, #tpu.memory_space<vmem>>, vector<32x32xf32>
    %189 = arith.truncf %188 : vector<32x32xf32> to vector<32x32xbf16>
    %c2_145 = arith.constant 2 : index
    %c0_146 = arith.constant 0 : index
    %c0_147 = arith.constant 0 : index
    %190 = vector.load %arg19[%c2_145, %c0_146, %c0_147] : memref<3x32x32xbf16, #tpu.memory_space<vmem>>, vector<1x32x32xbf16>
    %191 = vector.shape_cast %190 : vector<1x32x32xbf16> to vector<32x32xbf16>
    %cst_148 = arith.constant dense<0.000000e+00> : vector<32x32xf32>
    %192 = tpu.matmul %189, %191, %cst_148 {dimension_numbers = #tpu.dot_dimension_numbers<[1], [0], [0], [1], [0, 0, 1, 1], [], []>} : vector<32x32xbf16>, vector<32x32xbf16>, vector<32x32xf32> -> vector<32x32xf32>
    %193 = arith.addf %187, %192 : vector<32x32xf32>
    %c0_149 = arith.constant 0 : index
    %c0_150 = arith.constant 0 : index
    %194 = vector.load %arg20[%c0_149, %c0_150] : memref<1x32xf32, #tpu.memory_space<vmem>>, vector<1x32xf32>
    %195 = vector.broadcast %194 : vector<1x32xf32> to vector<32x32xf32>
    %196 = arith.addf %193, %195 : vector<32x32xf32>
    %cst_151 = arith.constant 0.000000e+00 : f32
    %197 = vector.broadcast %cst_151 : f32 to vector<32x32xf32>
    %198 = arith.maximumf %196, %197 : vector<32x32xf32>
    %cst_152 = arith.constant dense<0.000000e+00> : vector<32xf32>
    %199 = vector.multi_reduction <add>, %198, %cst_152 [1] : vector<32x32xf32> to vector<32xf32>
    %200 = vector.shape_cast %199 : vector<32xf32> to vector<32x1xf32>
    %cst_153 = arith.constant 3.200000e+01 : f32
    %201 = vector.broadcast %cst_153 : f32 to vector<32x1xf32>
    %202 = arith.divf %200, %201 : vector<32x1xf32>
    %203 = vector.broadcast %202 : vector<32x1xf32> to vector<32x32xf32>
    %204 = arith.subf %198, %203 : vector<32x32xf32>
    %205 = arith.mulf %204, %204 : vector<32x32xf32>
    %cst_154 = arith.constant dense<0.000000e+00> : vector<32xf32>
    %206 = vector.multi_reduction <add>, %205, %cst_154 [1] : vector<32x32xf32> to vector<32xf32>
    %207 = vector.shape_cast %206 : vector<32xf32> to vector<32x1xf32>
    %cst_155 = arith.constant 3.200000e+01 : f32
    %208 = vector.broadcast %cst_155 : f32 to vector<32x1xf32>
    %209 = arith.divf %207, %208 : vector<32x1xf32>
    %210 = vector.broadcast %202 : vector<32x1xf32> to vector<32x32xf32>
    %211 = arith.subf %198, %210 : vector<32x32xf32>
    %cst_156 = arith.constant 9.99999974E-6 : f32
    %212 = vector.broadcast %cst_156 : f32 to vector<32x1xf32>
    %213 = arith.addf %209, %212 : vector<32x1xf32>
    %214 = math.rsqrt %213 : vector<32x1xf32>
    %215 = vector.broadcast %214 : vector<32x1xf32> to vector<32x32xf32>
    %216 = arith.mulf %211, %215 : vector<32x32xf32>
    %c0_157 = arith.constant 0 : index
    %c0_158 = arith.constant 0 : index
    %217 = vector.load %arg21[%c0_157, %c0_158] : memref<1x32xf32, #tpu.memory_space<vmem>>, vector<1x32xf32>
    %218 = vector.broadcast %217 : vector<1x32xf32> to vector<32x32xf32>
    %219 = arith.mulf %216, %218 : vector<32x32xf32>
    %c0_159 = arith.constant 0 : index
    %c0_160 = arith.constant 0 : index
    %220 = vector.load %arg22[%c0_159, %c0_160] : memref<1x32xf32, #tpu.memory_space<vmem>>, vector<1x32xf32>
    %221 = vector.broadcast %220 : vector<1x32xf32> to vector<32x32xf32>
    %222 = arith.addf %219, %221 : vector<32x32xf32>
    %c0_161 = arith.constant 0 : index
    %c0_162 = arith.constant 0 : index
    %223 = vector.load %arg23[%c0_161, %c0_162] : memref<1x32xf32, #tpu.memory_space<vmem>>, vector<1x32xf32>
    %224 = tpu.transpose %222, [1, 0] : vector<32x32xf32> -> vector<32x32xf32>
    %cst_163 = arith.constant dense<0.000000e+00> : vector<1x32xf32>
    %225 = tpu.matmul %223, %224, %cst_163 {dimension_numbers = #tpu.dot_dimension_numbers<[1], [0], [0], [1], [0, 0, 1, 1], [], []>} : vector<1x32xf32>, vector<32x32xf32>, vector<1x32xf32> -> vector<1x32xf32>
    %c0_164 = arith.constant 0 : index
    %c0_165 = arith.constant 0 : index
    %226 = vector.load %arg24[%c0_164, %c0_165] : memref<1x1xf32, #tpu.memory_space<vmem>>, vector<1x1xf32>
    %227 = vector.broadcast %226 : vector<1x1xf32> to vector<1x32xf32>
    %228 = arith.addf %225, %227 : vector<1x32xf32>
    %c0_166 = arith.constant 0 : index
    %c0_167 = arith.constant 0 : index
    %c0_168 = arith.constant 0 : index
    %229 = vector.load %arg41[%c0_166, %c0_167, %c0_168] : memref<1x1x32xf32, #tpu.memory_space<vmem>>, vector<1x1x32xf32>
    %230 = vector.shape_cast %229 : vector<1x1x32xf32> to vector<1x32xf32>
    %231 = vector.shape_cast %228 : vector<1x32xf32> to vector<1x1x32xf32>
    tpu.vector_store %arg41[%c0_166, %c0_167, %c0_168], %231 {strides = array<i32>} : memref<1x1x32xf32, #tpu.memory_space<vmem>>, vector<1x1x32xf32>,
    %cst_169 = arith.constant 0.000000e+00 : f32
    %232 = vector.broadcast %cst_169 : f32 to vector<1x32xf32>
    %c0_170 = arith.constant 0 : index
    %c0_171 = arith.constant 0 : index
    %233 = vector.load %arg43[%c0_170, %c0_171] : memref<34x32xf32, #tpu.memory_space<vmem>>, vector<1x32xf32>
    tpu.vector_store %arg43[%c0_170, %c0_171], %232 {strides = array<i32>} : memref<34x32xf32, #tpu.memory_space<vmem>>, vector<1x32xf32>,
    %cst_172 = arith.constant 0.000000e+00 : f32
    %234 = vector.broadcast %cst_172 : f32 to vector<1x32xf32>
    %c33_173 = arith.constant 33 : index
    %c0_174 = arith.constant 0 : index
    %235 = vector.load %arg43[%c33_173, %c0_174] : memref<34x32xf32, #tpu.memory_space<vmem>>, vector<1x32xf32>
    tpu.vector_store %arg43[%c33_173, %c0_174], %234 {strides = array<i32>} : memref<34x32xf32, #tpu.memory_space<vmem>>, vector<1x32xf32>,
    %c1_175 = arith.constant 1 : index
    %c0_176 = arith.constant 0 : index
    %236 = vector.load %arg43[%c1_175, %c0_176] : memref<34x32xf32, #tpu.memory_space<vmem>>, vector<32x32xf32>
    tpu.vector_store %arg43[%c1_175, %c0_176], %120 {strides = array<i32>} : memref<34x32xf32, #tpu.memory_space<vmem>>, vector<32x32xf32>,
    %c0_177 = arith.constant 0 : index
    %c0_178 = arith.constant 0 : index
    %237 = vector.load %arg43[%c0_177, %c0_178] : memref<34x32xf32, #tpu.memory_space<vmem>>, vector<32x32xf32>
    %238 = arith.truncf %237 : vector<32x32xf32> to vector<32x32xbf16>
    %c0_179 = arith.constant 0 : index
    %c0_180 = arith.constant 0 : index
    %c0_181 = arith.constant 0 : index
    %239 = vector.load %arg25[%c0_179, %c0_180, %c0_181] : memref<3x32x32xbf16, #tpu.memory_space<vmem>>, vector<1x32x32xbf16>
    %240 = vector.shape_cast %239 : vector<1x32x32xbf16> to vector<32x32xbf16>
    %cst_182 = arith.constant dense<0.000000e+00> : vector<32x32xf32>
    %241 = tpu.matmul %238, %240, %cst_182 {dimension_numbers = #tpu.dot_dimension_numbers<[1], [0], [0], [1], [0, 0, 1, 1], [], []>} : vector<32x32xbf16>, vector<32x32xbf16>, vector<32x32xf32> -> vector<32x32xf32>
    %c1_183 = arith.constant 1 : index
    %c0_184 = arith.constant 0 : index
    %242 = vector.load %arg43[%c1_183, %c0_184] : memref<34x32xf32, #tpu.memory_space<vmem>>, vector<32x32xf32>
    %243 = arith.truncf %242 : vector<32x32xf32> to vector<32x32xbf16>
    %c1_185 = arith.constant 1 : index
    %c0_186 = arith.constant 0 : index
    %c0_187 = arith.constant 0 : index
    %244 = vector.load %arg25[%c1_185, %c0_186, %c0_187] : memref<3x32x32xbf16, #tpu.memory_space<vmem>>, vector<1x32x32xbf16>
    %245 = vector.shape_cast %244 : vector<1x32x32xbf16> to vector<32x32xbf16>
    %cst_188 = arith.constant dense<0.000000e+00> : vector<32x32xf32>
    %246 = tpu.matmul %243, %245, %cst_188 {dimension_numbers = #tpu.dot_dimension_numbers<[1], [0], [0], [1], [0, 0, 1, 1], [], []>} : vector<32x32xbf16>, vector<32x32xbf16>, vector<32x32xf32> -> vector<32x32xf32>
    %247 = arith.addf %241, %246 : vector<32x32xf32>
    %c2_189 = arith.constant 2 : index
    %c0_190 = arith.constant 0 : index
    %248 = vector.load %arg43[%c2_189, %c0_190] : memref<34x32xf32, #tpu.memory_space<vmem>>, vector<32x32xf32>
    %249 = arith.truncf %248 : vector<32x32xf32> to vector<32x32xbf16>
    %c2_191 = arith.constant 2 : index
    %c0_192 = arith.constant 0 : index
    %c0_193 = arith.constant 0 : index
    %250 = vector.load %arg25[%c2_191, %c0_192, %c0_193] : memref<3x32x32xbf16, #tpu.memory_space<vmem>>, vector<1x32x32xbf16>
    %251 = vector.shape_cast %250 : vector<1x32x32xbf16> to vector<32x32xbf16>
    %cst_194 = arith.constant dense<0.000000e+00> : vector<32x32xf32>
    %252 = tpu.matmul %249, %251, %cst_194 {dimension_numbers = #tpu.dot_dimension_numbers<[1], [0], [0], [1], [0, 0, 1, 1], [], []>} : vector<32x32xbf16>, vector<32x32xbf16>, vector<32x32xf32> -> vector<32x32xf32>
    %253 = arith.addf %247, %252 : vector<32x32xf32>
    %c0_195 = arith.constant 0 : index
    %c0_196 = arith.constant 0 : index
    %254 = vector.load %arg26[%c0_195, %c0_196] : memref<1x32xf32, #tpu.memory_space<vmem>>, vector<1x32xf32>
    %255 = vector.broadcast %254 : vector<1x32xf32> to vector<32x32xf32>
    %256 = arith.addf %253, %255 : vector<32x32xf32>
    %cst_197 = arith.constant 0.000000e+00 : f32
    %257 = vector.broadcast %cst_197 : f32 to vector<32x32xf32>
    %258 = arith.maximumf %256, %257 : vector<32x32xf32>
    %cst_198 = arith.constant dense<0.000000e+00> : vector<32xf32>
    %259 = vector.multi_reduction <add>, %258, %cst_198 [1] : vector<32x32xf32> to vector<32xf32>
    %260 = vector.shape_cast %259 : vector<32xf32> to vector<32x1xf32>
    %cst_199 = arith.constant 3.200000e+01 : f32
    %261 = vector.broadcast %cst_199 : f32 to vector<32x1xf32>
    %262 = arith.divf %260, %261 : vector<32x1xf32>
    %263 = vector.broadcast %262 : vector<32x1xf32> to vector<32x32xf32>
    %264 = arith.subf %258, %263 : vector<32x32xf32>
    %265 = arith.mulf %264, %264 : vector<32x32xf32>
    %cst_200 = arith.constant dense<0.000000e+00> : vector<32xf32>
    %266 = vector.multi_reduction <add>, %265, %cst_200 [1] : vector<32x32xf32> to vector<32xf32>
    %267 = vector.shape_cast %266 : vector<32xf32> to vector<32x1xf32>
    %cst_201 = arith.constant 3.200000e+01 : f32
    %268 = vector.broadcast %cst_201 : f32 to vector<32x1xf32>
    %269 = arith.divf %267, %268 : vector<32x1xf32>
    %270 = vector.broadcast %262 : vector<32x1xf32> to vector<32x32xf32>
    %271 = arith.subf %258, %270 : vector<32x32xf32>
    %cst_202 = arith.constant 9.99999974E-6 : f32
    %272 = vector.broadcast %cst_202 : f32 to vector<32x1xf32>
    %273 = arith.addf %269, %272 : vector<32x1xf32>
    %274 = math.rsqrt %273 : vector<32x1xf32>
    %275 = vector.broadcast %274 : vector<32x1xf32> to vector<32x32xf32>
    %276 = arith.mulf %271, %275 : vector<32x32xf32>
    %c0_203 = arith.constant 0 : index
    %c0_204 = arith.constant 0 : index
    %277 = vector.load %arg27[%c0_203, %c0_204] : memref<1x32xf32, #tpu.memory_space<vmem>>, vector<1x32xf32>
    %278 = vector.broadcast %277 : vector<1x32xf32> to vector<32x32xf32>
    %279 = arith.mulf %276, %278 : vector<32x32xf32>
    %c0_205 = arith.constant 0 : index
    %c0_206 = arith.constant 0 : index
    %280 = vector.load %arg28[%c0_205, %c0_206] : memref<1x32xf32, #tpu.memory_space<vmem>>, vector<1x32xf32>
    %281 = vector.broadcast %280 : vector<1x32xf32> to vector<32x32xf32>
    %282 = arith.addf %279, %281 : vector<32x32xf32>
    %cst_207 = arith.constant 0.000000e+00 : f32
    %283 = vector.broadcast %cst_207 : f32 to vector<1x32xf32>
    %c0_208 = arith.constant 0 : index
    %c0_209 = arith.constant 0 : index
    %284 = vector.load %arg43[%c0_208, %c0_209] : memref<34x32xf32, #tpu.memory_space<vmem>>, vector<1x32xf32>
    tpu.vector_store %arg43[%c0_208, %c0_209], %283 {strides = array<i32>} : memref<34x32xf32, #tpu.memory_space<vmem>>, vector<1x32xf32>,
    %cst_210 = arith.constant 0.000000e+00 : f32
    %285 = vector.broadcast %cst_210 : f32 to vector<1x32xf32>
    %c33_211 = arith.constant 33 : index
    %c0_212 = arith.constant 0 : index
    %286 = vector.load %arg43[%c33_211, %c0_212] : memref<34x32xf32, #tpu.memory_space<vmem>>, vector<1x32xf32>
    tpu.vector_store %arg43[%c33_211, %c0_212], %285 {strides = array<i32>} : memref<34x32xf32, #tpu.memory_space<vmem>>, vector<1x32xf32>,
    %c1_213 = arith.constant 1 : index
    %c0_214 = arith.constant 0 : index
    %287 = vector.load %arg43[%c1_213, %c0_214] : memref<34x32xf32, #tpu.memory_space<vmem>>, vector<32x32xf32>
    tpu.vector_store %arg43[%c1_213, %c0_214], %282 {strides = array<i32>} : memref<34x32xf32, #tpu.memory_space<vmem>>, vector<32x32xf32>,
    %c0_215 = arith.constant 0 : index
    %c0_216 = arith.constant 0 : index
    %288 = vector.load %arg43[%c0_215, %c0_216] : memref<34x32xf32, #tpu.memory_space<vmem>>, vector<32x32xf32>
    %289 = arith.truncf %288 : vector<32x32xf32> to vector<32x32xbf16>
    %c0_217 = arith.constant 0 : index
    %c0_218 = arith.constant 0 : index
    %c0_219 = arith.constant 0 : index
    %290 = vector.load %arg29[%c0_217, %c0_218, %c0_219] : memref<3x32x32xbf16, #tpu.memory_space<vmem>>, vector<1x32x32xbf16>
    %291 = vector.shape_cast %290 : vector<1x32x32xbf16> to vector<32x32xbf16>
    %cst_220 = arith.constant dense<0.000000e+00> : vector<32x32xf32>
    %292 = tpu.matmul %289, %291, %cst_220 {dimension_numbers = #tpu.dot_dimension_numbers<[1], [0], [0], [1], [0, 0, 1, 1], [], []>} : vector<32x32xbf16>, vector<32x32xbf16>, vector<32x32xf32> -> vector<32x32xf32>
    %c1_221 = arith.constant 1 : index
    %c0_222 = arith.constant 0 : index
    %293 = vector.load %arg43[%c1_221, %c0_222] : memref<34x32xf32, #tpu.memory_space<vmem>>, vector<32x32xf32>
    %294 = arith.truncf %293 : vector<32x32xf32> to vector<32x32xbf16>
    %c1_223 = arith.constant 1 : index
    %c0_224 = arith.constant 0 : index
    %c0_225 = arith.constant 0 : index
    %295 = vector.load %arg29[%c1_223, %c0_224, %c0_225] : memref<3x32x32xbf16, #tpu.memory_space<vmem>>, vector<1x32x32xbf16>
    %296 = vector.shape_cast %295 : vector<1x32x32xbf16> to vector<32x32xbf16>
    %cst_226 = arith.constant dense<0.000000e+00> : vector<32x32xf32>
    %297 = tpu.matmul %294, %296, %cst_226 {dimension_numbers = #tpu.dot_dimension_numbers<[1], [0], [0], [1], [0, 0, 1, 1], [], []>} : vector<32x32xbf16>, vector<32x32xbf16>, vector<32x32xf32> -> vector<32x32xf32>
    %298 = arith.addf %292, %297 : vector<32x32xf32>
    %c2_227 = arith.constant 2 : index
    %c0_228 = arith.constant 0 : index
    %299 = vector.load %arg43[%c2_227, %c0_228] : memref<34x32xf32, #tpu.memory_space<vmem>>, vector<32x32xf32>
    %300 = arith.truncf %299 : vector<32x32xf32> to vector<32x32xbf16>
    %c2_229 = arith.constant 2 : index
    %c0_230 = arith.constant 0 : index
    %c0_231 = arith.constant 0 : index
    %301 = vector.load %arg29[%c2_229, %c0_230, %c0_231] : memref<3x32x32xbf16, #tpu.memory_space<vmem>>, vector<1x32x32xbf16>
    %302 = vector.shape_cast %301 : vector<1x32x32xbf16> to vector<32x32xbf16>
    %cst_232 = arith.constant dense<0.000000e+00> : vector<32x32xf32>
    %303 = tpu.matmul %300, %302, %cst_232 {dimension_numbers = #tpu.dot_dimension_numbers<[1], [0], [0], [1], [0, 0, 1, 1], [], []>} : vector<32x32xbf16>, vector<32x32xbf16>, vector<32x32xf32> -> vector<32x32xf32>
    %304 = arith.addf %298, %303 : vector<32x32xf32>
    %c0_233 = arith.constant 0 : index
    %c0_234 = arith.constant 0 : index
    %305 = vector.load %arg30[%c0_233, %c0_234] : memref<1x32xf32, #tpu.memory_space<vmem>>, vector<1x32xf32>
    %306 = vector.broadcast %305 : vector<1x32xf32> to vector<32x32xf32>
    %307 = arith.addf %304, %306 : vector<32x32xf32>
    %cst_235 = arith.constant 0.000000e+00 : f32
    %308 = vector.broadcast %cst_235 : f32 to vector<32x32xf32>
    %309 = arith.maximumf %307, %308 : vector<32x32xf32>
    %cst_236 = arith.constant dense<0.000000e+00> : vector<32xf32>
    %310 = vector.multi_reduction <add>, %309, %cst_236 [1] : vector<32x32xf32> to vector<32xf32>
    %311 = vector.shape_cast %310 : vector<32xf32> to vector<32x1xf32>
    %cst_237 = arith.constant 3.200000e+01 : f32
    %312 = vector.broadcast %cst_237 : f32 to vector<32x1xf32>
    %313 = arith.divf %311, %312 : vector<32x1xf32>
    %314 = vector.broadcast %313 : vector<32x1xf32> to vector<32x32xf32>
    %315 = arith.subf %309, %314 : vector<32x32xf32>
    %316 = arith.mulf %315, %315 : vector<32x32xf32>
    %cst_238 = arith.constant dense<0.000000e+00> : vector<32xf32>
    %317 = vector.multi_reduction <add>, %316, %cst_238 [1] : vector<32x32xf32> to vector<32xf32>
    %318 = vector.shape_cast %317 : vector<32xf32> to vector<32x1xf32>
    %cst_239 = arith.constant 3.200000e+01 : f32
    %319 = vector.broadcast %cst_239 : f32 to vector<32x1xf32>
    %320 = arith.divf %318, %319 : vector<32x1xf32>
    %321 = vector.broadcast %313 : vector<32x1xf32> to vector<32x32xf32>
    %322 = arith.subf %309, %321 : vector<32x32xf32>
    %cst_240 = arith.constant 9.99999974E-6 : f32
    %323 = vector.broadcast %cst_240 : f32 to vector<32x1xf32>
    %324 = arith.addf %320, %323 : vector<32x1xf32>
    %325 = math.rsqrt %324 : vector<32x1xf32>
    %326 = vector.broadcast %325 : vector<32x1xf32> to vector<32x32xf32>
    %327 = arith.mulf %322, %326 : vector<32x32xf32>
    %c0_241 = arith.constant 0 : index
    %c0_242 = arith.constant 0 : index
    %328 = vector.load %arg31[%c0_241, %c0_242] : memref<1x32xf32, #tpu.memory_space<vmem>>, vector<1x32xf32>
    %329 = vector.broadcast %328 : vector<1x32xf32> to vector<32x32xf32>
    %330 = arith.mulf %327, %329 : vector<32x32xf32>
    %c0_243 = arith.constant 0 : index
    %c0_244 = arith.constant 0 : index
    %331 = vector.load %arg32[%c0_243, %c0_244] : memref<1x32xf32, #tpu.memory_space<vmem>>, vector<1x32xf32>
    %332 = vector.broadcast %331 : vector<1x32xf32> to vector<32x32xf32>
    %333 = arith.addf %330, %332 : vector<32x32xf32>
    %c0_245 = arith.constant 0 : index
    %c0_246 = arith.constant 0 : index
    %334 = vector.load %arg33[%c0_245, %c0_246] : memref<1x32xf32, #tpu.memory_space<vmem>>, vector<1x32xf32>
    %335 = tpu.transpose %333, [1, 0] : vector<32x32xf32> -> vector<32x32xf32>
    %cst_247 = arith.constant dense<0.000000e+00> : vector<1x32xf32>
    %336 = tpu.matmul %334, %335, %cst_247 {dimension_numbers = #tpu.dot_dimension_numbers<[1], [0], [0], [1], [0, 0, 1, 1], [], []>} : vector<1x32xf32>, vector<32x32xf32>, vector<1x32xf32> -> vector<1x32xf32>
    %c0_248 = arith.constant 0 : index
    %c0_249 = arith.constant 0 : index
    %337 = vector.load %arg34[%c0_248, %c0_249] : memref<1x1xf32, #tpu.memory_space<vmem>>, vector<1x1xf32>
    %338 = vector.broadcast %337 : vector<1x1xf32> to vector<1x32xf32>
    %339 = arith.addf %336, %338 : vector<1x32xf32>
    %c0_250 = arith.constant 0 : index
    %c0_251 = arith.constant 0 : index
    %c0_252 = arith.constant 0 : index
    %340 = vector.load %arg42[%c0_250, %c0_251, %c0_252] : memref<1x1x32xf32, #tpu.memory_space<vmem>>, vector<1x1x32xf32>
    %341 = vector.shape_cast %340 : vector<1x1x32xf32> to vector<1x32xf32>
    %342 = vector.shape_cast %339 : vector<1x32xf32> to vector<1x1x32xf32>
    tpu.vector_store %arg42[%c0_250, %c0_251, %c0_252], %342 {strides = array<i32>} : memref<1x1x32xf32, #tpu.memory_space<vmem>>, vector<1x1x32xf32>,
    %343 = tpu.iota {dimensions = array<i32: 1>} : vector<32x16xi32>
    %c0_253 = arith.constant 0 : index
    %c0_254 = arith.constant 0 : index
    %c0_255 = arith.constant 0 : index
    %344 = vector.load %arg3[%c0_253, %c0_254, %c0_255] : memref<1x32x1xf32, #tpu.memory_space<vmem>>, vector<1x32x1xf32>
    %345 = vector.shape_cast %344 : vector<1x32x1xf32> to vector<32x1xf32>
    %c0_256 = arith.constant 0 : index
    %c0_257 = arith.constant 0 : index
    %346 = vector.load %arg35[%c0_256, %c0_257] : memref<1x14xf32, #tpu.memory_space<vmem>>, vector<1x14xf32>
    %347 = vector.broadcast %345 : vector<32x1xf32> to vector<32x14xf32>
    %348 = vector.broadcast %346 : vector<1x14xf32> to vector<32x14xf32>
    %349 = arith.cmpf ogt, %347, %348 : vector<32x14xf32>
    %350 = arith.extui %349 : vector<32x14xi1> to vector<32x14xi32>
    %cst_258 = arith.constant dense<0> : vector<32xi32>
    %351 = vector.multi_reduction <add>, %350, %cst_258 [1] : vector<32x14xi32> to vector<32xi32>
    %352 = vector.shape_cast %351 : vector<32xi32> to vector<32x1xi32>
    %353 = vector.broadcast %352 : vector<32x1xi32> to vector<32x16xi32>
    %354 = arith.cmpi eq, %353, %343 : vector<32x16xi32>
    %355 = arith.extui %354 : vector<32x16xi1> to vector<32x16xi32>
    %356 = arith.sitofp %355 : vector<32x16xi32> to vector<32x16xf32>
    %357 = arith.truncf %356 : vector<32x16xf32> to vector<32x16xbf16>
    %c0_259 = arith.constant 0 : index
    %c0_260 = arith.constant 0 : index
    %358 = vector.load %arg37[%c0_259, %c0_260] : memref<16x32xbf16, #tpu.memory_space<vmem>>, vector<16x32xbf16>
    %cst_261 = arith.constant dense<0.000000e+00> : vector<32x32xf32>
    %359 = tpu.matmul %357, %358, %cst_261 {dimension_numbers = #tpu.dot_dimension_numbers<[1], [0], [0], [1], [0, 0, 1, 1], [], []>} : vector<32x16xbf16>, vector<16x32xbf16>, vector<32x32xf32> -> vector<32x32xf32>
    %cst_262 = arith.constant 1.000000e+00 : f32
    %360 = vector.broadcast %cst_262 : f32 to vector<32x32xf32>
    %361 = arith.mulf %360, %359 : vector<32x32xf32>
    %362 = arith.addf %120, %361 : vector<32x32xf32>
    %c0_263 = arith.constant 0 : index
    %c0_264 = arith.constant 0 : index
    %c0_265 = arith.constant 0 : index
    %363 = vector.load %arg4[%c0_263, %c0_264, %c0_265] : memref<1x32x1xf32, #tpu.memory_space<vmem>>, vector<1x32x1xf32>
    %364 = vector.shape_cast %363 : vector<1x32x1xf32> to vector<32x1xf32>
    %c0_266 = arith.constant 0 : index
    %c0_267 = arith.constant 0 : index
    %365 = vector.load %arg36[%c0_266, %c0_267] : memref<1x14xf32, #tpu.memory_space<vmem>>, vector<1x14xf32>
    %366 = vector.broadcast %364 : vector<32x1xf32> to vector<32x14xf32>
    %367 = vector.broadcast %365 : vector<1x14xf32> to vector<32x14xf32>
    %368 = arith.cmpf ogt, %366, %367 : vector<32x14xf32>
    %369 = arith.extui %368 : vector<32x14xi1> to vector<32x14xi32>
    %cst_268 = arith.constant dense<0> : vector<32xi32>
    %370 = vector.multi_reduction <add>, %369, %cst_268 [1] : vector<32x14xi32> to vector<32xi32>
    %371 = vector.shape_cast %370 : vector<32xi32> to vector<32x1xi32>
    %372 = vector.broadcast %371 : vector<32x1xi32> to vector<32x16xi32>
    %373 = arith.cmpi eq, %372, %343 : vector<32x16xi32>
    %374 = arith.extui %373 : vector<32x16xi1> to vector<32x16xi32>
    %375 = arith.sitofp %374 : vector<32x16xi32> to vector<32x16xf32>
    %376 = arith.truncf %375 : vector<32x16xf32> to vector<32x16xbf16>
    %c0_269 = arith.constant 0 : index
    %c0_270 = arith.constant 0 : index
    %377 = vector.load %arg38[%c0_269, %c0_270] : memref<16x32xbf16, #tpu.memory_space<vmem>>, vector<16x32xbf16>
    %cst_271 = arith.constant dense<0.000000e+00> : vector<32x32xf32>
    %378 = tpu.matmul %376, %377, %cst_271 {dimension_numbers = #tpu.dot_dimension_numbers<[1], [0], [0], [1], [0, 0, 1, 1], [], []>} : vector<32x16xbf16>, vector<16x32xbf16>, vector<32x32xf32> -> vector<32x32xf32>
    %cst_272 = arith.constant 9.99999997E-7 : f32
    %379 = vector.broadcast %cst_272 : f32 to vector<32x32xf32>
    %380 = arith.mulf %379, %378 : vector<32x32xf32>
    %381 = arith.addf %362, %380 : vector<32x32xf32>
    %c0_273 = arith.constant 0 : index
    %c0_274 = arith.constant 0 : index
    %c0_275 = arith.constant 0 : index
    %382 = vector.load %arg39[%c0_273, %c0_274, %c0_275] : memref<1x32x32xf32, #tpu.memory_space<vmem>>, vector<1x32x32xf32>
    %383 = vector.shape_cast %382 : vector<1x32x32xf32> to vector<32x32xf32>
    %384 = vector.shape_cast %381 : vector<32x32xf32> to vector<1x32x32xf32>
    tpu.vector_store %arg39[%c0_273, %c0_274, %c0_275], %384 {strides = array<i32>} : memref<1x32x32xf32, #tpu.memory_space<vmem>>, vector<1x32x32xf32>,
    return
  }
  func.func @transform_0(%arg0: i32) -> (i32, i32, i32) {
    %c0_i32 = arith.constant 0 : i32
    %c0_i32_0 = arith.constant 0 : i32
    %c0_i32_1 = arith.constant 0 : i32
    return %arg0, %c0_i32, %c0_i32_0 : i32, i32, i32
  }
  func.func @transform_1(%arg0: i32) -> (i32, i32, i32) {
    %c0_i32 = arith.constant 0 : i32
    %c0_i32_0 = arith.constant 0 : i32
    %c0_i32_1 = arith.constant 0 : i32
    return %arg0, %c0_i32, %c0_i32_0 : i32, i32, i32
  }
  func.func @transform_2(%arg0: i32) -> (i32, i32, i32) {
    %c0_i32 = arith.constant 0 : i32
    %c0_i32_0 = arith.constant 0 : i32
    %c0_i32_1 = arith.constant 0 : i32
    return %arg0, %c0_i32, %c0_i32_0 : i32, i32, i32
  }
  func.func @transform_3(%arg0: i32) -> (i32, i32, i32) {
    %c0_i32 = arith.constant 0 : i32
    %c0_i32_0 = arith.constant 0 : i32
    %c0_i32_1 = arith.constant 0 : i32
    return %arg0, %c0_i32, %c0_i32_0 : i32, i32, i32
  }
  func.func @transform_4(%arg0: i32) -> (i32, i32, i32) {
    %c0_i32 = arith.constant 0 : i32
    %c0_i32_0 = arith.constant 0 : i32
    %c0_i32_1 = arith.constant 0 : i32
    %c0_i32_2 = arith.constant 0 : i32
    return %c0_i32, %c0_i32_0, %c0_i32_1 : i32, i32, i32
  }
  func.func @transform_5(%arg0: i32) -> (i32, i32) {
    %c0_i32 = arith.constant 0 : i32
    %c0_i32_0 = arith.constant 0 : i32
    %c0_i32_1 = arith.constant 0 : i32
    return %c0_i32, %c0_i32_0 : i32, i32
  }
  func.func @transform_6(%arg0: i32) -> (i32, i32) {
    %c0_i32 = arith.constant 0 : i32
    %c0_i32_0 = arith.constant 0 : i32
    %c0_i32_1 = arith.constant 0 : i32
    return %c0_i32, %c0_i32_0 : i32, i32
  }
  func.func @transform_7(%arg0: i32) -> (i32, i32) {
    %c0_i32 = arith.constant 0 : i32
    %c0_i32_0 = arith.constant 0 : i32
    %c0_i32_1 = arith.constant 0 : i32
    return %c0_i32, %c0_i32_0 : i32, i32
  }
  func.func @transform_8(%arg0: i32) -> (i32, i32, i32) {
    %c0_i32 = arith.constant 0 : i32
    %c0_i32_0 = arith.constant 0 : i32
    %c0_i32_1 = arith.constant 0 : i32
    %c0_i32_2 = arith.constant 0 : i32
    return %c0_i32, %c0_i32_0, %c0_i32_1 : i32, i32, i32
  }
  func.func @transform_9(%arg0: i32) -> (i32, i32) {
    %c0_i32 = arith.constant 0 : i32
    %c0_i32_0 = arith.constant 0 : i32
    %c0_i32_1 = arith.constant 0 : i32
    return %c0_i32, %c0_i32_0 : i32, i32
  }
  func.func @transform_10(%arg0: i32) -> (i32, i32) {
    %c0_i32 = arith.constant 0 : i32
    %c0_i32_0 = arith.constant 0 : i32
    %c0_i32_1 = arith.constant 0 : i32
    return %c0_i32, %c0_i32_0 : i32, i32
  }
  func.func @transform_11(%arg0: i32) -> (i32, i32) {
    %c0_i32 = arith.constant 0 : i32
    %c0_i32_0 = arith.constant 0 : i32
    %c0_i32_1 = arith.constant 0 : i32
    return %c0_i32, %c0_i32_0 : i32, i32
  }
  func.func @transform_12(%arg0: i32) -> (i32, i32) {
    %c0_i32 = arith.constant 0 : i32
    %c0_i32_0 = arith.constant 0 : i32
    %c0_i32_1 = arith.constant 0 : i32
    return %c0_i32, %c0_i32_0 : i32, i32
  }
  func.func @transform_13(%arg0: i32) -> (i32, i32) {
    %c0_i32 = arith.constant 0 : i32
    %c0_i32_0 = arith.constant 0 : i32
    %c0_i32_1 = arith.constant 0 : i32
    return %c0_i32, %c0_i32_0 : i32, i32
  }
  func.func @transform_14(%arg0: i32) -> (i32, i32, i32) {
    %c0_i32 = arith.constant 0 : i32
    %c0_i32_0 = arith.constant 0 : i32
    %c0_i32_1 = arith.constant 0 : i32
    %c0_i32_2 = arith.constant 0 : i32
    return %c0_i32, %c0_i32_0, %c0_i32_1 : i32, i32, i32
  }
  func.func @transform_15(%arg0: i32) -> (i32, i32) {
    %c0_i32 = arith.constant 0 : i32
    %c0_i32_0 = arith.constant 0 : i32
    %c0_i32_1 = arith.constant 0 : i32
    return %c0_i32, %c0_i32_0 : i32, i32
  }
  func.func @transform_16(%arg0: i32) -> (i32, i32) {
    %c0_i32 = arith.constant 0 : i32
    %c0_i32_0 = arith.constant 0 : i32
    %c0_i32_1 = arith.constant 0 : i32
    return %c0_i32, %c0_i32_0 : i32, i32
  }
  func.func @transform_17(%arg0: i32) -> (i32, i32) {
    %c0_i32 = arith.constant 0 : i32
    %c0_i32_0 = arith.constant 0 : i32
    %c0_i32_1 = arith.constant 0 : i32
    return %c0_i32, %c0_i32_0 : i32, i32
  }
  func.func @transform_18(%arg0: i32) -> (i32, i32, i32) {
    %c0_i32 = arith.constant 0 : i32
    %c0_i32_0 = arith.constant 0 : i32
    %c0_i32_1 = arith.constant 0 : i32
    %c0_i32_2 = arith.constant 0 : i32
    return %c0_i32, %c0_i32_0, %c0_i32_1 : i32, i32, i32
  }
  func.func @transform_19(%arg0: i32) -> (i32, i32) {
    %c0_i32 = arith.constant 0 : i32
    %c0_i32_0 = arith.constant 0 : i32
    %c0_i32_1 = arith.constant 0 : i32
    return %c0_i32, %c0_i32_0 : i32, i32
  }
  func.func @transform_20(%arg0: i32) -> (i32, i32) {
    %c0_i32 = arith.constant 0 : i32
    %c0_i32_0 = arith.constant 0 : i32
    %c0_i32_1 = arith.constant 0 : i32
    return %c0_i32, %c0_i32_0 : i32, i32
  }
  func.func @transform_21(%arg0: i32) -> (i32, i32) {
    %c0_i32 = arith.constant 0 : i32
    %c0_i32_0 = arith.constant 0 : i32
    %c0_i32_1 = arith.constant 0 : i32
    return %c0_i32, %c0_i32_0 : i32, i32
  }
  func.func @transform_22(%arg0: i32) -> (i32, i32) {
    %c0_i32 = arith.constant 0 : i32
    %c0_i32_0 = arith.constant 0 : i32
    %c0_i32_1 = arith.constant 0 : i32
    return %c0_i32, %c0_i32_0 : i32, i32
  }
  func.func @transform_23(%arg0: i32) -> (i32, i32) {
    %c0_i32 = arith.constant 0 : i32
    %c0_i32_0 = arith.constant 0 : i32
    %c0_i32_1 = arith.constant 0 : i32
    return %c0_i32, %c0_i32_0 : i32, i32
  }
  func.func @transform_24(%arg0: i32) -> (i32, i32, i32) {
    %c0_i32 = arith.constant 0 : i32
    %c0_i32_0 = arith.constant 0 : i32
    %c0_i32_1 = arith.constant 0 : i32
    %c0_i32_2 = arith.constant 0 : i32
    return %c0_i32, %c0_i32_0, %c0_i32_1 : i32, i32, i32
  }
  func.func @transform_25(%arg0: i32) -> (i32, i32) {
    %c0_i32 = arith.constant 0 : i32
    %c0_i32_0 = arith.constant 0 : i32
    %c0_i32_1 = arith.constant 0 : i32
    return %c0_i32, %c0_i32_0 : i32, i32
  }
  func.func @transform_26(%arg0: i32) -> (i32, i32) {
    %c0_i32 = arith.constant 0 : i32
    %c0_i32_0 = arith.constant 0 : i32
    %c0_i32_1 = arith.constant 0 : i32
    return %c0_i32, %c0_i32_0 : i32, i32
  }
  func.func @transform_27(%arg0: i32) -> (i32, i32) {
    %c0_i32 = arith.constant 0 : i32
    %c0_i32_0 = arith.constant 0 : i32
    %c0_i32_1 = arith.constant 0 : i32
    return %c0_i32, %c0_i32_0 : i32, i32
  }
  func.func @transform_28(%arg0: i32) -> (i32, i32, i32) {
    %c0_i32 = arith.constant 0 : i32
    %c0_i32_0 = arith.constant 0 : i32
    %c0_i32_1 = arith.constant 0 : i32
    %c0_i32_2 = arith.constant 0 : i32
    return %c0_i32, %c0_i32_0, %c0_i32_1 : i32, i32, i32
  }
  func.func @transform_29(%arg0: i32) -> (i32, i32) {
    %c0_i32 = arith.constant 0 : i32
    %c0_i32_0 = arith.constant 0 : i32
    %c0_i32_1 = arith.constant 0 : i32
    return %c0_i32, %c0_i32_0 : i32, i32
  }
  func.func @transform_30(%arg0: i32) -> (i32, i32) {
    %c0_i32 = arith.constant 0 : i32
    %c0_i32_0 = arith.constant 0 : i32
    %c0_i32_1 = arith.constant 0 : i32
    return %c0_i32, %c0_i32_0 : i32, i32
  }
  func.func @transform_31(%arg0: i32) -> (i32, i32) {
    %c0_i32 = arith.constant 0 : i32
    %c0_i32_0 = arith.constant 0 : i32
    %c0_i32_1 = arith.constant 0 : i32
    return %c0_i32, %c0_i32_0 : i32, i32
  }
  func.func @transform_32(%arg0: i32) -> (i32, i32) {
    %c0_i32 = arith.constant 0 : i32
    %c0_i32_0 = arith.constant 0 : i32
    %c0_i32_1 = arith.constant 0 : i32
    return %c0_i32, %c0_i32_0 : i32, i32
  }
  func.func @transform_33(%arg0: i32) -> (i32, i32) {
    %c0_i32 = arith.constant 0 : i32
    %c0_i32_0 = arith.constant 0 : i32
    %c0_i32_1 = arith.constant 0 : i32
    return %c0_i32, %c0_i32_0 : i32, i32
  }
  func.func @transform_34(%arg0: i32) -> (i32, i32) {
    %c0_i32 = arith.constant 0 : i32
    %c0_i32_0 = arith.constant 0 : i32
    %c0_i32_1 = arith.constant 0 : i32
    return %c0_i32, %c0_i32_0 : i32, i32
  }
  func.func @transform_35(%arg0: i32) -> (i32, i32) {
    %c0_i32 = arith.constant 0 : i32
    %c0_i32_0 = arith.constant 0 : i32
    %c0_i32_1 = arith.constant 0 : i32
    return %c0_i32, %c0_i32_0 : i32, i32
  }
  func.func @transform_36(%arg0: i32) -> (i32, i32) {
    %c0_i32 = arith.constant 0 : i32
    %c0_i32_0 = arith.constant 0 : i32
    %c0_i32_1 = arith.constant 0 : i32
    return %c0_i32, %c0_i32_0 : i32, i32
  }
  func.func @transform_37(%arg0: i32) -> (i32, i32) {
    %c0_i32 = arith.constant 0 : i32
    %c0_i32_0 = arith.constant 0 : i32
    %c0_i32_1 = arith.constant 0 : i32
    return %c0_i32, %c0_i32_0 : i32, i32
  }
  func.func @transform_38(%arg0: i32) -> (i32, i32, i32) {
    %c0_i32 = arith.constant 0 : i32
    %c0_i32_0 = arith.constant 0 : i32
    %c0_i32_1 = arith.constant 0 : i32
    return %arg0, %c0_i32, %c0_i32_0 : i32, i32, i32
  }
  func.func @transform_39(%arg0: i32) -> (i32, i32, i32) {
    %c0_i32 = arith.constant 0 : i32
    %c0_i32_0 = arith.constant 0 : i32
    %c0_i32_1 = arith.constant 0 : i32
    return %arg0, %c0_i32, %c0_i32_0 : i32, i32, i32
  }
  func.func @transform_40(%arg0: i32) -> (i32, i32, i32) {
    %c0_i32 = arith.constant 0 : i32
    %c0_i32_0 = arith.constant 0 : i32
    %c0_i32_1 = arith.constant 0 : i32
    return %arg0, %c0_i32, %c0_i32_0 : i32, i32, i32
  }
  func.func @transform_41(%arg0: i32) -> (i32, i32, i32) {
    %c0_i32 = arith.constant 0 : i32
    %c0_i32_0 = arith.constant 0 : i32
    %c0_i32_1 = arith.constant 0 : i32
    return %arg0, %c0_i32, %c0_i32_0 : i32, i32, i32
  }
}

</mosaic_0001>

<llo_original>
// kernel: tpu_custom_call.1
$region0: #{tpu_custom_call.1}
  #allocation0 [shape = 'u32[]', space=smem, size = 0x4, offset = 0x4, fixed_abs, tag = 'smem constant byte address 0x4 - core index']
  #allocation1 [shape = 'u32[144,128]{1,0:T(1,128)}', space=vmem, size = 0x12000, scoped, tag = 'internal scratch']
  #allocation2 [shape = 'f32[34,32]{1,0:T(8,128)}', space=vmem, size = 0x5000, scoped, tag = 'scratch operand']
  #allocation3 [shape = 'f32[1,1]{1,0:T(1,128)S(1)}', space=vmem, size = 0x200, scoped, tag = 'scoped memory for tpu_custom_call.1']
  #allocation4 [shape = 'f32[1,1]{1,0:T(1,128)S(1)}', space=vmem, size = 0x200, scoped, tag = 'scoped memory for tpu_custom_call.1']
  #allocation5 [shape = 'f32[1,1]{1,0:T(1,128)S(1)}', space=vmem, size = 0x200, scoped, tag = 'scoped memory for tpu_custom_call.1']
  %s0 = inlined_call_operand.smem [shape: u32[42], index: -1, kind: input, shape index: {}]
  %s1 = sld [smem:[%s0]]
  %s2 = scalar_lea.smem %s0, 1
  %s3 = sld [smem:[%s2]]
  %s4 = scalar_lea.smem %s0, 2
  %s5 = sld [smem:[%s4]]
  %s6 = scalar_lea.smem %s0, 3
  %s7 = sld [smem:[%s6]]
  %s8 = scalar_lea.smem %s0, 4
  %s9 = sld [smem:[%s8]]
  %s10 = scalar_lea.smem %s0, 5
  %s11 = sld [smem:[%s10]]
  %s12 = scalar_lea.smem %s0, 6
  %s13 = sld [smem:[%s12]]
  %s14 = scalar_lea.smem %s0, 7
  %s15 = sld [smem:[%s14]]
  %s16 = scalar_lea.smem %s0, 8
  %s17 = sld [smem:[%s16]]
  %s18 = scalar_lea.smem %s0, 9
  %s19 = sld [smem:[%s18]]
  %s20 = scalar_lea.smem %s0, 10
  %s21 = sld [smem:[%s20]]
  %s22 = scalar_lea.smem %s0, 11
  %s23 = sld [smem:[%s22]]
  %s24 = scalar_lea.smem %s0, 12
  %s25 = sld [smem:[%s24]]
  %s26 = scalar_lea.smem %s0, 13
  %s27 = sld [smem:[%s26]]
  %s28 = scalar_lea.smem %s0, 14
  %s29 = sld [smem:[%s28]]
  %s30 = scalar_lea.smem %s0, 15
  %s31 = sld [smem:[%s30]]
  %s32 = scalar_lea.smem %s0, 16
  %s33 = sld [smem:[%s32]]
  %s34 = scalar_lea.smem %s0, 17
  %s35 = sld [smem:[%s34]]
  %s36 = scalar_lea.smem %s0, 18
  %s37 = sld [smem:[%s36]]
  %s38 = scalar_lea.smem %s0, 19
  %s39 = sld [smem:[%s38]]
  %s40 = scalar_lea.smem %s0, 20
  %s41 = sld [smem:[%s40]]
  %s42 = scalar_lea.smem %s0, 21
  %s43 = sld [smem:[%s42]]
  %s44 = scalar_lea.smem %s0, 22
  %s45 = sld [smem:[%s44]]
  %s46 = scalar_lea.smem %s0, 23
  %s47 = sld [smem:[%s46]]
  %s48 = scalar_lea.smem %s0, 24
  %s49 = sld [smem:[%s48]]
  %s50 = scalar_lea.smem %s0, 25
  %s51 = sld [smem:[%s50]]
  %s52 = scalar_lea.smem %s0, 26
  %s53 = sld [smem:[%s52]]
  %s54 = scalar_lea.smem %s0, 27
  %s55 = sld [smem:[%s54]]
  %s56 = scalar_lea.smem %s0, 28
  %s57 = sld [smem:[%s56]]
  %s58 = scalar_lea.smem %s0, 29
  %s59 = sld [smem:[%s58]]
  %s60 = scalar_lea.smem %s0, 30
  %s61 = sld [smem:[%s60]]
  %s62 = scalar_lea.smem %s0, 31
  %s63 = sld [smem:[%s62]]
  %s64 = scalar_lea.smem %s0, 32
  %s65 = sld [smem:[%s64]]
  %s66 = scalar_lea.smem %s0, 33
  %s67 = sld [smem:[%s66]]
  %s68 = scalar_lea.smem %s0, 34
  %s69 = sld [smem:[%s68]]
  %s70 = scalar_lea.smem %s0, 35
  %s71 = sld [smem:[%s70]]
  %s72 = scalar_lea.smem %s0, 36
  %s73 = sld [smem:[%s72]]
  %s74 = scalar_lea.smem %s0, 37
  %s75 = sld [smem:[%s74]]
  %s76 = scalar_lea.smem %s0, 38
  %s77 = sld [smem:[%s76]]
  %s78 = scalar_lea.smem %s0, 39
  %s79 = sld [smem:[%s78]]
  %s80 = scalar_lea.smem %s0, 40
  %s81 = sld [smem:[%s80]]
  %s82 = scalar_lea.smem %s0, 41
  %s83 = sld [smem:[%s82]]
  %84 = xla_tuple %s77, %s79, %s81, %s83
  %s85 = sld [smem:[#allocation0]]
  $region349: #{tpu_custom_call.1} parent=0
    _
  %s87 = ssub.s32 1, %s85
  %s88 = scalar_select 0, %s87, %s85
  %v89 = vstv %s27
  %90 = vst [vmem:[#allocation3] sm:$0x1] %v89
  %v91 = vstv %s47
  %92 = vst [vmem:[#allocation4] sm:$0x1] %v91
  %v93 = vstv %s67
  %94 = vst [vmem:[#allocation5] sm:$0x1] %v93
  $region1: #{tpu_custom_call.1} parent=0
    #allocation6 [shape = 'u8[8192]{0}', space=vmem, size = 0x2000, scoped, tag = 'input window, operand 0']
    #allocation7 [shape = 's32[2]{0}', space=sflag, size = 0x8, scoped, tag = 'scoped memory for tpu_custom_call.1']
    #allocation8 [shape = 's32[2]{0}', space=sflag, size = 0x8, scoped, tag = 'scoped memory for tpu_custom_call.1']
    #allocation9 [shape = 'u8[32768]{0}', space=vmem, size = 0x8000, scoped, tag = 'input window, operand 1']
    #allocation10 [shape = 's32[2]{0}', space=sflag, size = 0x8, scoped, tag = 'scoped memory for tpu_custom_call.1']
    #allocation11 [shape = 'u8[32768]{0}', space=vmem, size = 0x8000, scoped, tag = 'input window, operand 2']
    #allocation12 [shape = 'u8[32768]{0}', space=vmem, size = 0x8000, scoped, tag = 'input window, operand 3']
    #allocation13 [shape = 's32[2]{0}', space=sflag, size = 0x8, scoped, tag = 'scoped memory for tpu_custom_call.1']
    #allocation14 [shape = 'u8[24576]{0}', space=vmem, size = 0x6000, scoped, tag = 'input window, operand 4, single buffered']
    #allocation15 [shape = 'u8[512]{0}', space=vmem, size = 0x400, scoped, tag = 'input window, operand 5, single buffered']
    #allocation16 [shape = 's32[1]{0}', space=sflag, size = 0x4, scoped, tag = 'scoped memory for tpu_custom_call.1']
    #allocation17 [shape = 'u8[512]{0}', space=vmem, size = 0x400, scoped, tag = 'input window, operand 6, single buffered']
    #allocation18 [shape = 'u8[512]{0}', space=vmem, size = 0x400, scoped, tag = 'input window, operand 7, single buffered']
    #allocation19 [shape = 's32[1]{0}', space=sflag, size = 0x4, scoped, tag = 'scoped memory for tpu_custom_call.1']
    #allocation20 [shape = 'u8[24576]{0}', space=vmem, size = 0x6000, scoped, tag = 'input window, operand 8, single buffered']
    #allocation21 [shape = 'u8[512]{0}', space=vmem, size = 0x400, scoped, tag = 'input window, operand 9, single buffered']
    #allocation22 [shape = 's32[1]{0}', space=sflag, size = 0x4, scoped, tag = 'scoped memory for tpu_custom_call.1']
    #allocation23 [shape = 'u8[512]{0}', space=vmem, size = 0x400, scoped, tag = 'input window, operand 10, single buffered']
    #allocation24 [shape = 'u8[512]{0}', space=vmem, size = 0x400, scoped, tag = 'input window, operand 11, single buffered']
    #allocation25 [shape = 's32[1]{0}', space=sflag, size = 0x4, scoped, tag = 'scoped memory for tpu_custom_call.1']
    #allocation26 [shape = 'u8[512]{0}', space=vmem, size = 0x400, scoped, tag = 'input window, operand 12, single buffered']
    #allocation27 [shape = 'u8[24576]{0}', space=vmem, size = 0x6000, scoped, tag = 'input window, operand 14, single buffered']
    #allocation28 [shape = 's32[1]{0}', space=sflag, size = 0x4, scoped, tag = 'scoped memory for tpu_custom_call.1']
    #allocation29 [shape = 'u8[512]{0}', space=vmem, size = 0x400, scoped, tag = 'input window, operand 15, single buffered']
    #allocation30 [shape = 'u8[512]{0}', space=vmem, size = 0x400, scoped, tag = 'input window, operand 16, single buffered']
    #allocation31 [shape = 's32[1]{0}', space=sflag, size = 0x4, scoped, tag = 'scoped memory for tpu_custom_call.1']
    #allocation32 [shape = 'u8[512]{0}', space=vmem, size = 0x400, scoped, tag = 'input window, operand 17, single buffered']
    #allocation33 [shape = 'u8[24576]{0}', space=vmem, size = 0x6000, scoped, tag = 'input window, operand 18, single buffered']
    #allocation34 [shape = 's32[1]{0}', space=sflag, size = 0x4, scoped, tag = 'scoped memory for tpu_custom_call.1']
    #allocation35 [shape = 'u8[512]{0}', space=vmem, size = 0x400, scoped, tag = 'input window, operand 19, single buffered']
    #allocation36 [shape = 'u8[512]{0}', space=vmem, size = 0x400, scoped, tag = 'input window, operand 20, single buffered']
    #allocation37 [shape = 's32[1]{0}', space=sflag, size = 0x4, scoped, tag = 'scoped memory for tpu_custom_call.1']
    #allocation38 [shape = 'u8[512]{0}', space=vmem, size = 0x400, scoped, tag = 'input window, operand 21, single buffered']
    #allocation39 [shape = 'u8[512]{0}', space=vmem, size = 0x400, scoped, tag = 'input window, operand 22, single buffered']
    #allocation40 [shape = 's32[1]{0}', space=sflag, size = 0x4, scoped, tag = 'scoped memory for tpu_custom_call.1']
    #allocation41 [shape = 'u8[24576]{0}', space=vmem, size = 0x6000, scoped, tag = 'input window, operand 24, single buffered']
    #allocation42 [shape = 'u8[512]{0}', space=vmem, size = 0x400, scoped, tag = 'input window, operand 25, single buffered']
    #allocation43 [shape = 's32[1]{0}', space=sflag, size = 0x4, scoped, tag = 'scoped memory for tpu_custom_call.1']
    #allocation44 [shape = 'u8[512]{0}', space=vmem, size = 0x400, scoped, tag = 'input window, operand 26, single buffered']
    #allocation45 [shape = 'u8[512]{0}', space=vmem, size = 0x400, scoped, tag = 'input window, operand 27, single buffered']
    #allocation46 [shape = 's32[1]{0}', space=sflag, size = 0x4, scoped, tag = 'scoped memory for tpu_custom_call.1']
    #allocation47 [shape = 'u8[24576]{0}', space=vmem, size = 0x6000, scoped, tag = 'input window, operand 28, single buffered']
    #allocation48 [shape = 'u8[512]{0}', space=vmem, size = 0x400, scoped, tag = 'input window, operand 29, single buffered']
    #allocation49 [shape = 's32[1]{0}', space=sflag, size = 0x4, scoped, tag = 'scoped memory for tpu_custom_call.1']
    #allocation50 [shape = 'u8[512]{0}', space=vmem, size = 0x400, scoped, tag = 'input window, operand 30, single buffered']
    #allocation51 [shape = 'u8[512]{0}', space=vmem, size = 0x400, scoped, tag = 'input window, operand 31, single buffered']
    #allocation52 [shape = 's32[1]{0}', space=sflag, size = 0x4, scoped, tag = 'scoped memory for tpu_custom_call.1']
    #allocation53 [shape = 'u8[512]{0}', space=vmem, size = 0x400, scoped, tag = 'input window, operand 32, single buffered']
    #allocation54 [shape = 'u8[512]{0}', space=vmem, size = 0x400, scoped, tag = 'input window, operand 34, single buffered']
    #allocation55 [shape = 's32[1]{0}', space=sflag, size = 0x4, scoped, tag = 'scoped memory for tpu_custom_call.1']
    #allocation56 [shape = 'u8[512]{0}', space=vmem, size = 0x400, scoped, tag = 'input window, operand 35, single buffered']
    #allocation57 [shape = 'u8[4096]{0}', space=vmem, size = 0x1000, scoped, tag = 'input window, operand 36, single buffered']
    #allocation58 [shape = 's32[1]{0}', space=sflag, size = 0x4, scoped, tag = 'scoped memory for tpu_custom_call.1']
    #allocation59 [shape = 'u8[4096]{0}', space=vmem, size = 0x1000, scoped, tag = 'input window, operand 37, single buffered']
    #allocation60 [shape = 'u8[32768]{0}', space=vmem, size = 0x8000, scoped, tag = 'output window, operand 0']
    #allocation61 [shape = 'u8[1024]{0}', space=vmem, size = 0x400, scoped, tag = 'output window, operand 1']
    #allocation62 [shape = 's32[2]{0}', space=sflag, size = 0x8, scoped, tag = 'scoped memory for tpu_custom_call.1']
    #allocation63 [shape = 'u8[1024]{0}', space=vmem, size = 0x400, scoped, tag = 'output window, operand 2']
    #allocation64 [shape = 'u8[1024]{0}', space=vmem, size = 0x400, scoped, tag = 'output window, operand 3']
    #allocation65 [shape = 's32[2]{0}', space=sflag, size = 0x8, scoped, tag = 'scoped memory for tpu_custom_call.1']
    %95 = vsyncpa [#allocation7], 0
    %s96 = scalar_lea.sflag [#allocation7], 1
    %97 = vsyncpa %s96, 0
    %98 = vsyncpa [#allocation10], 0
    %s99 = scalar_lea.sflag [#allocation10], 1
    %100 = vsyncpa %s99, 0
    %101 = vsyncpa [#allocation13], 0
    %s102 = scalar_lea.sflag [#allocation13], 1
    %103 = vsyncpa %s102, 0
    %104 = vsyncpa [#allocation16], 0
    %105 = vsyncpa [#allocation19], 0
    %106 = vsyncpa [#allocation22], 0
    %107 = vsyncpa [#allocation25], 0
    %108 = vsyncpa [#allocation28], 0
    %109 = vsyncpa [#allocation31], 0
    %110 = vsyncpa [#allocation34], 0
    %111 = vsyncpa [#allocation37], 0
    %112 = vsyncpa [#allocation40], 0
    %113 = vsyncpa [#allocation43], 0
    %114 = vsyncpa [#allocation46], 0
    %115 = vsyncpa [#allocation49], 0
    %116 = vsyncpa [#allocation52], 0
    %117 = vsyncpa [#allocation55], 0
    %118 = vsyncpa [#allocation58], 0
    %119 = vsyncpa [#allocation8], 0
    %s120 = scalar_lea.sflag [#allocation8], 1
    %121 = vsyncpa %s120, 0
    %122 = vsyncpa [#allocation62], 0
    %s123 = scalar_lea.sflag [#allocation62], 1
    %124 = vsyncpa %s123, 0
    %125 = vsyncpa [#allocation65], 0
    %s126 = scalar_lea.sflag [#allocation65], 1
    %127 = vsyncpa %s126, 0
    loop: start=0, step=1, limit=4
    $region2: #{tpu_custom_call.1} parent=1 // loop_pre_header
      _
    $region3: #{tpu_custom_call.1} parent=1 // loop_header
      %s129 = sphi 0, %s133
      %p130 = scmp.ge.s32.totalorder %s129, 4
      %s139 = sphi 0, %s141
      %s142 = sphi 0, %s139
      %s143 = sphi 0, %s142
      %s159 = sphi 0, %s143
      %s165 = sphi 0, %s167
      %s168 = sphi 0, %s165
      %s169 = sphi 0, %s168
      %s185 = sphi 0, %s169
      %s191 = sphi 0, %s193
      %s194 = sphi 0, %s191
      %s195 = sphi 0, %s194
      %s211 = sphi 0, %s195
      %s217 = sphi 0, %s219
      %s220 = sphi 0, %s217
      %s221 = sphi 0, %s220
      %s237 = sphi 0, %s221
      %s241 = sphi 0, %s241
      %s243 = sphi 0, %s241
      %s244 = sphi 0, %s243
      %s258 = sphi 0, %s244
      %s262 = sphi 0, %s262
      %s264 = sphi 0, %s262
      %s265 = sphi 0, %s264
      %s279 = sphi 0, %s265
      %s283 = sphi 0, %s283
      %s285 = sphi 0, %s283
      %s286 = sphi 0, %s285
      %s300 = sphi 0, %s286
      %s304 = sphi 0, %s304
      %s306 = sphi 0, %s304
      %s307 = sphi 0, %s306
      %s321 = sphi 0, %s307
      %s325 = sphi 0, %s325
      %s327 = sphi 0, %s325
      %s328 = sphi 0, %s327
      %s342 = sphi 0, %s328
      %s346 = sphi 0, %s346
      %s348 = sphi 0, %s346
      %s349 = sphi 0, %s348
      %s363 = sphi 0, %s349
      %s367 = sphi 0, %s367
      %s369 = sphi 0, %s367
      %s370 = sphi 0, %s369
      %s384 = sphi 0, %s370
      %s388 = sphi 0, %s388
      %s390 = sphi 0, %s388
      %s391 = sphi 0, %s390
      %s405 = sphi 0, %s391
      %s409 = sphi 0, %s409
      %s411 = sphi 0, %s409
      %s412 = sphi 0, %s411
      %s426 = sphi 0, %s412
      %s430 = sphi 0, %s430
      %s432 = sphi 0, %s430
      %s433 = sphi 0, %s432
      %s447 = sphi 0, %s433
      %s451 = sphi 0, %s451
      %s453 = sphi 0, %s451
      %s454 = sphi 0, %s453
      %s468 = sphi 0, %s454
      %s472 = sphi 0, %s472
      %s474 = sphi 0, %s472
      %s475 = sphi 0, %s474
      %s489 = sphi 0, %s475
      %s493 = sphi 0, %s493
      %s495 = sphi 0, %s493
      %s496 = sphi 0, %s495
      %s510 = sphi 0, %s496
      %s514 = sphi 0, %s514
      %s516 = sphi 0, %s514
      %s517 = sphi 0, %s516
      %s531 = sphi 0, %s517
      %s535 = sphi 0, %s535
      %s537 = sphi 0, %s535
      %s538 = sphi 0, %s537
      %s552 = sphi 0, %s538
      %s556 = sphi 0, %s556
      %s558 = sphi 0, %s556
      %s559 = sphi 0, %s558
      %s573 = sphi 0, %s559
      %s577 = sphi 0, %s577
      %s579 = sphi 0, %s577
      %s580 = sphi 0, %s579
      %s594 = sphi 0, %s580
      %s598 = sphi 0, %s598
      %s600 = sphi 0, %s598
      %s601 = sphi 0, %s600
      %s615 = sphi 0, %s601
      %s619 = sphi 0, %s619
      %s621 = sphi 0, %s619
      %s622 = sphi 0, %s621
      %s636 = sphi 0, %s622
      %s640 = sphi 0, %s640
      %s642 = sphi 0, %s640
      %s643 = sphi 0, %s642
      %s657 = sphi 0, %s643
      %s661 = sphi 0, %s661
      %s663 = sphi 0, %s661
      %s664 = sphi 0, %s663
      %s678 = sphi 0, %s664
      %s682 = sphi 0, %s682
      %s684 = sphi 0, %s682
      %s685 = sphi 0, %s684
      %s699 = sphi 0, %s685
      %s703 = sphi 0, %s703
      %s705 = sphi 0, %s703
      %s706 = sphi 0, %s705
      %s720 = sphi 0, %s706
      %s724 = sphi 0, %s724
      %s726 = sphi 0, %s724
      %s727 = sphi 0, %s726
      %s741 = sphi 0, %s727
      %s745 = sphi 0, %s745
      %s747 = sphi 0, %s745
      %s748 = sphi 0, %s747
      %s762 = sphi 0, %s748
      %s766 = sphi 0, %s766
      %s768 = sphi 0, %s766
      %s769 = sphi 0, %s768
      %s783 = sphi 0, %s769
      %s787 = sphi 0, %s787
      %s789 = sphi 0, %s787
      %s790 = sphi 0, %s789
      %s804 = sphi 0, %s790
      %s808 = sphi 0, %s808
      %s810 = sphi 0, %s808
      %s811 = sphi 0, %s810
      %s825 = sphi 0, %s811
      %s829 = sphi 0, %s829
      %s831 = sphi 0, %s829
      %s832 = sphi 0, %s831
      %s846 = sphi 0, %s832
      %s850 = sphi 0, %s850
      %s852 = sphi 0, %s850
      %s853 = sphi 0, %s852
      %s867 = sphi 0, %s853
      %s871 = sphi 0, %s871
      %s873 = sphi 0, %s871
      %s874 = sphi 0, %s873
      %s888 = sphi 0, %s874
      %s892 = sphi 0, %s892
      %s894 = sphi 0, %s892
      %s895 = sphi 0, %s894
      %s909 = sphi 0, %s895
      %s913 = sphi 0, %s913
      %s915 = sphi 0, %s913
      %s916 = sphi 0, %s915
      %s930 = sphi 0, %s916
      %s934 = sphi 0, %s934
      %s936 = sphi 0, %s934
      %s937 = sphi 0, %s936
      %s951 = sphi 0, %s937
      %s957 = sphi 0, %s959
      %s960 = sphi 0, %s957
      %s961 = sphi 0, %s960
      %s977 = sphi 0, %s961
      %s983 = sphi 0, %s985
      %s986 = sphi 0, %s983
      %s987 = sphi 0, %s986
      %s1003 = sphi 0, %s987
      %s1009 = sphi 0, %s1011
      %s1012 = sphi 0, %s1009
      %s1013 = sphi 0, %s1012
      %s1029 = sphi 0, %s1013
      %s1035 = sphi 0, %s1037
      %s1038 = sphi 0, %s1035
      %s1039 = sphi 0, %s1038
      %s1055 = sphi 0, %s1039
    $region4: #{tpu_custom_call.1} parent=1 // loop_header_branch
      %132 = sbr.rel (%p130) target = $region8
    $region5: #{tpu_custom_call.1} parent=1 // loop_body
      %s134 = ssub.s32 %s129, 1
      %s135 = ssub.s32 %s129, 2
      %s136 = sadd.s32 %s129, 1
      %s137 = ssub.s32 %s129, %s136
      %p138 = scmp.eq.s32.totalorder %s137, 0
      %s140 = sadd.s32 %s139, 1
      %s141 = scalar_select %p138, %s139, %s140
      %p144 = pneg %p138
      %p145 = scmp.eq.s32.totalorder %s129, 1
      %p146 = por %p144, %p145
      %p147 = scmp.ne.s32.totalorder %s139, %s142
      %p148 = scmp.eq.s32.totalorder %s129, 0
      %p149 = por %p147, %p148
      %p150 = scmp.ne.s32.totalorder %s139, %s142
      %p151 = scmp.eq.s32.totalorder %s134, 1
      %p152 = por %p150, %p151
      %p153 = scmp.ne.s32.totalorder %s142, %s143
      %p154 = scmp.eq.s32.totalorder %s134, 0
      %p155 = por %p153, %p154
      %p156 = scmp.ne.s32.totalorder %s142, %s143
      %p157 = scmp.eq.s32.totalorder %s135, 1
      %p158 = por %p156, %p157
      %p160 = scmp.ne.s32.totalorder %s143, %s159
      %p161 = scmp.eq.s32.totalorder %s135, 0
      %p162 = por %p160, %p161
      %s163 = ssub.s32 %s129, %s136
      %p164 = scmp.eq.s32.totalorder %s163, 0
      %s166 = sadd.s32 %s165, 1
      %s167 = scalar_select %p164, %s165, %s166
      %p170 = pneg %p164
      %p171 = scmp.eq.s32.totalorder %s129, 1
      %p172 = por %p170, %p171
      %p173 = scmp.ne.s32.totalorder %s165, %s168
      %p174 = scmp.eq.s32.totalorder %s129, 0
      %p175 = por %p173, %p174
      %p176 = scmp.ne.s32.totalorder %s165, %s168
      %p177 = scmp.eq.s32.totalorder %s134, 1
      %p178 = por %p176, %p177
      %p179 = scmp.ne.s32.totalorder %s168, %s169
      %p180 = scmp.eq.s32.totalorder %s134, 0
      %p181 = por %p179, %p180
      %p182 = scmp.ne.s32.totalorder %s168, %s169
      %p183 = scmp.eq.s32.totalorder %s135, 1
      %p184 = por %p182, %p183
      %p186 = scmp.ne.s32.totalorder %s169, %s185
      %p187 = scmp.eq.s32.totalorder %s135, 0
      %p188 = por %p186, %p187
      %s189 = ssub.s32 %s129, %s136
      %p190 = scmp.eq.s32.totalorder %s189, 0
      %s192 = sadd.s32 %s191, 1
      %s193 = scalar_select %p190, %s191, %s192
      %p196 = pneg %p190
      %p197 = scmp.eq.s32.totalorder %s129, 1
      %p198 = por %p196, %p197
      %p199 = scmp.ne.s32.totalorder %s191, %s194
      %p200 = scmp.eq.s32.totalorder %s129, 0
      %p201 = por %p199, %p200
      %p202 = scmp.ne.s32.totalorder %s191, %s194
      %p203 = scmp.eq.s32.totalorder %s134, 1
      %p204 = por %p202, %p203
      %p205 = scmp.ne.s32.totalorder %s194, %s195
      %p206 = scmp.eq.s32.totalorder %s134, 0
      %p207 = por %p205, %p206
      %p208 = scmp.ne.s32.totalorder %s194, %s195
      %p209 = scmp.eq.s32.totalorder %s135, 1
      %p210 = por %p208, %p209
      %p212 = scmp.ne.s32.totalorder %s195, %s211
      %p213 = scmp.eq.s32.totalorder %s135, 0
      %p214 = por %p212, %p213
      %s215 = ssub.s32 %s129, %s136
      %p216 = scmp.eq.s32.totalorder %s215, 0
      %s218 = sadd.s32 %s217, 1
      %s219 = scalar_select %p216, %s217, %s218
      %p222 = pneg %p216
      %p223 = scmp.eq.s32.totalorder %s129, 1
      %p224 = por %p222, %p223
      %p225 = scmp.ne.s32.totalorder %s217, %s220
      %p226 = scmp.eq.s32.totalorder %s129, 0
      %p227 = por %p225, %p226
      %p228 = scmp.ne.s32.totalorder %s217, %s220
      %p229 = scmp.eq.s32.totalorder %s134, 1
      %p230 = por %p228, %p229
      %p231 = scmp.ne.s32.totalorder %s220, %s221
      %p232 = scmp.eq.s32.totalorder %s134, 0
      %p233 = por %p231, %p232
      %p234 = scmp.ne.s32.totalorder %s220, %s221
      %p235 = scmp.eq.s32.totalorder %s135, 1
      %p236 = por %p234, %p235
      %p238 = scmp.ne.s32.totalorder %s221, %s237
      %p239 = scmp.eq.s32.totalorder %s135, 0
      %p240 = por %p238, %p239
      %s242 = sadd.s32 %s241, 1
      %p245 = scmp.eq.s32.totalorder %s129, 1
      %p246 = scmp.ne.s32.totalorder %s241, %s243
      %p247 = scmp.eq.s32.totalorder %s129, 0
      %p248 = por %p246, %p247
      %p249 = scmp.ne.s32.totalorder %s241, %s243
      %p250 = scmp.eq.s32.totalorder %s134, 1
      %p251 = por %p249, %p250
      %p252 = scmp.ne.s32.totalorder %s243, %s244
      %p253 = scmp.eq.s32.totalorder %s134, 0
      %p254 = por %p252, %p253
      %p255 = scmp.ne.s32.totalorder %s243, %s244
      %p256 = scmp.eq.s32.totalorder %s135, 1
      %p257 = por %p255, %p256
      %p259 = scmp.ne.s32.totalorder %s244, %s258
      %p260 = scmp.eq.s32.totalorder %s135, 0
      %p261 = por %p259, %p260
      %s263 = sadd.s32 %s262, 1
      %p266 = scmp.eq.s32.totalorder %s129, 1
      %p267 = scmp.ne.s32.totalorder %s262, %s264
      %p268 = scmp.eq.s32.totalorder %s129, 0
      %p269 = por %p267, %p268
      %p270 = scmp.ne.s32.totalorder %s262, %s264
      %p271 = scmp.eq.s32.totalorder %s134, 1
      %p272 = por %p270, %p271
      %p273 = scmp.ne.s32.totalorder %s264, %s265
      %p274 = scmp.eq.s32.totalorder %s134, 0
      %p275 = por %p273, %p274
      %p276 = scmp.ne.s32.totalorder %s264, %s265
      %p277 = scmp.eq.s32.totalorder %s135, 1
      %p278 = por %p276, %p277
      %p280 = scmp.ne.s32.totalorder %s265, %s279
      %p281 = scmp.eq.s32.totalorder %s135, 0
      %p282 = por %p280, %p281
      %s284 = sadd.s32 %s283, 1
      %p287 = scmp.eq.s32.totalorder %s129, 1
      %p288 = scmp.ne.s32.totalorder %s283, %s285
      %p289 = scmp.eq.s32.totalorder %s129, 0
      %p290 = por %p288, %p289
      %p291 = scmp.ne.s32.totalorder %s283, %s285
      %p292 = scmp.eq.s32.totalorder %s134, 1
      %p293 = por %p291, %p292
      %p294 = scmp.ne.s32.totalorder %s285, %s286
      %p295 = scmp.eq.s32.totalorder %s134, 0
      %p296 = por %p294, %p295
      %p297 = scmp.ne.s32.totalorder %s285, %s286
      %p298 = scmp.eq.s32.totalorder %s135, 1
      %p299 = por %p297, %p298
      %p301 = scmp.ne.s32.totalorder %s286, %s300
      %p302 = scmp.eq.s32.totalorder %s135, 0
      %p303 = por %p301, %p302
      %s305 = sadd.s32 %s304, 1
      %p308 = scmp.eq.s32.totalorder %s129, 1
      %p309 = scmp.ne.s32.totalorder %s304, %s306
      %p310 = scmp.eq.s32.totalorder %s129, 0
      %p311 = por %p309, %p310
      %p312 = scmp.ne.s32.totalorder %s304, %s306
      %p313 = scmp.eq.s32.totalorder %s134, 1
      %p314 = por %p312, %p313
      %p315 = scmp.ne.s32.totalorder %s306, %s307
      %p316 = scmp.eq.s32.totalorder %s134, 0
      %p317 = por %p315, %p316
      %p318 = scmp.ne.s32.totalorder %s306, %s307
      %p319 = scmp.eq.s32.totalorder %s135, 1
      %p320 = por %p318, %p319
      %p322 = scmp.ne.s32.totalorder %s307, %s321
      %p323 = scmp.eq.s32.totalorder %s135, 0
      %p324 = por %p322, %p323
      %s326 = sadd.s32 %s325, 1
      %p329 = scmp.eq.s32.totalorder %s129, 1
      %p330 = scmp.ne.s32.totalorder %s325, %s327
      %p331 = scmp.eq.s32.totalorder %s129, 0
      %p332 = por %p330, %p331
      %p333 = scmp.ne.s32.totalorder %s325, %s327
      %p334 = scmp.eq.s32.totalorder %s134, 1
      %p335 = por %p333, %p334
      %p336 = scmp.ne.s32.totalorder %s327, %s328
      %p337 = scmp.eq.s32.totalorder %s134, 0
      %p338 = por %p336, %p337
      %p339 = scmp.ne.s32.totalorder %s327, %s328
      %p340 = scmp.eq.s32.totalorder %s135, 1
      %p341 = por %p339, %p340
      %p343 = scmp.ne.s32.totalorder %s328, %s342
      %p344 = scmp.eq.s32.totalorder %s135, 0
      %p345 = por %p343, %p344
      %s347 = sadd.s32 %s346, 1
      %p350 = scmp.eq.s32.totalorder %s129, 1
      %p351 = scmp.ne.s32.totalorder %s346, %s348
      %p352 = scmp.eq.s32.totalorder %s129, 0
      %p353 = por %p351, %p352
      %p354 = scmp.ne.s32.totalorder %s346, %s348
      %p355 = scmp.eq.s32.totalorder %s134, 1
      %p356 = por %p354, %p355
      %p357 = scmp.ne.s32.totalorder %s348, %s349
      %p358 = scmp.eq.s32.totalorder %s134, 0
      %p359 = por %p357, %p358
      %p360 = scmp.ne.s32.totalorder %s348, %s349
      %p361 = scmp.eq.s32.totalorder %s135, 1
      %p362 = por %p360, %p361
      %p364 = scmp.ne.s32.totalorder %s349, %s363
      %p365 = scmp.eq.s32.totalorder %s135, 0
      %p366 = por %p364, %p365
      %s368 = sadd.s32 %s367, 1
      %p371 = scmp.eq.s32.totalorder %s129, 1
      %p372 = scmp.ne.s32.totalorder %s367, %s369
      %p373 = scmp.eq.s32.totalorder %s129, 0
      %p374 = por %p372, %p373
      %p375 = scmp.ne.s32.totalorder %s367, %s369
      %p376 = scmp.eq.s32.totalorder %s134, 1
      %p377 = por %p375, %p376
      %p378 = scmp.ne.s32.totalorder %s369, %s370
      %p379 = scmp.eq.s32.totalorder %s134, 0
      %p380 = por %p378, %p379
      %p381 = scmp.ne.s32.totalorder %s369, %s370
      %p382 = scmp.eq.s32.totalorder %s135, 1
      %p383 = por %p381, %p382
      %p385 = scmp.ne.s32.totalorder %s370, %s384
      %p386 = scmp.eq.s32.totalorder %s135, 0
      %p387 = por %p385, %p386
      %s389 = sadd.s32 %s388, 1
      %p392 = scmp.eq.s32.totalorder %s129, 1
      %p393 = scmp.ne.s32.totalorder %s388, %s390
      %p394 = scmp.eq.s32.totalorder %s129, 0
      %p395 = por %p393, %p394
      %p396 = scmp.ne.s32.totalorder %s388, %s390
      %p397 = scmp.eq.s32.totalorder %s134, 1
      %p398 = por %p396, %p397
      %p399 = scmp.ne.s32.totalorder %s390, %s391
      %p400 = scmp.eq.s32.totalorder %s134, 0
      %p401 = por %p399, %p400
      %p402 = scmp.ne.s32.totalorder %s390, %s391
      %p403 = scmp.eq.s32.totalorder %s135, 1
      %p404 = por %p402, %p403
      %p406 = scmp.ne.s32.totalorder %s391, %s405
      %p407 = scmp.eq.s32.totalorder %s135, 0
      %p408 = por %p406, %p407
      %s410 = sadd.s32 %s409, 1
      %p413 = scmp.eq.s32.totalorder %s129, 1
      %p414 = scmp.ne.s32.totalorder %s409, %s411
      %p415 = scmp.eq.s32.totalorder %s129, 0
      %p416 = por %p414, %p415
      %p417 = scmp.ne.s32.totalorder %s409, %s411
      %p418 = scmp.eq.s32.totalorder %s134, 1
      %p419 = por %p417, %p418
      %p420 = scmp.ne.s32.totalorder %s411, %s412
      %p421 = scmp.eq.s32.totalorder %s134, 0
      %p422 = por %p420, %p421
      %p423 = scmp.ne.s32.totalorder %s411, %s412
      %p424 = scmp.eq.s32.totalorder %s135, 1
      %p425 = por %p423, %p424
      %p427 = scmp.ne.s32.totalorder %s412, %s426
      %p428 = scmp.eq.s32.totalorder %s135, 0
      %p429 = por %p427, %p428
      %s431 = sadd.s32 %s430, 1
      %p434 = scmp.eq.s32.totalorder %s129, 1
      %p435 = scmp.ne.s32.totalorder %s430, %s432
      %p436 = scmp.eq.s32.totalorder %s129, 0
      %p437 = por %p435, %p436
      %p438 = scmp.ne.s32.totalorder %s430, %s432
      %p439 = scmp.eq.s32.totalorder %s134, 1
      %p440 = por %p438, %p439
      %p441 = scmp.ne.s32.totalorder %s432, %s433
      %p442 = scmp.eq.s32.totalorder %s134, 0
      %p443 = por %p441, %p442
      %p444 = scmp.ne.s32.totalorder %s432, %s433
      %p445 = scmp.eq.s32.totalorder %s135, 1
      %p446 = por %p444, %p445
      %p448 = scmp.ne.s32.totalorder %s433, %s447
      %p449 = scmp.eq.s32.totalorder %s135, 0
      %p450 = por %p448, %p449
      %s452 = sadd.s32 %s451, 1
      %p455 = scmp.eq.s32.totalorder %s129, 1
      %p456 = scmp.ne.s32.totalorder %s451, %s453
      %p457 = scmp.eq.s32.totalorder %s129, 0
      %p458 = por %p456, %p457
      %p459 = scmp.ne.s32.totalorder %s451, %s453
      %p460 = scmp.eq.s32.totalorder %s134, 1
      %p461 = por %p459, %p460
      %p462 = scmp.ne.s32.totalorder %s453, %s454
      %p463 = scmp.eq.s32.totalorder %s134, 0
      %p464 = por %p462, %p463
      %p465 = scmp.ne.s32.totalorder %s453, %s454
      %p466 = scmp.eq.s32.totalorder %s135, 1
      %p467 = por %p465, %p466
      %p469 = scmp.ne.s32.totalorder %s454, %s468
      %p470 = scmp.eq.s32.totalorder %s135, 0
      %p471 = por %p469, %p470
      %s473 = sadd.s32 %s472, 1
      %p476 = scmp.eq.s32.totalorder %s129, 1
      %p477 = scmp.ne.s32.totalorder %s472, %s474
      %p478 = scmp.eq.s32.totalorder %s129, 0
      %p479 = por %p477, %p478
      %p480 = scmp.ne.s32.totalorder %s472, %s474
      %p481 = scmp.eq.s32.totalorder %s134, 1
      %p482 = por %p480, %p481
      %p483 = scmp.ne.s32.totalorder %s474, %s475
      %p484 = scmp.eq.s32.totalorder %s134, 0
      %p485 = por %p483, %p484
      %p486 = scmp.ne.s32.totalorder %s474, %s475
      %p487 = scmp.eq.s32.totalorder %s135, 1
      %p488 = por %p486, %p487
      %p490 = scmp.ne.s32.totalorder %s475, %s489
      %p491 = scmp.eq.s32.totalorder %s135, 0
      %p492 = por %p490, %p491
      %s494 = sadd.s32 %s493, 1
      %p497 = scmp.eq.s32.totalorder %s129, 1
      %p498 = scmp.ne.s32.totalorder %s493, %s495
      %p499 = scmp.eq.s32.totalorder %s129, 0
      %p500 = por %p498, %p499
      %p501 = scmp.ne.s32.totalorder %s493, %s495
      %p502 = scmp.eq.s32.totalorder %s134, 1
      %p503 = por %p501, %p502
      %p504 = scmp.ne.s32.totalorder %s495, %s496
      %p505 = scmp.eq.s32.totalorder %s134, 0
      %p506 = por %p504, %p505
      %p507 = scmp.ne.s32.totalorder %s495, %s496
      %p508 = scmp.eq.s32.totalorder %s135, 1
      %p509 = por %p507, %p508
      %p511 = scmp.ne.s32.totalorder %s496, %s510
      %p512 = scmp.eq.s32.totalorder %s135, 0
      %p513 = por %p511, %p512
      %s515 = sadd.s32 %s514, 1
      %p518 = scmp.eq.s32.totalorder %s129, 1
      %p519 = scmp.ne.s32.totalorder %s514, %s516
      %p520 = scmp.eq.s32.totalorder %s129, 0
      %p521 = por %p519, %p520
      %p522 = scmp.ne.s32.totalorder %s514, %s516
      %p523 = scmp.eq.s32.totalorder %s134, 1
      %p524 = por %p522, %p523
      %p525 = scmp.ne.s32.totalorder %s516, %s517
      %p526 = scmp.eq.s32.totalorder %s134, 0
      %p527 = por %p525, %p526
      %p528 = scmp.ne.s32.totalorder %s516, %s517
      %p529 = scmp.eq.s32.totalorder %s135, 1
      %p530 = por %p528, %p529
      %p532 = scmp.ne.s32.totalorder %s517, %s531
      %p533 = scmp.eq.s32.totalorder %s135, 0
      %p534 = por %p532, %p533
      %s536 = sadd.s32 %s535, 1
      %p539 = scmp.eq.s32.totalorder %s129, 1
      %p540 = scmp.ne.s32.totalorder %s535, %s537
      %p541 = scmp.eq.s32.totalorder %s129, 0
      %p542 = por %p540, %p541
      %p543 = scmp.ne.s32.totalorder %s535, %s537
      %p544 = scmp.eq.s32.totalorder %s134, 1
      %p545 = por %p543, %p544
      %p546 = scmp.ne.s32.totalorder %s537, %s538
      %p547 = scmp.eq.s32.totalorder %s134, 0
      %p548 = por %p546, %p547
      %p549 = scmp.ne.s32.totalorder %s537, %s538
      %p550 = scmp.eq.s32.totalorder %s135, 1
      %p551 = por %p549, %p550
      %p553 = scmp.ne.s32.totalorder %s538, %s552
      %p554 = scmp.eq.s32.totalorder %s135, 0
      %p555 = por %p553, %p554
      %s557 = sadd.s32 %s556, 1
      %p560 = scmp.eq.s32.totalorder %s129, 1
      %p561 = scmp.ne.s32.totalorder %s556, %s558
      %p562 = scmp.eq.s32.totalorder %s129, 0
      %p563 = por %p561, %p562
      %p564 = scmp.ne.s32.totalorder %s556, %s558
      %p565 = scmp.eq.s32.totalorder %s134, 1
      %p566 = por %p564, %p565
      %p567 = scmp.ne.s32.totalorder %s558, %s559
      %p568 = scmp.eq.s32.totalorder %s134, 0
      %p569 = por %p567, %p568
      %p570 = scmp.ne.s32.totalorder %s558, %s559
      %p571 = scmp.eq.s32.totalorder %s135, 1
      %p572 = por %p570, %p571
      %p574 = scmp.ne.s32.totalorder %s559, %s573
      %p575 = scmp.eq.s32.totalorder %s135, 0
      %p576 = por %p574, %p575
      %s578 = sadd.s32 %s577, 1
      %p581 = scmp.eq.s32.totalorder %s129, 1
      %p582 = scmp.ne.s32.totalorder %s577, %s579
      %p583 = scmp.eq.s32.totalorder %s129, 0
      %p584 = por %p582, %p583
      %p585 = scmp.ne.s32.totalorder %s577, %s579
      %p586 = scmp.eq.s32.totalorder %s134, 1
      %p587 = por %p585, %p586
      %p588 = scmp.ne.s32.totalorder %s579, %s580
      %p589 = scmp.eq.s32.totalorder %s134, 0
      %p590 = por %p588, %p589
      %p591 = scmp.ne.s32.totalorder %s579, %s580
      %p592 = scmp.eq.s32.totalorder %s135, 1
      %p593 = por %p591, %p592
      %p595 = scmp.ne.s32.totalorder %s580, %s594
      %p596 = scmp.eq.s32.totalorder %s135, 0
      %p597 = por %p595, %p596
      %s599 = sadd.s32 %s598, 1
      %p602 = scmp.eq.s32.totalorder %s129, 1
      %p603 = scmp.ne.s32.totalorder %s598, %s600
      %p604 = scmp.eq.s32.totalorder %s129, 0
      %p605 = por %p603, %p604
      %p606 = scmp.ne.s32.totalorder %s598, %s600
      %p607 = scmp.eq.s32.totalorder %s134, 1
      %p608 = por %p606, %p607
      %p609 = scmp.ne.s32.totalorder %s600, %s601
      %p610 = scmp.eq.s32.totalorder %s134, 0
      %p611 = por %p609, %p610
      %p612 = scmp.ne.s32.totalorder %s600, %s601
      %p613 = scmp.eq.s32.totalorder %s135, 1
      %p614 = por %p612, %p613
      %p616 = scmp.ne.s32.totalorder %s601, %s615
      %p617 = scmp.eq.s32.totalorder %s135, 0
      %p618 = por %p616, %p617
      %s620 = sadd.s32 %s619, 1
      %p623 = scmp.eq.s32.totalorder %s129, 1
      %p624 = scmp.ne.s32.totalorder %s619, %s621
      %p625 = scmp.eq.s32.totalorder %s129, 0
      %p626 = por %p624, %p625
      %p627 = scmp.ne.s32.totalorder %s619, %s621
      %p628 = scmp.eq.s32.totalorder %s134, 1
      %p629 = por %p627, %p628
      %p630 = scmp.ne.s32.totalorder %s621, %s622
      %p631 = scmp.eq.s32.totalorder %s134, 0
      %p632 = por %p630, %p631
      %p633 = scmp.ne.s32.totalorder %s621, %s622
      %p634 = scmp.eq.s32.totalorder %s135, 1
      %p635 = por %p633, %p634
      %p637 = scmp.ne.s32.totalorder %s622, %s636
      %p638 = scmp.eq.s32.totalorder %s135, 0
      %p639 = por %p637, %p638
      %s641 = sadd.s32 %s640, 1
      %p644 = scmp.eq.s32.totalorder %s129, 1
      %p645 = scmp.ne.s32.totalorder %s640, %s642
      %p646 = scmp.eq.s32.totalorder %s129, 0
      %p647 = por %p645, %p646
      %p648 = scmp.ne.s32.totalorder %s640, %s642
      %p649 = scmp.eq.s32.totalorder %s134, 1
      %p650 = por %p648, %p649
      %p651 = scmp.ne.s32.totalorder %s642, %s643
      %p652 = scmp.eq.s32.totalorder %s134, 0
      %p653 = por %p651, %p652
      %p654 = scmp.ne.s32.totalorder %s642, %s643
      %p655 = scmp.eq.s32.totalorder %s135, 1
      %p656 = por %p654, %p655
      %p658 = scmp.ne.s32.totalorder %s643, %s657
      %p659 = scmp.eq.s32.totalorder %s135, 0
      %p660 = por %p658, %p659
      %s662 = sadd.s32 %s661, 1
      %p665 = scmp.eq.s32.totalorder %s129, 1
      %p666 = scmp.ne.s32.totalorder %s661, %s663
      %p667 = scmp.eq.s32.totalorder %s129, 0
      %p668 = por %p666, %p667
      %p669 = scmp.ne.s32.totalorder %s661, %s663
      %p670 = scmp.eq.s32.totalorder %s134, 1
      %p671 = por %p669, %p670
      %p672 = scmp.ne.s32.totalorder %s663, %s664
      %p673 = scmp.eq.s32.totalorder %s134, 0
      %p674 = por %p672, %p673
      %p675 = scmp.ne.s32.totalorder %s663, %s664
      %p676 = scmp.eq.s32.totalorder %s135, 1
      %p677 = por %p675, %p676
      %p679 = scmp.ne.s32.totalorder %s664, %s678
      %p680 = scmp.eq.s32.totalorder %s135, 0
      %p681 = por %p679, %p680
      %s683 = sadd.s32 %s682, 1
      %p686 = scmp.eq.s32.totalorder %s129, 1
      %p687 = scmp.ne.s32.totalorder %s682, %s684
      %p688 = scmp.eq.s32.totalorder %s129, 0
      %p689 = por %p687, %p688
      %p690 = scmp.ne.s32.totalorder %s682, %s684
      %p691 = scmp.eq.s32.totalorder %s134, 1
      %p692 = por %p690, %p691
      %p693 = scmp.ne.s32.totalorder %s684, %s685
      %p694 = scmp.eq.s32.totalorder %s134, 0
      %p695 = por %p693, %p694
      %p696 = scmp.ne.s32.totalorder %s684, %s685
      %p697 = scmp.eq.s32.totalorder %s135, 1
      %p698 = por %p696, %p697
      %p700 = scmp.ne.s32.totalorder %s685, %s699
      %p701 = scmp.eq.s32.totalorder %s135, 0
      %p702 = por %p700, %p701
      %s704 = sadd.s32 %s703, 1
      %p707 = scmp.eq.s32.totalorder %s129, 1
      %p708 = scmp.ne.s32.totalorder %s703, %s705
      %p709 = scmp.eq.s32.totalorder %s129, 0
      %p710 = por %p708, %p709
      %p711 = scmp.ne.s32.totalorder %s703, %s705
      %p712 = scmp.eq.s32.totalorder %s134, 1
      %p713 = por %p711, %p712
      %p714 = scmp.ne.s32.totalorder %s705, %s706
      %p715 = scmp.eq.s32.totalorder %s134, 0
      %p716 = por %p714, %p715
      %p717 = scmp.ne.s32.totalorder %s705, %s706
      %p718 = scmp.eq.s32.totalorder %s135, 1
      %p719 = por %p717, %p718
      %p721 = scmp.ne.s32.totalorder %s706, %s720
      %p722 = scmp.eq.s32.totalorder %s135, 0
      %p723 = por %p721, %p722
      %s725 = sadd.s32 %s724, 1
      %p728 = scmp.eq.s32.totalorder %s129, 1
      %p729 = scmp.ne.s32.totalorder %s724, %s726
      %p730 = scmp.eq.s32.totalorder %s129, 0
      %p731 = por %p729, %p730
      %p732 = scmp.ne.s32.totalorder %s724, %s726
      %p733 = scmp.eq.s32.totalorder %s134, 1
      %p734 = por %p732, %p733
      %p735 = scmp.ne.s32.totalorder %s726, %s727
      %p736 = scmp.eq.s32.totalorder %s134, 0
      %p737 = por %p735, %p736
      %p738 = scmp.ne.s32.totalorder %s726, %s727
      %p739 = scmp.eq.s32.totalorder %s135, 1
      %p740 = por %p738, %p739
      %p742 = scmp.ne.s32.totalorder %s727, %s741
      %p743 = scmp.eq.s32.totalorder %s135, 0
      %p744 = por %p742, %p743
      %s746 = sadd.s32 %s745, 1
      %p749 = scmp.eq.s32.totalorder %s129, 1
      %p750 = scmp.ne.s32.totalorder %s745, %s747
      %p751 = scmp.eq.s32.totalorder %s129, 0
      %p752 = por %p750, %p751
      %p753 = scmp.ne.s32.totalorder %s745, %s747
      %p754 = scmp.eq.s32.totalorder %s134, 1
      %p755 = por %p753, %p754
      %p756 = scmp.ne.s32.totalorder %s747, %s748
      %p757 = scmp.eq.s32.totalorder %s134, 0
      %p758 = por %p756, %p757
      %p759 = scmp.ne.s32.totalorder %s747, %s748
      %p760 = scmp.eq.s32.totalorder %s135, 1
      %p761 = por %p759, %p760
      %p763 = scmp.ne.s32.totalorder %s748, %s762
      %p764 = scmp.eq.s32.totalorder %s135, 0
      %p765 = por %p763, %p764
      %s767 = sadd.s32 %s766, 1
      %p770 = scmp.eq.s32.totalorder %s129, 1
      %p771 = scmp.ne.s32.totalorder %s766, %s768
      %p772 = scmp.eq.s32.totalorder %s129, 0
      %p773 = por %p771, %p772
      %p774 = scmp.ne.s32.totalorder %s766, %s768
      %p775 = scmp.eq.s32.totalorder %s134, 1
      %p776 = por %p774, %p775
      %p777 = scmp.ne.s32.totalorder %s768, %s769
      %p778 = scmp.eq.s32.totalorder %s134, 0
      %p779 = por %p777, %p778
      %p780 = scmp.ne.s32.totalorder %s768, %s769
      %p781 = scmp.eq.s32.totalorder %s135, 1
      %p782 = por %p780, %p781
      %p784 = scmp.ne.s32.totalorder %s769, %s783
      %p785 = scmp.eq.s32.totalorder %s135, 0
      %p786 = por %p784, %p785
      %s788 = sadd.s32 %s787, 1
      %p791 = scmp.eq.s32.totalorder %s129, 1
      %p792 = scmp.ne.s32.totalorder %s787, %s789
      %p793 = scmp.eq.s32.totalorder %s129, 0
      %p794 = por %p792, %p793
      %p795 = scmp.ne.s32.totalorder %s787, %s789
      %p796 = scmp.eq.s32.totalorder %s134, 1
      %p797 = por %p795, %p796
      %p798 = scmp.ne.s32.totalorder %s789, %s790
      %p799 = scmp.eq.s32.totalorder %s134, 0
      %p800 = por %p798, %p799
      %p801 = scmp.ne.s32.totalorder %s789, %s790
      %p802 = scmp.eq.s32.totalorder %s135, 1
      %p803 = por %p801, %p802
      %p805 = scmp.ne.s32.totalorder %s790, %s804
      %p806 = scmp.eq.s32.totalorder %s135, 0
      %p807 = por %p805, %p806
      %s809 = sadd.s32 %s808, 1
      %p812 = scmp.eq.s32.totalorder %s129, 1
      %p813 = scmp.ne.s32.totalorder %s808, %s810
      %p814 = scmp.eq.s32.totalorder %s129, 0
      %p815 = por %p813, %p814
      %p816 = scmp.ne.s32.totalorder %s808, %s810
      %p817 = scmp.eq.s32.totalorder %s134, 1
      %p818 = por %p816, %p817
      %p819 = scmp.ne.s32.totalorder %s810, %s811
      %p820 = scmp.eq.s32.totalorder %s134, 0
      %p821 = por %p819, %p820
      %p822 = scmp.ne.s32.totalorder %s810, %s811
      %p823 = scmp.eq.s32.totalorder %s135, 1
      %p824 = por %p822, %p823
      %p826 = scmp.ne.s32.totalorder %s811, %s825
      %p827 = scmp.eq.s32.totalorder %s135, 0
      %p828 = por %p826, %p827
      %s830 = sadd.s32 %s829, 1
      %p833 = scmp.eq.s32.totalorder %s129, 1
      %p834 = scmp.ne.s32.totalorder %s829, %s831
      %p835 = scmp.eq.s32.totalorder %s129, 0
      %p836 = por %p834, %p835
      %p837 = scmp.ne.s32.totalorder %s829, %s831
      %p838 = scmp.eq.s32.totalorder %s134, 1
      %p839 = por %p837, %p838
      %p840 = scmp.ne.s32.totalorder %s831, %s832
      %p841 = scmp.eq.s32.totalorder %s134, 0
      %p842 = por %p840, %p841
      %p843 = scmp.ne.s32.totalorder %s831, %s832
      %p844 = scmp.eq.s32.totalorder %s135, 1
      %p845 = por %p843, %p844
      %p847 = scmp.ne.s32.totalorder %s832, %s846
      %p848 = scmp.eq.s32.totalorder %s135, 0
      %p849 = por %p847, %p848
      %s851 = sadd.s32 %s850, 1
      %p854 = scmp.eq.s32.totalorder %s129, 1
      %p855 = scmp.ne.s32.totalorder %s850, %s852
      %p856 = scmp.eq.s32.totalorder %s129, 0
      %p857 = por %p855, %p856
      %p858 = scmp.ne.s32.totalorder %s850, %s852
      %p859 = scmp.eq.s32.totalorder %s134, 1
      %p860 = por %p858, %p859
      %p861 = scmp.ne.s32.totalorder %s852, %s853
      %p862 = scmp.eq.s32.totalorder %s134, 0
      %p863 = por %p861, %p862
      %p864 = scmp.ne.s32.totalorder %s852, %s853
      %p865 = scmp.eq.s32.totalorder %s135, 1
      %p866 = por %p864, %p865
      %p868 = scmp.ne.s32.totalorder %s853, %s867
      %p869 = scmp.eq.s32.totalorder %s135, 0
      %p870 = por %p868, %p869
      %s872 = sadd.s32 %s871, 1
      %p875 = scmp.eq.s32.totalorder %s129, 1
      %p876 = scmp.ne.s32.totalorder %s871, %s873
      %p877 = scmp.eq.s32.totalorder %s129, 0
      %p878 = por %p876, %p877
      %p879 = scmp.ne.s32.totalorder %s871, %s873
      %p880 = scmp.eq.s32.totalorder %s134, 1
      %p881 = por %p879, %p880
      %p882 = scmp.ne.s32.totalorder %s873, %s874
      %p883 = scmp.eq.s32.totalorder %s134, 0
      %p884 = por %p882, %p883
      %p885 = scmp.ne.s32.totalorder %s873, %s874
      %p886 = scmp.eq.s32.totalorder %s135, 1
      %p887 = por %p885, %p886
      %p889 = scmp.ne.s32.totalorder %s874, %s888
      %p890 = scmp.eq.s32.totalorder %s135, 0
      %p891 = por %p889, %p890
      %s893 = sadd.s32 %s892, 1
      %p896 = scmp.eq.s32.totalorder %s129, 1
      %p897 = scmp.ne.s32.totalorder %s892, %s894
      %p898 = scmp.eq.s32.totalorder %s129, 0
      %p899 = por %p897, %p898
      %p900 = scmp.ne.s32.totalorder %s892, %s894
      %p901 = scmp.eq.s32.totalorder %s134, 1
      %p902 = por %p900, %p901
      %p903 = scmp.ne.s32.totalorder %s894, %s895
      %p904 = scmp.eq.s32.totalorder %s134, 0
      %p905 = por %p903, %p904
      %p906 = scmp.ne.s32.totalorder %s894, %s895
      %p907 = scmp.eq.s32.totalorder %s135, 1
      %p908 = por %p906, %p907
      %p910 = scmp.ne.s32.totalorder %s895, %s909
      %p911 = scmp.eq.s32.totalorder %s135, 0
      %p912 = por %p910, %p911
      %s914 = sadd.s32 %s913, 1
      %p917 = scmp.eq.s32.totalorder %s129, 1
      %p918 = scmp.ne.s32.totalorder %s913, %s915
      %p919 = scmp.eq.s32.totalorder %s129, 0
      %p920 = por %p918, %p919
      %p921 = scmp.ne.s32.totalorder %s913, %s915
      %p922 = scmp.eq.s32.totalorder %s134, 1
      %p923 = por %p921, %p922
      %p924 = scmp.ne.s32.totalorder %s915, %s916
      %p925 = scmp.eq.s32.totalorder %s134, 0
      %p926 = por %p924, %p925
      %p927 = scmp.ne.s32.totalorder %s915, %s916
      %p928 = scmp.eq.s32.totalorder %s135, 1
      %p929 = por %p927, %p928
      %p931 = scmp.ne.s32.totalorder %s916, %s930
      %p932 = scmp.eq.s32.totalorder %s135, 0
      %p933 = por %p931, %p932
      %s935 = sadd.s32 %s934, 1
      %p938 = scmp.eq.s32.totalorder %s129, 1
      %p939 = scmp.ne.s32.totalorder %s934, %s936
      %p940 = scmp.eq.s32.totalorder %s129, 0
      %p941 = por %p939, %p940
      %p942 = scmp.ne.s32.totalorder %s934, %s936
      %p943 = scmp.eq.s32.totalorder %s134, 1
      %p944 = por %p942, %p943
      %p945 = scmp.ne.s32.totalorder %s936, %s937
      %p946 = scmp.eq.s32.totalorder %s134, 0
      %p947 = por %p945, %p946
      %p948 = scmp.ne.s32.totalorder %s936, %s937
      %p949 = scmp.eq.s32.totalorder %s135, 1
      %p950 = por %p948, %p949
      %p952 = scmp.ne.s32.totalorder %s937, %s951
      %p953 = scmp.eq.s32.totalorder %s135, 0
      %p954 = por %p952, %p953
      %s955 = ssub.s32 %s129, %s136
      %p956 = scmp.eq.s32.totalorder %s955, 0
      %s958 = sadd.s32 %s957, 1
      %s959 = scalar_select %p956, %s957, %s958
      %p962 = pneg %p956
      %p963 = scmp.eq.s32.totalorder %s129, 1
      %p964 = por %p962, %p963
      %p965 = scmp.ne.s32.totalorder %s957, %s960
      %p966 = scmp.eq.s32.totalorder %s129, 0
      %p967 = por %p965, %p966
      %p968 = scmp.ne.s32.totalorder %s957, %s960
      %p969 = scmp.eq.s32.totalorder %s134, 1
      %p970 = por %p968, %p969
      %p971 = scmp.ne.s32.totalorder %s960, %s961
      %p972 = scmp.eq.s32.totalorder %s134, 0
      %p973 = por %p971, %p972
      %p974 = scmp.ne.s32.totalorder %s960, %s961
      %p975 = scmp.eq.s32.totalorder %s135, 1
      %p976 = por %p974, %p975
      %p978 = scmp.ne.s32.totalorder %s961, %s977
      %p979 = scmp.eq.s32.totalorder %s135, 0
      %p980 = por %p978, %p979
      %s981 = ssub.s32 %s129, %s136
      %p982 = scmp.eq.s32.totalorder %s981, 0
      %s984 = sadd.s32 %s983, 1
      %s985 = scalar_select %p982, %s983, %s984
      %p988 = pneg %p982
      %p989 = scmp.eq.s32.totalorder %s129, 1
      %p990 = por %p988, %p989
      %p991 = scmp.ne.s32.totalorder %s983, %s986
      %p992 = scmp.eq.s32.totalorder %s129, 0
      %p993 = por %p991, %p992
      %p994 = scmp.ne.s32.totalorder %s983, %s986
      %p995 = scmp.eq.s32.totalorder %s134, 1
      %p996 = por %p994, %p995
      %p997 = scmp.ne.s32.totalorder %s986, %s987
      %p998 = scmp.eq.s32.totalorder %s134, 0
      %p999 = por %p997, %p998
      %p1000 = scmp.ne.s32.totalorder %s986, %s987
      %p1001 = scmp.eq.s32.totalorder %s135, 1
      %p1002 = por %p1000, %p1001
      %p1004 = scmp.ne.s32.totalorder %s987, %s1003
      %p1005 = scmp.eq.s32.totalorder %s135, 0
      %p1006 = por %p1004, %p1005
      %s1007 = ssub.s32 %s129, %s136
      %p1008 = scmp.eq.s32.totalorder %s1007, 0
      %s1010 = sadd.s32 %s1009, 1
      %s1011 = scalar_select %p1008, %s1009, %s1010
      %p1014 = pneg %p1008
      %p1015 = scmp.eq.s32.totalorder %s129, 1
      %p1016 = por %p1014, %p1015
      %p1017 = scmp.ne.s32.totalorder %s1009, %s1012
      %p1018 = scmp.eq.s32.totalorder %s129, 0
      %p1019 = por %p1017, %p1018
      %p1020 = scmp.ne.s32.totalorder %s1009, %s1012
      %p1021 = scmp.eq.s32.totalorder %s134, 1
      %p1022 = por %p1020, %p1021
      %p1023 = scmp.ne.s32.totalorder %s1012, %s1013
      %p1024 = scmp.eq.s32.totalorder %s134, 0
      %p1025 = por %p1023, %p1024
      %p1026 = scmp.ne.s32.totalorder %s1012, %s1013
      %p1027 = scmp.eq.s32.totalorder %s135, 1
      %p1028 = por %p1026, %p1027
      %p1030 = scmp.ne.s32.totalorder %s1013, %s1029
      %p1031 = scmp.eq.s32.totalorder %s135, 0
      %p1032 = por %p1030, %p1031
      %s1033 = ssub.s32 %s129, %s136
      %p1034 = scmp.eq.s32.totalorder %s1033, 0
      %s1036 = sadd.s32 %s1035, 1
      %s1037 = scalar_select %p1034, %s1035, %s1036
      %p1040 = pneg %p1034
      %p1041 = scmp.eq.s32.totalorder %s129, 1
      %p1042 = por %p1040, %p1041
      %p1043 = scmp.ne.s32.totalorder %s1035, %s1038
      %p1044 = scmp.eq.s32.totalorder %s129, 0
      %p1045 = por %p1043, %p1044
      %p1046 = scmp.ne.s32.totalorder %s1035, %s1038
      %p1047 = scmp.eq.s32.totalorder %s134, 1
      %p1048 = por %p1046, %p1047
      %p1049 = scmp.ne.s32.totalorder %s1038, %s1039
      %p1050 = scmp.eq.s32.totalorder %s134, 0
      %p1051 = por %p1049, %p1050
      %p1052 = scmp.ne.s32.totalorder %s1038, %s1039
      %p1053 = scmp.eq.s32.totalorder %s135, 1
      %p1054 = por %p1052, %p1053
      %p1056 = scmp.ne.s32.totalorder %s1039, %s1055
      %p1057 = scmp.eq.s32.totalorder %s135, 0
      %p1058 = por %p1056, %p1057
      %p1059 = scmp.le.s32.totalorder 1, %s129
      %p1060 = scmp.lt.s32.totalorder %s129, 3
      %p1061 = pnand %p1059, %p1060
      %p1062 = pneg %p1061
      // Predicated region
      $region9: #{tpu_custom_call.1} parent=5 // pred_check
        _
      $region10: #{tpu_custom_call.1} parent=5 // pred_check_branch
        %1064 = sbr.rel (%p1061) target = $region12
      $region11: #{tpu_custom_call.1} parent=5 // pred_region
        %s1065 = ssub.s32 %s129, 1
        // Predicated region
        $region13: #{tpu_custom_call.1} parent=11 // pred_check
          %p1066 = pneg %p254
        $region14: #{tpu_custom_call.1} parent=11 // pred_check_branch
          %1068 = sbr.rel (%p1066) target = $region16
        $region15: #{tpu_custom_call.1} parent=11 // pred_region
          %s1070 = ssub.s32 768, 768
          %1071 = vsyncadd [#allocation13], %s1070
          %s1072 = sshll.u32 [#allocation14], 4
          %s1073 = int_to_ptr.vmem [resolvable:$true] %s1072
          %1078 = dma.hbm_to_vmem [thread:$0]  %s9, 768, %s1073, [#allocation13], 64, 64, 4
        $region16: #{tpu_custom_call.1} parent=11 // pred_fallthru
          _
        // Predicated region
        $region17: #{tpu_custom_call.1} parent=11 // pred_check
          %p1079 = pneg %p275
        $region18: #{tpu_custom_call.1} parent=11 // pred_check_branch
          %1081 = sbr.rel (%p1079) target = $region20
        $region19: #{tpu_custom_call.1} parent=11 // pred_region
          %s1083 = ssub.s32 16, 16
          %1084 = vsyncadd [#allocation16], %s1083
          %s1086 = sshll.u32 [#allocation15], 4
          %s1087 = int_to_ptr.vmem [resolvable:$true] %s1086
          %1089 = dma.hbm_to_vmem [thread:$0]  %s11, 16, %s1087, [#allocation16]
        $region20: #{tpu_custom_call.1} parent=11 // pred_fallthru
          _
        // Predicated region
        $region21: #{tpu_custom_call.1} parent=11 // pred_check
          %p1090 = pneg %p296
        $region22: #{tpu_custom_call.1} parent=11 // pred_check_branch
          %1092 = sbr.rel (%p1090) target = $region24
        $region23: #{tpu_custom_call.1} parent=11 // pred_region
          %s1094 = ssub.s32 16, 16
          %1095 = vsyncadd [#allocation16], %s1094
          %s1097 = sshll.u32 [#allocation17], 4
          %s1098 = int_to_ptr.vmem [resolvable:$true] %s1097
          %1100 = dma.hbm_to_vmem [thread:$0]  %s13, 16, %s1098, [#allocation16]
        $region24: #{tpu_custom_call.1} parent=11 // pred_fallthru
          _
        // Predicated region
        $region25: #{tpu_custom_call.1} parent=11 // pred_check
          %p1101 = pneg %p317
        $region26: #{tpu_custom_call.1} parent=11 // pred_check_branch
          %1103 = sbr.rel (%p1101) target = $region28
        $region27: #{tpu_custom_call.1} parent=11 // pred_region
          %s1105 = ssub.s32 16, 16
          %1106 = vsyncadd [#allocation19], %s1105
          %s1108 = sshll.u32 [#allocation18], 4
          %s1109 = int_to_ptr.vmem [resolvable:$true] %s1108
          %1111 = dma.hbm_to_vmem [thread:$0]  %s15, 16, %s1109, [#allocation19]
        $region28: #{tpu_custom_call.1} parent=11 // pred_fallthru
          _
        // Predicated region
        $region29: #{tpu_custom_call.1} parent=11 // pred_check
          %p1112 = pneg %p338
        $region30: #{tpu_custom_call.1} parent=11 // pred_check_branch
          %1114 = sbr.rel (%p1112) target = $region32
        $region31: #{tpu_custom_call.1} parent=11 // pred_region
          %s1116 = ssub.s32 768, 768
          %1117 = vsyncadd [#allocation19], %s1116
          %s1118 = sshll.u32 [#allocation20], 4
          %s1119 = int_to_ptr.vmem [resolvable:$true] %s1118
          %1124 = dma.hbm_to_vmem [thread:$0]  %s17, 768, %s1119, [#allocation19], 64, 64, 4
        $region32: #{tpu_custom_call.1} parent=11 // pred_fallthru
          _
        // Predicated region
        $region33: #{tpu_custom_call.1} parent=11 // pred_check
          %p1125 = pneg %p359
        $region34: #{tpu_custom_call.1} parent=11 // pred_check_branch
          %1127 = sbr.rel (%p1125) target = $region36
        $region35: #{tpu_custom_call.1} parent=11 // pred_region
          %s1129 = ssub.s32 16, 16
          %1130 = vsyncadd [#allocation22], %s1129
          %s1132 = sshll.u32 [#allocation21], 4
          %s1133 = int_to_ptr.vmem [resolvable:$true] %s1132
          %1135 = dma.hbm_to_vmem [thread:$0]  %s19, 16, %s1133, [#allocation22]
        $region36: #{tpu_custom_call.1} parent=11 // pred_fallthru
          _
        // Predicated region
        $region37: #{tpu_custom_call.1} parent=11 // pred_check
          %p1136 = pneg %p380
        $region38: #{tpu_custom_call.1} parent=11 // pred_check_branch
          %1138 = sbr.rel (%p1136) target = $region40
        $region39: #{tpu_custom_call.1} parent=11 // pred_region
          %s1140 = ssub.s32 16, 16
          %1141 = vsyncadd [#allocation22], %s1140
          %s1143 = sshll.u32 [#allocation23], 4
          %s1144 = int_to_ptr.vmem [resolvable:$true] %s1143
          %1146 = dma.hbm_to_vmem [thread:$0]  %s21, 16, %s1144, [#allocation22]
        $region40: #{tpu_custom_call.1} parent=11 // pred_fallthru
          _
        // Predicated region
        $region41: #{tpu_custom_call.1} parent=11 // pred_check
          %p1147 = pneg %p401
        $region42: #{tpu_custom_call.1} parent=11 // pred_check_branch
          %1149 = sbr.rel (%p1147) target = $region44
        $region43: #{tpu_custom_call.1} parent=11 // pred_region
          %s1151 = ssub.s32 16, 16
          %1152 = vsyncadd [#allocation25], %s1151
          %s1154 = sshll.u32 [#allocation24], 4
          %s1155 = int_to_ptr.vmem [resolvable:$true] %s1154
          %1157 = dma.hbm_to_vmem [thread:$0]  %s23, 16, %s1155, [#allocation25]
        $region44: #{tpu_custom_call.1} parent=11 // pred_fallthru
          _
        // Predicated region
        $region45: #{tpu_custom_call.1} parent=11 // pred_check
          %p1158 = pneg %p422
        $region46: #{tpu_custom_call.1} parent=11 // pred_check_branch
          %1160 = sbr.rel (%p1158) target = $region48
        $region47: #{tpu_custom_call.1} parent=11 // pred_region
          %s1162 = ssub.s32 16, 16
          %1163 = vsyncadd [#allocation25], %s1162
          %s1165 = sshll.u32 [#allocation26], 4
          %s1166 = int_to_ptr.vmem [resolvable:$true] %s1165
          %1168 = dma.hbm_to_vmem [thread:$0]  %s25, 16, %s1166, [#allocation25]
        $region48: #{tpu_custom_call.1} parent=11 // pred_fallthru
          _
        // Predicated region
        $region49: #{tpu_custom_call.1} parent=11 // pred_check
          %p1169 = pneg %p443
        $region50: #{tpu_custom_call.1} parent=11 // pred_check_branch
          %1171 = sbr.rel (%p1169) target = $region52
        $region51: #{tpu_custom_call.1} parent=11 // pred_region
          _
        $region52: #{tpu_custom_call.1} parent=11 // pred_fallthru
          _
        // Predicated region
        $region53: #{tpu_custom_call.1} parent=11 // pred_check
          %p1172 = pneg %p464
        $region54: #{tpu_custom_call.1} parent=11 // pred_check_branch
          %1174 = sbr.rel (%p1172) target = $region56
        $region55: #{tpu_custom_call.1} parent=11 // pred_region
          %s1176 = ssub.s32 768, 768
          %1177 = vsyncadd [#allocation28], %s1176
          %s1178 = sshll.u32 [#allocation27], 4
          %s1179 = int_to_ptr.vmem [resolvable:$true] %s1178
          %1184 = dma.hbm_to_vmem [thread:$0]  %s29, 768, %s1179, [#allocation28], 64, 64, 4
        $region56: #{tpu_custom_call.1} parent=11 // pred_fallthru
          _
        // Predicated region
        $region57: #{tpu_custom_call.1} parent=11 // pred_check
          %p1185 = pneg %p485
        $region58: #{tpu_custom_call.1} parent=11 // pred_check_branch
          %1187 = sbr.rel (%p1185) target = $region60
        $region59: #{tpu_custom_call.1} parent=11 // pred_region
          %s1189 = ssub.s32 16, 16
          %1190 = vsyncadd [#allocation28], %s1189
          %s1192 = sshll.u32 [#allocation29], 4
          %s1193 = int_to_ptr.vmem [resolvable:$true] %s1192
          %1195 = dma.hbm_to_vmem [thread:$0]  %s31, 16, %s1193, [#allocation28]
        $region60: #{tpu_custom_call.1} parent=11 // pred_fallthru
          _
        // Predicated region
        $region61: #{tpu_custom_call.1} parent=11 // pred_check
          %p1196 = pneg %p506
        $region62: #{tpu_custom_call.1} parent=11 // pred_check_branch
          %1198 = sbr.rel (%p1196) target = $region64
        $region63: #{tpu_custom_call.1} parent=11 // pred_region
          %s1200 = ssub.s32 16, 16
          %1201 = vsyncadd [#allocation31], %s1200
          %s1203 = sshll.u32 [#allocation30], 4
          %s1204 = int_to_ptr.vmem [resolvable:$true] %s1203
          %1206 = dma.hbm_to_vmem [thread:$0]  %s33, 16, %s1204, [#allocation31]
        $region64: #{tpu_custom_call.1} parent=11 // pred_fallthru
          _
        // Predicated region
        $region65: #{tpu_custom_call.1} parent=11 // pred_check
          %p1207 = pneg %p527
        $region66: #{tpu_custom_call.1} parent=11 // pred_check_branch
          %1209 = sbr.rel (%p1207) target = $region68
        $region67: #{tpu_custom_call.1} parent=11 // pred_region
          %s1211 = ssub.s32 16, 16
          %1212 = vsyncadd [#allocation31], %s1211
          %s1214 = sshll.u32 [#allocation32], 4
          %s1215 = int_to_ptr.vmem [resolvable:$true] %s1214
          %1217 = dma.hbm_to_vmem [thread:$0]  %s35, 16, %s1215, [#allocation31]
        $region68: #{tpu_custom_call.1} parent=11 // pred_fallthru
          _
        // Predicated region
        $region69: #{tpu_custom_call.1} parent=11 // pred_check
          %p1218 = pneg %p548
        $region70: #{tpu_custom_call.1} parent=11 // pred_check_branch
          %1220 = sbr.rel (%p1218) target = $region72
        $region71: #{tpu_custom_call.1} parent=11 // pred_region
          %s1222 = ssub.s32 768, 768
          %1223 = vsyncadd [#allocation34], %s1222
          %s1224 = sshll.u32 [#allocation33], 4
          %s1225 = int_to_ptr.vmem [resolvable:$true] %s1224
          %1230 = dma.hbm_to_vmem [thread:$0]  %s37, 768, %s1225, [#allocation34], 64, 64, 4
        $region72: #{tpu_custom_call.1} parent=11 // pred_fallthru
          _
        // Predicated region
        $region73: #{tpu_custom_call.1} parent=11 // pred_check
          %p1231 = pneg %p569
        $region74: #{tpu_custom_call.1} parent=11 // pred_check_branch
          %1233 = sbr.rel (%p1231) target = $region76
        $region75: #{tpu_custom_call.1} parent=11 // pred_region
          %s1235 = ssub.s32 16, 16
          %1236 = vsyncadd [#allocation34], %s1235
          %s1238 = sshll.u32 [#allocation35], 4
          %s1239 = int_to_ptr.vmem [resolvable:$true] %s1238
          %1241 = dma.hbm_to_vmem [thread:$0]  %s39, 16, %s1239, [#allocation34]
        $region76: #{tpu_custom_call.1} parent=11 // pred_fallthru
          _
        // Predicated region
        $region77: #{tpu_custom_call.1} parent=11 // pred_check
          %p1242 = pneg %p590
        $region78: #{tpu_custom_call.1} parent=11 // pred_check_branch
          %1244 = sbr.rel (%p1242) target = $region80
        $region79: #{tpu_custom_call.1} parent=11 // pred_region
          %s1246 = ssub.s32 16, 16
          %1247 = vsyncadd [#allocation37], %s1246
          %s1249 = sshll.u32 [#allocation36], 4
          %s1250 = int_to_ptr.vmem [resolvable:$true] %s1249
          %1252 = dma.hbm_to_vmem [thread:$0]  %s41, 16, %s1250, [#allocation37]
        $region80: #{tpu_custom_call.1} parent=11 // pred_fallthru
          _
        // Predicated region
        $region81: #{tpu_custom_call.1} parent=11 // pred_check
          %p1253 = pneg %p611
        $region82: #{tpu_custom_call.1} parent=11 // pred_check_branch
          %1255 = sbr.rel (%p1253) target = $region84
        $region83: #{tpu_custom_call.1} parent=11 // pred_region
          %s1257 = ssub.s32 16, 16
          %1258 = vsyncadd [#allocation37], %s1257
          %s1260 = sshll.u32 [#allocation38], 4
          %s1261 = int_to_ptr.vmem [resolvable:$true] %s1260
          %1263 = dma.hbm_to_vmem [thread:$0]  %s43, 16, %s1261, [#allocation37]
        $region84: #{tpu_custom_call.1} parent=11 // pred_fallthru
          _
        // Predicated region
        $region85: #{tpu_custom_call.1} parent=11 // pred_check
          %p1264 = pneg %p632
        $region86: #{tpu_custom_call.1} parent=11 // pred_check_branch
          %1266 = sbr.rel (%p1264) target = $region88
        $region87: #{tpu_custom_call.1} parent=11 // pred_region
          %s1268 = ssub.s32 16, 16
          %1269 = vsyncadd [#allocation40], %s1268
          %s1271 = sshll.u32 [#allocation39], 4
          %s1272 = int_to_ptr.vmem [resolvable:$true] %s1271
          %1274 = dma.hbm_to_vmem [thread:$0]  %s45, 16, %s1272, [#allocation40]
        $region88: #{tpu_custom_call.1} parent=11 // pred_fallthru
          _
        // Predicated region
        $region89: #{tpu_custom_call.1} parent=11 // pred_check
          %p1275 = pneg %p653
        $region90: #{tpu_custom_call.1} parent=11 // pred_check_branch
          %1277 = sbr.rel (%p1275) target = $region92
        $region91: #{tpu_custom_call.1} parent=11 // pred_region
          _
        $region92: #{tpu_custom_call.1} parent=11 // pred_fallthru
          _
        // Predicated region
        $region93: #{tpu_custom_call.1} parent=11 // pred_check
          %p1278 = pneg %p674
        $region94: #{tpu_custom_call.1} parent=11 // pred_check_branch
          %1280 = sbr.rel (%p1278) target = $region96
        $region95: #{tpu_custom_call.1} parent=11 // pred_region
          %s1282 = ssub.s32 768, 768
          %1283 = vsyncadd [#allocation40], %s1282
          %s1284 = sshll.u32 [#allocation41], 4
          %s1285 = int_to_ptr.vmem [resolvable:$true] %s1284
          %1290 = dma.hbm_to_vmem [thread:$0]  %s49, 768, %s1285, [#allocation40], 64, 64, 4
        $region96: #{tpu_custom_call.1} parent=11 // pred_fallthru
          _
        // Predicated region
        $region97: #{tpu_custom_call.1} parent=11 // pred_check
          %p1291 = pneg %p695
        $region98: #{tpu_custom_call.1} parent=11 // pred_check_branch
          %1293 = sbr.rel (%p1291) target = $region100
        $region99: #{tpu_custom_call.1} parent=11 // pred_region
          %s1295 = ssub.s32 16, 16
          %1296 = vsyncadd [#allocation43], %s1295
          %s1298 = sshll.u32 [#allocation42], 4
          %s1299 = int_to_ptr.vmem [resolvable:$true] %s1298
          %1301 = dma.hbm_to_vmem [thread:$0]  %s51, 16, %s1299, [#allocation43]
        $region100: #{tpu_custom_call.1} parent=11 // pred_fallthru
          _
        // Predicated region
        $region101: #{tpu_custom_call.1} parent=11 // pred_check
          %p1302 = pneg %p716
        $region102: #{tpu_custom_call.1} parent=11 // pred_check_branch
          %1304 = sbr.rel (%p1302) target = $region104
        $region103: #{tpu_custom_call.1} parent=11 // pred_region
          %s1306 = ssub.s32 16, 16
          %1307 = vsyncadd [#allocation43], %s1306
          %s1309 = sshll.u32 [#allocation44], 4
          %s1310 = int_to_ptr.vmem [resolvable:$true] %s1309
          %1312 = dma.hbm_to_vmem [thread:$0]  %s53, 16, %s1310, [#allocation43]
        $region104: #{tpu_custom_call.1} parent=11 // pred_fallthru
          _
        // Predicated region
        $region105: #{tpu_custom_call.1} parent=11 // pred_check
          %p1313 = pneg %p737
        $region106: #{tpu_custom_call.1} parent=11 // pred_check_branch
          %1315 = sbr.rel (%p1313) target = $region108
        $region107: #{tpu_custom_call.1} parent=11 // pred_region
          %s1317 = ssub.s32 16, 16
          %1318 = vsyncadd [#allocation46], %s1317
          %s1320 = sshll.u32 [#allocation45], 4
          %s1321 = int_to_ptr.vmem [resolvable:$true] %s1320
          %1323 = dma.hbm_to_vmem [thread:$0]  %s55, 16, %s1321, [#allocation46]
        $region108: #{tpu_custom_call.1} parent=11 // pred_fallthru
          _
        // Predicated region
        $region109: #{tpu_custom_call.1} parent=11 // pred_check
          %p1324 = pneg %p758
        $region110: #{tpu_custom_call.1} parent=11 // pred_check_branch
          %1326 = sbr.rel (%p1324) target = $region112
        $region111: #{tpu_custom_call.1} parent=11 // pred_region
          %s1328 = ssub.s32 768, 768
          %1329 = vsyncadd [#allocation46], %s1328
          %s1330 = sshll.u32 [#allocation47], 4
          %s1331 = int_to_ptr.vmem [resolvable:$true] %s1330
          %1336 = dma.hbm_to_vmem [thread:$0]  %s57, 768, %s1331, [#allocation46], 64, 64, 4
        $region112: #{tpu_custom_call.1} parent=11 // pred_fallthru
          _
        // Predicated region
        $region113: #{tpu_custom_call.1} parent=11 // pred_check
          %p1337 = pneg %p779
        $region114: #{tpu_custom_call.1} parent=11 // pred_check_branch
          %1339 = sbr.rel (%p1337) target = $region116
        $region115: #{tpu_custom_call.1} parent=11 // pred_region
          %s1341 = ssub.s32 16, 16
          %1342 = vsyncadd [#allocation49], %s1341
          %s1344 = sshll.u32 [#allocation48], 4
          %s1345 = int_to_ptr.vmem [resolvable:$true] %s1344
          %1347 = dma.hbm_to_vmem [thread:$0]  %s59, 16, %s1345, [#allocation49]
        $region116: #{tpu_custom_call.1} parent=11 // pred_fallthru
          _
        // Predicated region
        $region117: #{tpu_custom_call.1} parent=11 // pred_check
          %p1348 = pneg %p800
        $region118: #{tpu_custom_call.1} parent=11 // pred_check_branch
          %1350 = sbr.rel (%p1348) target = $region120
        $region119: #{tpu_custom_call.1} parent=11 // pred_region
          %s1352 = ssub.s32 16, 16
          %1353 = vsyncadd [#allocation49], %s1352
          %s1355 = sshll.u32 [#allocation50], 4
          %s1356 = int_to_ptr.vmem [resolvable:$true] %s1355
          %1358 = dma.hbm_to_vmem [thread:$0]  %s61, 16, %s1356, [#allocation49]
        $region120: #{tpu_custom_call.1} parent=11 // pred_fallthru
          _
        // Predicated region
        $region121: #{tpu_custom_call.1} parent=11 // pred_check
          %p1359 = pneg %p821
        $region122: #{tpu_custom_call.1} parent=11 // pred_check_branch
          %1361 = sbr.rel (%p1359) target = $region124
        $region123: #{tpu_custom_call.1} parent=11 // pred_region
          %s1363 = ssub.s32 16, 16
          %1364 = vsyncadd [#allocation52], %s1363
          %s1366 = sshll.u32 [#allocation51], 4
          %s1367 = int_to_ptr.vmem [resolvable:$true] %s1366
          %1369 = dma.hbm_to_vmem [thread:$0]  %s63, 16, %s1367, [#allocation52]
        $region124: #{tpu_custom_call.1} parent=11 // pred_fallthru
          _
        // Predicated region
        $region125: #{tpu_custom_call.1} parent=11 // pred_check
          %p1370 = pneg %p842
        $region126: #{tpu_custom_call.1} parent=11 // pred_check_branch
          %1372 = sbr.rel (%p1370) target = $region128
        $region127: #{tpu_custom_call.1} parent=11 // pred_region
          %s1374 = ssub.s32 16, 16
          %1375 = vsyncadd [#allocation52], %s1374
          %s1377 = sshll.u32 [#allocation53], 4
          %s1378 = int_to_ptr.vmem [resolvable:$true] %s1377
          %1380 = dma.hbm_to_vmem [thread:$0]  %s65, 16, %s1378, [#allocation52]
        $region128: #{tpu_custom_call.1} parent=11 // pred_fallthru
          _
        // Predicated region
        $region129: #{tpu_custom_call.1} parent=11 // pred_check
          %p1381 = pneg %p863
        $region130: #{tpu_custom_call.1} parent=11 // pred_check_branch
          %1383 = sbr.rel (%p1381) target = $region132
        $region131: #{tpu_custom_call.1} parent=11 // pred_region
          _
        $region132: #{tpu_custom_call.1} parent=11 // pred_fallthru
          _
        // Predicated region
        $region133: #{tpu_custom_call.1} parent=11 // pred_check
          %p1384 = pneg %p884
        $region134: #{tpu_custom_call.1} parent=11 // pred_check_branch
          %1386 = sbr.rel (%p1384) target = $region136
        $region135: #{tpu_custom_call.1} parent=11 // pred_region
          %s1388 = ssub.s32 16, 16
          %1389 = vsyncadd [#allocation55], %s1388
          %s1391 = sshll.u32 [#allocation54], 4
          %s1392 = int_to_ptr.vmem [resolvable:$true] %s1391
          %1394 = dma.hbm_to_vmem [thread:$0]  %s69, 16, %s1392, [#allocation55]
        $region136: #{tpu_custom_call.1} parent=11 // pred_fallthru
          _
        // Predicated region
        $region137: #{tpu_custom_call.1} parent=11 // pred_check
          %p1395 = pneg %p905
        $region138: #{tpu_custom_call.1} parent=11 // pred_check_branch
          %1397 = sbr.rel (%p1395) target = $region140
        $region139: #{tpu_custom_call.1} parent=11 // pred_region
          %s1399 = ssub.s32 16, 16
          %1400 = vsyncadd [#allocation55], %s1399
          %s1402 = sshll.u32 [#allocation56], 4
          %s1403 = int_to_ptr.vmem [resolvable:$true] %s1402
          %1405 = dma.hbm_to_vmem [thread:$0]  %s71, 16, %s1403, [#allocation55]
        $region140: #{tpu_custom_call.1} parent=11 // pred_fallthru
          _
        // Predicated region
        $region141: #{tpu_custom_call.1} parent=11 // pred_check
          %p1406 = pneg %p926
        $region142: #{tpu_custom_call.1} parent=11 // pred_check_branch
          %1408 = sbr.rel (%p1406) target = $region144
        $region143: #{tpu_custom_call.1} parent=11 // pred_region
          %s1410 = ssub.s32 128, 128
          %1411 = vsyncadd [#allocation58], %s1410
          %s1412 = sshll.u32 [#allocation57], 4
          %s1413 = int_to_ptr.vmem [resolvable:$true] %s1412
          %1418 = dma.hbm_to_vmem [thread:$0]  %s73, 128, %s1413, [#allocation58], 64, 64, 4
        $region144: #{tpu_custom_call.1} parent=11 // pred_fallthru
          _
        // Predicated region
        $region145: #{tpu_custom_call.1} parent=11 // pred_check
          %p1419 = pneg %p947
        $region146: #{tpu_custom_call.1} parent=11 // pred_check_branch
          %1421 = sbr.rel (%p1419) target = $region148
        $region147: #{tpu_custom_call.1} parent=11 // pred_region
          %s1423 = ssub.s32 128, 128
          %1424 = vsyncadd [#allocation58], %s1423
          %s1425 = sshll.u32 [#allocation59], 4
          %s1426 = int_to_ptr.vmem [resolvable:$true] %s1425
          %1431 = dma.hbm_to_vmem [thread:$0]  %s75, 128, %s1426, [#allocation58], 64, 64, 4
        $region148: #{tpu_custom_call.1} parent=11 // pred_fallthru
          _
      $region12: #{tpu_custom_call.1} parent=5 // pred_fallthru
        _
      %p1432 = scmp.lt.s32.totalorder %s129, 2
      // Predicated region
      $region149: #{tpu_custom_call.1} parent=5 // pred_check
        %p1433 = pneg %p1432
      $region150: #{tpu_custom_call.1} parent=5 // pred_check_branch
        %1435 = sbr.rel (%p1433) target = $region152
      $region151: #{tpu_custom_call.1} parent=5 // pred_region
        // Predicated region
        $region153: #{tpu_custom_call.1} parent=151 // pred_check
          %p1436 = pneg %p149
        $region154: #{tpu_custom_call.1} parent=151 // pred_check_branch
          %1438 = sbr.rel (%p1436) target = $region156
        $region155: #{tpu_custom_call.1} parent=151 // pred_region
          %s1439 = sand.u32 %s139, 1
          %s1440 = scalar_lea.sflag [#allocation7], %s1439
          %s1441 = sand.u32 %s139, 1
          %s1442 = smul.addr %s1441, 8
          %s1443 = scalar_lea.vmem [#allocation6], %s1442
          %s1445 = ssub.s32 128, 128
          %1446 = vsyncadd %s1440, %s1445
          %s1447 = smul.addr %s129, 128
          %s1448 = scalar_lea.hbm %s1, %s1447
          %s1450 = sshll.u32 %s1443, 4
          %s1451 = int_to_ptr.vmem [resolvable:$true] %s1450
          %1453 = dma.hbm_to_vmem [thread:$0]  %s1448, 128, %s1451, %s1440
        $region156: #{tpu_custom_call.1} parent=151 // pred_fallthru
          _
        // Predicated region
        $region157: #{tpu_custom_call.1} parent=151 // pred_check
          %p1454 = pneg %p175
        $region158: #{tpu_custom_call.1} parent=151 // pred_check_branch
          %1456 = sbr.rel (%p1454) target = $region160
        $region159: #{tpu_custom_call.1} parent=151 // pred_region
          %s1457 = sand.u32 %s129, 1
          %s1458 = scalar_lea.sflag [#allocation10], %s1457
          %s1459 = sand.u32 %s165, 1
          %s1460 = smul.addr %s1459, 32
          %s1461 = scalar_lea.vmem [#allocation9], %s1460
          %s1463 = ssub.s32 512, 512
          %1464 = vsyncadd %s1458, %s1463
          %s1465 = smul.addr %s129, 4
          %s1466 = smul.addr %s1465, 128
          %s1467 = scalar_lea.hbm %s3, %s1466
          %s1468 = sshll.u32 %s1461, 4
          %s1469 = int_to_ptr.vmem [resolvable:$true] %s1468
          %1474 = dma.hbm_to_vmem [thread:$0]  %s1467, 512, %s1469, %s1458, 128, 128, 8
        $region160: #{tpu_custom_call.1} parent=151 // pred_fallthru
          _
        // Predicated region
        $region161: #{tpu_custom_call.1} parent=151 // pred_check
          %p1475 = pneg %p201
        $region162: #{tpu_custom_call.1} parent=151 // pred_check_branch
          %1477 = sbr.rel (%p1475) target = $region164
        $region163: #{tpu_custom_call.1} parent=151 // pred_region
          %s1478 = sand.u32 %s129, 1
          %s1479 = scalar_lea.sflag [#allocation10], %s1478
          %s1480 = sand.u32 %s191, 1
          %s1481 = smul.addr %s1480, 32
          %s1482 = scalar_lea.vmem [#allocation11], %s1481
          %s1484 = ssub.s32 512, 512
          %1485 = vsyncadd %s1479, %s1484
          %s1486 = smul.addr %s129, 4
          %s1487 = smul.addr %s1486, 128
          %s1488 = scalar_lea.hbm %s5, %s1487
          %s1489 = sshll.u32 %s1482, 4
          %s1490 = int_to_ptr.vmem [resolvable:$true] %s1489
          %1495 = dma.hbm_to_vmem [thread:$0]  %s1488, 512, %s1490, %s1479, 128, 128, 8
        $region164: #{tpu_custom_call.1} parent=151 // pred_fallthru
          _
        // Predicated region
        $region165: #{tpu_custom_call.1} parent=151 // pred_check
          %p1496 = pneg %p227
        $region166: #{tpu_custom_call.1} parent=151 // pred_check_branch
          %1498 = sbr.rel (%p1496) target = $region168
        $region167: #{tpu_custom_call.1} parent=151 // pred_region
          %s1499 = sand.u32 %s129, 1
          %s1500 = scalar_lea.sflag [#allocation13], %s1499
          %s1501 = sand.u32 %s217, 1
          %s1502 = smul.addr %s1501, 32
          %s1503 = scalar_lea.vmem [#allocation12], %s1502
          %s1505 = ssub.s32 512, 512
          %1506 = vsyncadd %s1500, %s1505
          %s1507 = smul.addr %s129, 4
          %s1508 = smul.addr %s1507, 128
          %s1509 = scalar_lea.hbm %s7, %s1508
          %s1510 = sshll.u32 %s1503, 4
          %s1511 = int_to_ptr.vmem [resolvable:$true] %s1510
          %1516 = dma.hbm_to_vmem [thread:$0]  %s1509, 512, %s1511, %s1500, 128, 128, 8
        $region168: #{tpu_custom_call.1} parent=151 // pred_fallthru
          _
      $region152: #{tpu_custom_call.1} parent=5 // pred_fallthru
        _
      %p1517 = scmp.le.s32.totalorder 1, %s129
      %p1518 = scmp.lt.s32.totalorder %s129, 3
      %p1519 = pnand %p1517, %p1518
      %p1520 = pneg %p1519
      // Predicated region
      $region169: #{tpu_custom_call.1} parent=5 // pred_check
        _
      $region170: #{tpu_custom_call.1} parent=5 // pred_check_branch
        %1522 = sbr.rel (%p1519) target = $region172
      $region171: #{tpu_custom_call.1} parent=5 // pred_region
        %s1523 = ssub.s32 %s129, 1
        %s1524 = sand.u32 %s142, 1
        %s1525 = scalar_lea.sflag [#allocation7], %s1524
        %s1526 = sand.u32 %s142, 1
        %s1527 = smul.addr %s1526, 8
        %s1528 = scalar_lea.vmem [#allocation6], %s1527
        // Predicated region
        $region173: #{tpu_custom_call.1} parent=171 // pred_check
          %p1529 = pneg %p155
        $region174: #{tpu_custom_call.1} parent=171 // pred_check_branch
          %1531 = sbr.rel (%p1529) target = $region176
        $region175: #{tpu_custom_call.1} parent=171 // pred_region
          %1532 = dma.done %s1525, 128
        $region176: #{tpu_custom_call.1} parent=171 // pred_fallthru
          _
        %s1533 = sand.u32 %s134, 1
        %s1534 = scalar_lea.sflag [#allocation10], %s1533
        %s1535 = sand.u32 %s168, 1
        %s1536 = smul.addr %s1535, 32
        %s1537 = scalar_lea.vmem [#allocation9], %s1536
        // Predicated region
        $region177: #{tpu_custom_call.1} parent=171 // pred_check
          %p1538 = pneg %p181
        $region178: #{tpu_custom_call.1} parent=171 // pred_check_branch
          %1540 = sbr.rel (%p1538) target = $region180
        $region179: #{tpu_custom_call.1} parent=171 // pred_region
          %1541 = dma.done %s1534, 512
        $region180: #{tpu_custom_call.1} parent=171 // pred_fallthru
          _
        %s1542 = sand.u32 %s134, 1
        %s1543 = scalar_lea.sflag [#allocation10], %s1542
        %s1544 = sand.u32 %s194, 1
        %s1545 = smul.addr %s1544, 32
        %s1546 = scalar_lea.vmem [#allocation11], %s1545
        // Predicated region
        $region181: #{tpu_custom_call.1} parent=171 // pred_check
          %p1547 = pneg %p207
        $region182: #{tpu_custom_call.1} parent=171 // pred_check_branch
          %1549 = sbr.rel (%p1547) target = $region184
        $region183: #{tpu_custom_call.1} parent=171 // pred_region
          %1550 = dma.done %s1543, 512
        $region184: #{tpu_custom_call.1} parent=171 // pred_fallthru
          _
        %s1551 = sand.u32 %s134, 1
        %s1552 = scalar_lea.sflag [#allocation13], %s1551
        %s1553 = sand.u32 %s220, 1
        %s1554 = smul.addr %s1553, 32
        %s1555 = scalar_lea.vmem [#allocation12], %s1554
        // Predicated region
        $region185: #{tpu_custom_call.1} parent=171 // pred_check
          %p1556 = pneg %p233
        $region186: #{tpu_custom_call.1} parent=171 // pred_check_branch
          %1558 = sbr.rel (%p1556) target = $region188
        $region187: #{tpu_custom_call.1} parent=171 // pred_region
          %1559 = dma.done %s1552, 512
        $region188: #{tpu_custom_call.1} parent=171 // pred_fallthru
          _
        // Predicated region
        $region189: #{tpu_custom_call.1} parent=171 // pred_check
          %p1560 = pneg %p254
        $region190: #{tpu_custom_call.1} parent=171 // pred_check_branch
          %1562 = sbr.rel (%p1560) target = $region192
        $region191: #{tpu_custom_call.1} parent=171 // pred_region
          %1563 = dma.done [#allocation13], 768
        $region192: #{tpu_custom_call.1} parent=171 // pred_fallthru
          _
        // Predicated region
        $region193: #{tpu_custom_call.1} parent=171 // pred_check
          %p1564 = pneg %p275
        $region194: #{tpu_custom_call.1} parent=171 // pred_check_branch
          %1566 = sbr.rel (%p1564) target = $region196
        $region195: #{tpu_custom_call.1} parent=171 // pred_region
          %1567 = dma.done [#allocation16], 16
        $region196: #{tpu_custom_call.1} parent=171 // pred_fallthru
          _
        // Predicated region
        $region197: #{tpu_custom_call.1} parent=171 // pred_check
          %p1568 = pneg %p296
        $region198: #{tpu_custom_call.1} parent=171 // pred_check_branch
          %1570 = sbr.rel (%p1568) target = $region200
        $region199: #{tpu_custom_call.1} parent=171 // pred_region
          %1571 = dma.done [#allocation16], 16
        $region200: #{tpu_custom_call.1} parent=171 // pred_fallthru
          _
        // Predicated region
        $region201: #{tpu_custom_call.1} parent=171 // pred_check
          %p1572 = pneg %p317
        $region202: #{tpu_custom_call.1} parent=171 // pred_check_branch
          %1574 = sbr.rel (%p1572) target = $region204
        $region203: #{tpu_custom_call.1} parent=171 // pred_region
          %1575 = dma.done [#allocation19], 16
        $region204: #{tpu_custom_call.1} parent=171 // pred_fallthru
          _
        // Predicated region
        $region205: #{tpu_custom_call.1} parent=171 // pred_check
          %p1576 = pneg %p338
        $region206: #{tpu_custom_call.1} parent=171 // pred_check_branch
          %1578 = sbr.rel (%p1576) target = $region208
        $region207: #{tpu_custom_call.1} parent=171 // pred_region
          %1579 = dma.done [#allocation19], 768
        $region208: #{tpu_custom_call.1} parent=171 // pred_fallthru
          _
        // Predicated region
        $region209: #{tpu_custom_call.1} parent=171 // pred_check
          %p1580 = pneg %p359
        $region210: #{tpu_custom_call.1} parent=171 // pred_check_branch
          %1582 = sbr.rel (%p1580) target = $region212
        $region211: #{tpu_custom_call.1} parent=171 // pred_region
          %1583 = dma.done [#allocation22], 16
        $region212: #{tpu_custom_call.1} parent=171 // pred_fallthru
          _
        // Predicated region
        $region213: #{tpu_custom_call.1} parent=171 // pred_check
          %p1584 = pneg %p380
        $region214: #{tpu_custom_call.1} parent=171 // pred_check_branch
          %1586 = sbr.rel (%p1584) target = $region216
        $region215: #{tpu_custom_call.1} parent=171 // pred_region
          %1587 = dma.done [#allocation22], 16
        $region216: #{tpu_custom_call.1} parent=171 // pred_fallthru
          _
        // Predicated region
        $region217: #{tpu_custom_call.1} parent=171 // pred_check
          %p1588 = pneg %p401
        $region218: #{tpu_custom_call.1} parent=171 // pred_check_branch
          %1590 = sbr.rel (%p1588) target = $region220
        $region219: #{tpu_custom_call.1} parent=171 // pred_region
          %1591 = dma.done [#allocation25], 16
        $region220: #{tpu_custom_call.1} parent=171 // pred_fallthru
          _
        // Predicated region
        $region221: #{tpu_custom_call.1} parent=171 // pred_check
          %p1592 = pneg %p422
        $region222: #{tpu_custom_call.1} parent=171 // pred_check_branch
          %1594 = sbr.rel (%p1592) target = $region224
        $region223: #{tpu_custom_call.1} parent=171 // pred_region
          %1595 = dma.done [#allocation25], 16
        $region224: #{tpu_custom_call.1} parent=171 // pred_fallthru
          _
        // Predicated region
        $region225: #{tpu_custom_call.1} parent=171 // pred_check
          %p1596 = pneg %p464
        $region226: #{tpu_custom_call.1} parent=171 // pred_check_branch
          %1598 = sbr.rel (%p1596) target = $region228
        $region227: #{tpu_custom_call.1} parent=171 // pred_region
          %1599 = dma.done [#allocation28], 768
        $region228: #{tpu_custom_call.1} parent=171 // pred_fallthru
          _
        // Predicated region
        $region229: #{tpu_custom_call.1} parent=171 // pred_check
          %p1600 = pneg %p485
        $region230: #{tpu_custom_call.1} parent=171 // pred_check_branch
          %1602 = sbr.rel (%p1600) target = $region232
        $region231: #{tpu_custom_call.1} parent=171 // pred_region
          %1603 = dma.done [#allocation28], 16
        $region232: #{tpu_custom_call.1} parent=171 // pred_fallthru
          _
        // Predicated region
        $region233: #{tpu_custom_call.1} parent=171 // pred_check
          %p1604 = pneg %p506
        $region234: #{tpu_custom_call.1} parent=171 // pred_check_branch
          %1606 = sbr.rel (%p1604) target = $region236
        $region235: #{tpu_custom_call.1} parent=171 // pred_region
          %1607 = dma.done [#allocation31], 16
        $region236: #{tpu_custom_call.1} parent=171 // pred_fallthru
          _
        // Predicated region
        $region237: #{tpu_custom_call.1} parent=171 // pred_check
          %p1608 = pneg %p527
        $region238: #{tpu_custom_call.1} parent=171 // pred_check_branch
          %1610 = sbr.rel (%p1608) target = $region240
        $region239: #{tpu_custom_call.1} parent=171 // pred_region
          %1611 = dma.done [#allocation31], 16
        $region240: #{tpu_custom_call.1} parent=171 // pred_fallthru
          _
        // Predicated region
        $region241: #{tpu_custom_call.1} parent=171 // pred_check
          %p1612 = pneg %p548
        $region242: #{tpu_custom_call.1} parent=171 // pred_check_branch
          %1614 = sbr.rel (%p1612) target = $region244
        $region243: #{tpu_custom_call.1} parent=171 // pred_region
          %1615 = dma.done [#allocation34], 768
        $region244: #{tpu_custom_call.1} parent=171 // pred_fallthru
          _
        // Predicated region
        $region245: #{tpu_custom_call.1} parent=171 // pred_check
          %p1616 = pneg %p569
        $region246: #{tpu_custom_call.1} parent=171 // pred_check_branch
          %1618 = sbr.rel (%p1616) target = $region248
        $region247: #{tpu_custom_call.1} parent=171 // pred_region
          %1619 = dma.done [#allocation34], 16
        $region248: #{tpu_custom_call.1} parent=171 // pred_fallthru
          _
        // Predicated region
        $region249: #{tpu_custom_call.1} parent=171 // pred_check
          %p1620 = pneg %p590
        $region250: #{tpu_custom_call.1} parent=171 // pred_check_branch
          %1622 = sbr.rel (%p1620) target = $region252
        $region251: #{tpu_custom_call.1} parent=171 // pred_region
          %1623 = dma.done [#allocation37], 16
        $region252: #{tpu_custom_call.1} parent=171 // pred_fallthru
          _
        // Predicated region
        $region253: #{tpu_custom_call.1} parent=171 // pred_check
          %p1624 = pneg %p611
        $region254: #{tpu_custom_call.1} parent=171 // pred_check_branch
          %1626 = sbr.rel (%p1624) target = $region256
        $region255: #{tpu_custom_call.1} parent=171 // pred_region
          %1627 = dma.done [#allocation37], 16
        $region256: #{tpu_custom_call.1} parent=171 // pred_fallthru
          _
        // Predicated region
        $region257: #{tpu_custom_call.1} parent=171 // pred_check
          %p1628 = pneg %p632
        $region258: #{tpu_custom_call.1} parent=171 // pred_check_branch
          %1630 = sbr.rel (%p1628) target = $region260
        $region259: #{tpu_custom_call.1} parent=171 // pred_region
          %1631 = dma.done [#allocation40], 16
        $region260: #{tpu_custom_call.1} parent=171 // pred_fallthru
          _
        // Predicated region
        $region261: #{tpu_custom_call.1} parent=171 // pred_check
          %p1632 = pneg %p674
        $region262: #{tpu_custom_call.1} parent=171 // pred_check_branch
          %1634 = sbr.rel (%p1632) target = $region264
        $region263: #{tpu_custom_call.1} parent=171 // pred_region
          %1635 = dma.done [#allocation40], 768
        $region264: #{tpu_custom_call.1} parent=171 // pred_fallthru
          _
        // Predicated region
        $region265: #{tpu_custom_call.1} parent=171 // pred_check
          %p1636 = pneg %p695
        $region266: #{tpu_custom_call.1} parent=171 // pred_check_branch
          %1638 = sbr.rel (%p1636) target = $region268
        $region267: #{tpu_custom_call.1} parent=171 // pred_region
          %1639 = dma.done [#allocation43], 16
        $region268: #{tpu_custom_call.1} parent=171 // pred_fallthru
          _
        // Predicated region
        $region269: #{tpu_custom_call.1} parent=171 // pred_check
          %p1640 = pneg %p716
        $region270: #{tpu_custom_call.1} parent=171 // pred_check_branch
          %1642 = sbr.rel (%p1640) target = $region272
        $region271: #{tpu_custom_call.1} parent=171 // pred_region
          %1643 = dma.done [#allocation43], 16
        $region272: #{tpu_custom_call.1} parent=171 // pred_fallthru
          _
        // Predicated region
        $region273: #{tpu_custom_call.1} parent=171 // pred_check
          %p1644 = pneg %p737
        $region274: #{tpu_custom_call.1} parent=171 // pred_check_branch
          %1646 = sbr.rel (%p1644) target = $region276
        $region275: #{tpu_custom_call.1} parent=171 // pred_region
          %1647 = dma.done [#allocation46], 16
        $region276: #{tpu_custom_call.1} parent=171 // pred_fallthru
          _
        // Predicated region
        $region277: #{tpu_custom_call.1} parent=171 // pred_check
          %p1648 = pneg %p758
        $region278: #{tpu_custom_call.1} parent=171 // pred_check_branch
          %1650 = sbr.rel (%p1648) target = $region280
        $region279: #{tpu_custom_call.1} parent=171 // pred_region
          %1651 = dma.done [#allocation46], 768
        $region280: #{tpu_custom_call.1} parent=171 // pred_fallthru
          _
        // Predicated region
        $region281: #{tpu_custom_call.1} parent=171 // pred_check
          %p1652 = pneg %p779
        $region282: #{tpu_custom_call.1} parent=171 // pred_check_branch
          %1654 = sbr.rel (%p1652) target = $region284
        $region283: #{tpu_custom_call.1} parent=171 // pred_region
          %1655 = dma.done [#allocation49], 16
        $region284: #{tpu_custom_call.1} parent=171 // pred_fallthru
          _
        // Predicated region
        $region285: #{tpu_custom_call.1} parent=171 // pred_check
          %p1656 = pneg %p800
        $region286: #{tpu_custom_call.1} parent=171 // pred_check_branch
          %1658 = sbr.rel (%p1656) target = $region288
        $region287: #{tpu_custom_call.1} parent=171 // pred_region
          %1659 = dma.done [#allocation49], 16
        $region288: #{tpu_custom_call.1} parent=171 // pred_fallthru
          _
        // Predicated region
        $region289: #{tpu_custom_call.1} parent=171 // pred_check
          %p1660 = pneg %p821
        $region290: #{tpu_custom_call.1} parent=171 // pred_check_branch
          %1662 = sbr.rel (%p1660) target = $region292
        $region291: #{tpu_custom_call.1} parent=171 // pred_region
          %1663 = dma.done [#allocation52], 16
        $region292: #{tpu_custom_call.1} parent=171 // pred_fallthru
          _
        // Predicated region
        $region293: #{tpu_custom_call.1} parent=171 // pred_check
          %p1664 = pneg %p842
        $region294: #{tpu_custom_call.1} parent=171 // pred_check_branch
          %1666 = sbr.rel (%p1664) target = $region296
        $region295: #{tpu_custom_call.1} parent=171 // pred_region
          %1667 = dma.done [#allocation52], 16
        $region296: #{tpu_custom_call.1} parent=171 // pred_fallthru
          _
        // Predicated region
        $region297: #{tpu_custom_call.1} parent=171 // pred_check
          %p1668 = pneg %p884
        $region298: #{tpu_custom_call.1} parent=171 // pred_check_branch
          %1670 = sbr.rel (%p1668) target = $region300
        $region299: #{tpu_custom_call.1} parent=171 // pred_region
          %1671 = dma.done [#allocation55], 16
        $region300: #{tpu_custom_call.1} parent=171 // pred_fallthru
          _
        // Predicated region
        $region301: #{tpu_custom_call.1} parent=171 // pred_check
          %p1672 = pneg %p905
        $region302: #{tpu_custom_call.1} parent=171 // pred_check_branch
          %1674 = sbr.rel (%p1672) target = $region304
        $region303: #{tpu_custom_call.1} parent=171 // pred_region
          %1675 = dma.done [#allocation55], 16
        $region304: #{tpu_custom_call.1} parent=171 // pred_fallthru
          _
        // Predicated region
        $region305: #{tpu_custom_call.1} parent=171 // pred_check
          %p1676 = pneg %p926
        $region306: #{tpu_custom_call.1} parent=171 // pred_check_branch
          %1678 = sbr.rel (%p1676) target = $region308
        $region307: #{tpu_custom_call.1} parent=171 // pred_region
          %1679 = dma.done [#allocation58], 128
        $region308: #{tpu_custom_call.1} parent=171 // pred_fallthru
          _
        // Predicated region
        $region309: #{tpu_custom_call.1} parent=171 // pred_check
          %p1680 = pneg %p947
        $region310: #{tpu_custom_call.1} parent=171 // pred_check_branch
          %1682 = sbr.rel (%p1680) target = $region312
        $region311: #{tpu_custom_call.1} parent=171 // pred_region
          %1683 = dma.done [#allocation58], 128
        $region312: #{tpu_custom_call.1} parent=171 // pred_fallthru
          _
        %s1684 = sand.u32 %s142, 1
        %s1685 = scalar_lea.sflag [#allocation7], %s1684
        %s1686 = sand.u32 %s142, 1
        %s1687 = smul.addr %s1686, 8
        %s1688 = scalar_lea.vmem [#allocation6], %s1687
        %p1689 = pneg %p155
        %p1690 = pneg %p152
        %s1691 = sand.u32 %s134, 1
        %s1692 = scalar_lea.sflag [#allocation10], %s1691
        %s1693 = sand.u32 %s168, 1
        %s1694 = smul.addr %s1693, 32
        %s1695 = scalar_lea.vmem [#allocation9], %s1694
        %p1696 = pneg %p181
        %p1697 = pneg %p178
        %s1698 = sand.u32 %s134, 1
        %s1699 = scalar_lea.sflag [#allocation10], %s1698
        %s1700 = sand.u32 %s194, 1
        %s1701 = smul.addr %s1700, 32
        %s1702 = scalar_lea.vmem [#allocation11], %s1701
        %p1703 = pneg %p207
        %p1704 = pneg %p204
        %s1705 = sand.u32 %s134, 1
        %s1706 = scalar_lea.sflag [#allocation13], %s1705
        %s1707 = sand.u32 %s220, 1
        %s1708 = smul.addr %s1707, 32
        %s1709 = scalar_lea.vmem [#allocation12], %s1708
        %p1710 = pneg %p233
        %p1711 = pneg %p230
        %p1712 = pneg %p254
        %p1713 = pneg %p251
        %p1714 = pneg %p275
        %p1715 = pneg %p272
        %p1716 = pneg %p296
        %p1717 = pneg %p293
        %p1718 = pneg %p317
        %p1719 = pneg %p314
        %p1720 = pneg %p338
        %p1721 = pneg %p335
        %p1722 = pneg %p359
        %p1723 = pneg %p356
        %p1724 = pneg %p380
        %p1725 = pneg %p377
        %p1726 = pneg %p401
        %p1727 = pneg %p398
        %p1728 = pneg %p422
        %p1729 = pneg %p419
        %p1730 = pneg %p443
        %p1731 = pneg %p440
        %p1732 = pneg %p464
        %p1733 = pneg %p461
        %p1734 = pneg %p485
        %p1735 = pneg %p482
        %p1736 = pneg %p506
        %p1737 = pneg %p503
        %p1738 = pneg %p527
        %p1739 = pneg %p524
        %p1740 = pneg %p548
        %p1741 = pneg %p545
        %p1742 = pneg %p569
        %p1743 = pneg %p566
        %p1744 = pneg %p590
        %p1745 = pneg %p587
        %p1746 = pneg %p611
        %p1747 = pneg %p608
        %p1748 = pneg %p632
        %p1749 = pneg %p629
        %p1750 = pneg %p653
        %p1751 = pneg %p650
        %p1752 = pneg %p674
        %p1753 = pneg %p671
        %p1754 = pneg %p695
        %p1755 = pneg %p692
        %p1756 = pneg %p716
        %p1757 = pneg %p713
        %p1758 = pneg %p737
        %p1759 = pneg %p734
        %p1760 = pneg %p758
        %p1761 = pneg %p755
        %p1762 = pneg %p779
        %p1763 = pneg %p776
        %p1764 = pneg %p800
        %p1765 = pneg %p797
        %p1766 = pneg %p821
        %p1767 = pneg %p818
        %p1768 = pneg %p842
        %p1769 = pneg %p839
        %p1770 = pneg %p863
        %p1771 = pneg %p860
        %p1772 = pneg %p884
        %p1773 = pneg %p881
        %p1774 = pneg %p905
        %p1775 = pneg %p902
        %p1776 = pneg %p926
        %p1777 = pneg %p923
        %p1778 = pneg %p947
        %p1779 = pneg %p944
        %p1780 = pneg %p973
        %p1781 = pneg %p970
        %s1782 = sand.u32 %s960, 1
        %s1783 = scalar_lea.sflag [#allocation8], %s1782
        %s1784 = sand.u32 %s960, 1
        %s1785 = smul.addr %s1784, 32
        %s1786 = scalar_lea.vmem [#allocation60], %s1785
        %p1787 = pneg %p999
        %p1788 = pneg %p996
        %s1789 = sand.u32 %s134, 1
        %s1790 = scalar_lea.sflag [#allocation62], %s1789
        %s1791 = sand.u32 %s986, 1
        %s1792 = scalar_lea.vmem [#allocation61], %s1791
        %p1793 = pneg %p1025
        %p1794 = pneg %p1022
        %s1795 = sand.u32 %s134, 1
        %s1796 = scalar_lea.sflag [#allocation62], %s1795
        %s1797 = sand.u32 %s1012, 1
        %s1798 = scalar_lea.vmem [#allocation63], %s1797
        %p1799 = pneg %p1051
        %p1800 = pneg %p1048
        %s1801 = sand.u32 %s1038, 1
        %s1802 = scalar_lea.sflag [#allocation65], %s1801
        %s1803 = sand.u32 %s1038, 1
        %s1804 = scalar_lea.vmem [#allocation64], %s1803
        %v1806 = vld [vmem:[%s1528] sm:$0xff]
        %vm1807 = vcmask 253952
        %1808 = vst.msk [vmem:[#allocation2] sm:$0x1] %vm1807, 0.0
        %1809 = vst.msk [vmem:[#allocation2 + $0x9] sm:$0x1] %vm1807, 0.0
        %vm1810 = vcmask 261120
        %1811 = vst.msk [vmem:[#allocation2 + $0x1] sm:$0xff] %vm1810, %v1806
        %v1812 = vld [vmem:[#allocation2] sm:$0xff]
        %v1813 = vpack.c.bf16 %v1812, %v1812
        %v1814 = vld [vmem:[#allocation14] sm:$0xf]
        %v1815 = vld [vmem:[#allocation14 + $0x4] sm:$0xf]
        %v1816 = vld [vmem:[#allocation14 + $0x8] sm:$0xf]
        %v1817 = vld [vmem:[#allocation14 + $0xc] sm:$0xf]
        %v1818 = vld [vmem:[#allocation2 + $0x1] sm:$0xff]
        %v1819 = vpack.c.bf16 %v1818, %v1818
        %s1820 = scalar_lea.vmem [#allocation14], 16
        %v1821 = vld [vmem:[%s1820] sm:$0xf]
        %v1822 = vld [vmem:[%s1820 + $0x4] sm:$0xf]
        %v1823 = vld [vmem:[%s1820 + $0x8] sm:$0xf]
        %v1824 = vld [vmem:[%s1820 + $0xc] sm:$0xf]
        %v1829 = vunpack.c.l.b16 %v1821
        %v1830 = vunpack.c.l.b16 %v1822
        %v1831 = vunpack.c.l.b16 %v1823
        %v1832 = vunpack.c.l.b16 %v1824
        %v1833 = vpack.c.b16 %v1830, %v1829
        %v1834 = vpack.c.b16 %v1832, %v1831
        %v1838 = vsel %vm1810, %v1819, 0
        %1840 = vmatprep.subr.bf16.mxu0 0
        %1841 = vmatpush1.bf16.msra.mxu0 %v1833
        %1842 = vmatprep.subr.bf16.mxu0 0
        %1843 = vmatpush1.bf16.msra.mxu0 %v1834
        %1844 = vmatprep.subr.bf16.mxu0 0
        %1845 = vmatpush1.bf16.msra.mxu0 0
        %1846 = vmatprep.subr.bf16.mxu0 0
        %1847 = vmatpush1.bf16.msra.mxu0 0
        %1848 = vmatprep.subr.bf16.mxu0 0
        %1849 = vmatpush1.bf16.msra.mxu0 0
        %1850 = vmatprep.subr.bf16.mxu0 0
        %1851 = vmatpush1.bf16.msra.mxu0 0
        %1852 = vmatprep.subr.bf16.mxu0 0
        %1853 = vmatpush1.bf16.msra.mxu0 0
        %1854 = vmatprep.subr.bf16.mxu0 0
        %1855 = vmatpush1.bf16.msra.mxu0 0
        %1856 = vmatprep.subr.bf16.mxu0 0
        %1857 = vmatpush1.bf16.msra.mxu0 0
        %1858 = vmatprep.subr.bf16.mxu0 0
        %1859 = vmatpush1.bf16.msra.mxu0 0
        %1860 = vmatprep.subr.bf16.mxu0 0
        %1861 = vmatpush1.bf16.msra.mxu0 0
        %1862 = vmatprep.subr.bf16.mxu0 0
        %1863 = vmatpush1.bf16.msra.mxu0 0
        %1864 = vmatprep.subr.bf16.mxu0 0
        %1865 = vmatpush1.bf16.msra.mxu0 0
        %1866 = vmatprep.subr.bf16.mxu0 0
        %1867 = vmatpush1.bf16.msra.mxu0 0
        %1868 = vmatprep.subr.bf16.mxu0 0
        %1869 = vmatpush1.bf16.msra.mxu0 0
        %1870 = vmatprep.subr.bf16.mxu0 0
        %1871 = vmatpush1.bf16.msra.mxu0 0
        %1872 = vmatprep.mubr.bf16.mxu0 0
        %1873 = vmatmul.mubr.bf16.gmra.mrb[0].mxu0 %v1838
        %v1874 = vpop.f32.mrb[0].mxu0
        %v1875 = vadd.f32 0.0, %v1874
        %v1876 = vpop.f32.mrb[0].mxu0
        %v1877 = vpop.f32.mrb[0].mxu0
        %v1878 = vpop.f32.mrb[0].mxu0
        %1879 = vdwg.mxu0
        %v1884 = vunpack.c.l.b16 %v1814
        %v1885 = vunpack.c.l.b16 %v1815
        %v1886 = vunpack.c.l.b16 %v1816
        %v1887 = vunpack.c.l.b16 %v1817
        %v1888 = vpack.c.b16 %v1885, %v1884
        %v1889 = vpack.c.b16 %v1887, %v1886
        %v1893 = vsel %vm1810, %v1813, 0
        %1895 = vmatprep.subr.bf16.mxu0 0
        %1896 = vmatpush1.bf16.msra.mxu0 %v1888
        %1897 = vmatprep.subr.bf16.mxu0 0
        %1898 = vmatpush1.bf16.msra.mxu0 %v1889
        %1899 = vmatprep.subr.bf16.mxu0 0
        %1900 = vmatpush1.bf16.msra.mxu0 0
        %1901 = vmatprep.subr.bf16.mxu0 0
        %1902 = vmatpush1.bf16.msra.mxu0 0
        %1903 = vmatprep.subr.bf16.mxu0 0
        %1904 = vmatpush1.bf16.msra.mxu0 0
        %1905 = vmatprep.subr.bf16.mxu0 0
        %1906 = vmatpush1.bf16.msra.mxu0 0
        %1907 = vmatprep.subr.bf16.mxu0 0
        %1908 = vmatpush1.bf16.msra.mxu0 0
        %1909 = vmatprep.subr.bf16.mxu0 0
        %1910 = vmatpush1.bf16.msra.mxu0 0
        %1911 = vmatprep.subr.bf16.mxu0 0
        %1912 = vmatpush1.bf16.msra.mxu0 0
        %1913 = vmatprep.subr.bf16.mxu0 0
        %1914 = vmatpush1.bf16.msra.mxu0 0
        %1915 = vmatprep.subr.bf16.mxu0 0
        %1916 = vmatpush1.bf16.msra.mxu0 0
        %1917 = vmatprep.subr.bf16.mxu0 0
        %1918 = vmatpush1.bf16.msra.mxu0 0
        %1919 = vmatprep.subr.bf16.mxu0 0
        %1920 = vmatpush1.bf16.msra.mxu0 0
        %1921 = vmatprep.subr.bf16.mxu0 0
        %1922 = vmatpush1.bf16.msra.mxu0 0
        %1923 = vmatprep.subr.bf16.mxu0 0
        %1924 = vmatpush1.bf16.msra.mxu0 0
        %1925 = vmatprep.subr.bf16.mxu0 0
        %1926 = vmatpush1.bf16.msra.mxu0 0
        %1927 = vmatprep.mubr.bf16.mxu0 0
        %1928 = vmatmul.mubr.bf16.gmra.mrb[0].mxu0 %v1893
        %v1929 = vpop.f32.mrb[0].mxu0
        %v1930 = vadd.f32 %v1875, %v1929
        %v1931 = vpop.f32.mrb[0].mxu0
        %v1932 = vpop.f32.mrb[0].mxu0
        %v1933 = vpop.f32.mrb[0].mxu0
        %1934 = vdwg.mxu0
        %v1935 = vld [vmem:[#allocation2 + $0x2] sm:$0xff]
        %v1936 = vpack.c.bf16 %v1935, %v1935
        %s1937 = scalar_lea.vmem [#allocation14], 32
        %v1938 = vld [vmem:[%s1937] sm:$0xf]
        %v1939 = vld [vmem:[%s1937 + $0x4] sm:$0xf]
        %v1940 = vld [vmem:[%s1937 + $0x8] sm:$0xf]
        %v1941 = vld [vmem:[%s1937 + $0xc] sm:$0xf]
        %v1946 = vunpack.c.l.b16 %v1938
        %v1947 = vunpack.c.l.b16 %v1939
        %v1948 = vunpack.c.l.b16 %v1940
        %v1949 = vunpack.c.l.b16 %v1941
        %v1950 = vpack.c.b16 %v1947, %v1946
        %v1951 = vpack.c.b16 %v1949, %v1948
        %v1955 = vsel %vm1810, %v1936, 0
        %1957 = vmatprep.subr.bf16.mxu0 0
        %1958 = vmatpush1.bf16.msra.mxu0 %v1950
        %1959 = vmatprep.subr.bf16.mxu0 0
        %1960 = vmatpush1.bf16.msra.mxu0 %v1951
        %1961 = vmatprep.subr.bf16.mxu0 0
        %1962 = vmatpush1.bf16.msra.mxu0 0
        %1963 = vmatprep.subr.bf16.mxu0 0
        %1964 = vmatpush1.bf16.msra.mxu0 0
        %1965 = vmatprep.subr.bf16.mxu0 0
        %1966 = vmatpush1.bf16.msra.mxu0 0
        %1967 = vmatprep.subr.bf16.mxu0 0
        %1968 = vmatpush1.bf16.msra.mxu0 0
        %1969 = vmatprep.subr.bf16.mxu0 0
        %1970 = vmatpush1.bf16.msra.mxu0 0
        %1971 = vmatprep.subr.bf16.mxu0 0
        %1972 = vmatpush1.bf16.msra.mxu0 0
        %1973 = vmatprep.subr.bf16.mxu0 0
        %1974 = vmatpush1.bf16.msra.mxu0 0
        %1975 = vmatprep.subr.bf16.mxu0 0
        %1976 = vmatpush1.bf16.msra.mxu0 0
        %1977 = vmatprep.subr.bf16.mxu0 0
        %1978 = vmatpush1.bf16.msra.mxu0 0
        %1979 = vmatprep.subr.bf16.mxu0 0
        %1980 = vmatpush1.bf16.msra.mxu0 0
        %1981 = vmatprep.subr.bf16.mxu0 0
        %1982 = vmatpush1.bf16.msra.mxu0 0
        %1983 = vmatprep.subr.bf16.mxu0 0
        %1984 = vmatpush1.bf16.msra.mxu0 0
        %1985 = vmatprep.subr.bf16.mxu0 0
        %1986 = vmatpush1.bf16.msra.mxu0 0
        %1987 = vmatprep.subr.bf16.mxu0 0
        %1988 = vmatpush1.bf16.msra.mxu0 0
        %1989 = vmatprep.mubr.bf16.mxu0 0
        %1990 = vmatmul.mubr.bf16.gmra.mrb[0].mxu0 %v1955
        %v1991 = vpop.f32.mrb[0].mxu0
        %v1992 = vadd.f32 0.0, %v1991
        %v1993 = vpop.f32.mrb[0].mxu0
        %v1994 = vpop.f32.mrb[0].mxu0
        %v1995 = vpop.f32.mrb[0].mxu0
        %1996 = vdwg.mxu0
        %v1997 = vadd.f32 %v1930, %v1992
        %v1998 = vld [vmem:[#allocation15] sm:$0x1]
        %v2000 = vlaneseq
        %v2001 = vshrl.u32 %v2000, 7
        %v2002 = vsub.s32 0, %v2001
        %v2003 = vrot.slane %v1998, %v2002
        %v2005 = vadd.f32 %v1997, %v2003
        %v2006 = vmax.f32 %v2005, 0.0
        %v2007 = vsel %vm1810, %v2006, 0.0
        %2008 = vadd.xlane.f32.xlu0 %v2007
        %v2009 = vpop.xlane.xlu0 %2008
        %v2010 = vrcp.pop 32.0
        %v2011 = vmul.f32 %v2009, %v2010
        %v2012 = vsub.f32 %v2006, %v2011
        %v2013 = vmul.f32 %v2012, %v2012
        %v2014 = vsel %vm1810, %v2013, 0.0
        %2015 = vadd.xlane.f32.xlu0 %v2014
        %v2016 = vpop.xlane.xlu0 %2015
        %v2017 = vmul.f32 %v2016, %v2010
        %v2018 = vadd.f32 %v2017, 1e-05
        %v2019 = vrsqrt.pop %v2018
        %v2020 = vmul.f32 %v2012, %v2019
        %v2021 = vld [vmem:[#allocation17] sm:$0x1]
        %v2023 = vlaneseq
        %v2024 = vshrl.u32 %v2023, 7
        %v2025 = vsub.s32 0, %v2024
        %v2026 = vrot.slane %v2021, %v2025
        %v2028 = vmul.f32 %v2020, %v2026
        %v2029 = vld [vmem:[#allocation18] sm:$0x1]
        %v2031 = vlaneseq
        %v2032 = vshrl.u32 %v2031, 7
        %v2033 = vsub.s32 0, %v2032
        %v2034 = vrot.slane %v2029, %v2033
        %v2036 = vadd.f32 %v2028, %v2034
        %2037 = vst.msk [vmem:[#allocation2] sm:$0x1] %vm1807, 0.0
        %2038 = vst.msk [vmem:[#allocation2 + $0x9] sm:$0x1] %vm1807, 0.0
        %2039 = vst.msk [vmem:[#allocation2 + $0x1] sm:$0xff] %vm1810, %v2036
        %v2040 = vld [vmem:[#allocation2] sm:$0xff]
        %v2041 = vpack.c.bf16 %v2040, %v2040
        %v2042 = vld [vmem:[#allocation20] sm:$0xf]
        %v2043 = vld [vmem:[#allocation20 + $0x4] sm:$0xf]
        %v2044 = vld [vmem:[#allocation20 + $0x8] sm:$0xf]
        %v2045 = vld [vmem:[#allocation20 + $0xc] sm:$0xf]
        %v2046 = vld [vmem:[#allocation2 + $0x1] sm:$0xff]
        %v2047 = vpack.c.bf16 %v2046, %v2046
        %s2048 = scalar_lea.vmem [#allocation20], 16
        %v2049 = vld [vmem:[%s2048] sm:$0xf]
        %v2050 = vld [vmem:[%s2048 + $0x4] sm:$0xf]
        %v2051 = vld [vmem:[%s2048 + $0x8] sm:$0xf]
        %v2052 = vld [vmem:[%s2048 + $0xc] sm:$0xf]
        %v2057 = vunpack.c.l.b16 %v2049
        %v2058 = vunpack.c.l.b16 %v2050
        %v2059 = vunpack.c.l.b16 %v2051
        %v2060 = vunpack.c.l.b16 %v2052
        %v2061 = vpack.c.b16 %v2058, %v2057
        %v2062 = vpack.c.b16 %v2060, %v2059
        %v2066 = vsel %vm1810, %v2047, 0
        %2068 = vmatprep.subr.bf16.mxu0 0
        %2069 = vmatpush1.bf16.msra.mxu0 %v2061
        %2070 = vmatprep.subr.bf16.mxu0 0
        %2071 = vmatpush1.bf16.msra.mxu0 %v2062
        %2072 = vmatprep.subr.bf16.mxu0 0
        %2073 = vmatpush1.bf16.msra.mxu0 0
        %2074 = vmatprep.subr.bf16.mxu0 0
        %2075 = vmatpush1.bf16.msra.mxu0 0
        %2076 = vmatprep.subr.bf16.mxu0 0
        %2077 = vmatpush1.bf16.msra.mxu0 0
        %2078 = vmatprep.subr.bf16.mxu0 0
        %2079 = vmatpush1.bf16.msra.mxu0 0
        %2080 = vmatprep.subr.bf16.mxu0 0
        %2081 = vmatpush1.bf16.msra.mxu0 0
        %2082 = vmatprep.subr.bf16.mxu0 0
        %2083 = vmatpush1.bf16.msra.mxu0 0
        %2084 = vmatprep.subr.bf16.mxu0 0
        %2085 = vmatpush1.bf16.msra.mxu0 0
        %2086 = vmatprep.subr.bf16.mxu0 0
        %2087 = vmatpush1.bf16.msra.mxu0 0
        %2088 = vmatprep.subr.bf16.mxu0 0
        %2089 = vmatpush1.bf16.msra.mxu0 0
        %2090 = vmatprep.subr.bf16.mxu0 0
        %2091 = vmatpush1.bf16.msra.mxu0 0
        %2092 = vmatprep.subr.bf16.mxu0 0
        %2093 = vmatpush1.bf16.msra.mxu0 0
        %2094 = vmatprep.subr.bf16.mxu0 0
        %2095 = vmatpush1.bf16.msra.mxu0 0
        %2096 = vmatprep.subr.bf16.mxu0 0
        %2097 = vmatpush1.bf16.msra.mxu0 0
        %2098 = vmatprep.subr.bf16.mxu0 0
        %2099 = vmatpush1.bf16.msra.mxu0 0
        %2100 = vmatprep.mubr.bf16.mxu0 0
        %2101 = vmatmul.mubr.bf16.gmra.mrb[0].mxu0 %v2066
        %v2102 = vpop.f32.mrb[0].mxu0
        %v2103 = vadd.f32 0.0, %v2102
        %v2104 = vpop.f32.mrb[0].mxu0
        %v2105 = vpop.f32.mrb[0].mxu0
        %v2106 = vpop.f32.mrb[0].mxu0
        %2107 = vdwg.mxu0
        %v2112 = vunpack.c.l.b16 %v2042
        %v2113 = vunpack.c.l.b16 %v2043
        %v2114 = vunpack.c.l.b16 %v2044
        %v2115 = vunpack.c.l.b16 %v2045
        %v2116 = vpack.c.b16 %v2113, %v2112
        %v2117 = vpack.c.b16 %v2115, %v2114
        %v2121 = vsel %vm1810, %v2041, 0
        %2123 = vmatprep.subr.bf16.mxu0 0
        %2124 = vmatpush1.bf16.msra.mxu0 %v2116
        %2125 = vmatprep.subr.bf16.mxu0 0
        %2126 = vmatpush1.bf16.msra.mxu0 %v2117
        %2127 = vmatprep.subr.bf16.mxu0 0
        %2128 = vmatpush1.bf16.msra.mxu0 0
        %2129 = vmatprep.subr.bf16.mxu0 0
        %2130 = vmatpush1.bf16.msra.mxu0 0
        %2131 = vmatprep.subr.bf16.mxu0 0
        %2132 = vmatpush1.bf16.msra.mxu0 0
        %2133 = vmatprep.subr.bf16.mxu0 0
        %2134 = vmatpush1.bf16.msra.mxu0 0
        %2135 = vmatprep.subr.bf16.mxu0 0
        %2136 = vmatpush1.bf16.msra.mxu0 0
        %2137 = vmatprep.subr.bf16.mxu0 0
        %2138 = vmatpush1.bf16.msra.mxu0 0
        %2139 = vmatprep.subr.bf16.mxu0 0
        %2140 = vmatpush1.bf16.msra.mxu0 0
        %2141 = vmatprep.subr.bf16.mxu0 0
        %2142 = vmatpush1.bf16.msra.mxu0 0
        %2143 = vmatprep.subr.bf16.mxu0 0
        %2144 = vmatpush1.bf16.msra.mxu0 0
        %2145 = vmatprep.subr.bf16.mxu0 0
        %2146 = vmatpush1.bf16.msra.mxu0 0
        %2147 = vmatprep.subr.bf16.mxu0 0
        %2148 = vmatpush1.bf16.msra.mxu0 0
        %2149 = vmatprep.subr.bf16.mxu0 0
        %2150 = vmatpush1.bf16.msra.mxu0 0
        %2151 = vmatprep.subr.bf16.mxu0 0
        %2152 = vmatpush1.bf16.msra.mxu0 0
        %2153 = vmatprep.subr.bf16.mxu0 0
        %2154 = vmatpush1.bf16.msra.mxu0 0
        %2155 = vmatprep.mubr.bf16.mxu0 0
        %2156 = vmatmul.mubr.bf16.gmra.mrb[0].mxu0 %v2121
        %v2157 = vpop.f32.mrb[0].mxu0
        %v2158 = vadd.f32 %v2103, %v2157
        %v2159 = vpop.f32.mrb[0].mxu0
        %v2160 = vpop.f32.mrb[0].mxu0
        %v2161 = vpop.f32.mrb[0].mxu0
        %2162 = vdwg.mxu0
        %v2163 = vld [vmem:[#allocation2 + $0x2] sm:$0xff]
        %v2164 = vpack.c.bf16 %v2163, %v2163
        %s2165 = scalar_lea.vmem [#allocation20], 32
        %v2166 = vld [vmem:[%s2165] sm:$0xf]
        %v2167 = vld [vmem:[%s2165 + $0x4] sm:$0xf]
        %v2168 = vld [vmem:[%s2165 + $0x8] sm:$0xf]
        %v2169 = vld [vmem:[%s2165 + $0xc] sm:$0xf]
        %v2174 = vunpack.c.l.b16 %v2166
        %v2175 = vunpack.c.l.b16 %v2167
        %v2176 = vunpack.c.l.b16 %v2168
        %v2177 = vunpack.c.l.b16 %v2169
        %v2178 = vpack.c.b16 %v2175, %v2174
        %v2179 = vpack.c.b16 %v2177, %v2176
        %v2183 = vsel %vm1810, %v2164, 0
        %2185 = vmatprep.subr.bf16.mxu0 0
        %2186 = vmatpush1.bf16.msra.mxu0 %v2178
        %2187 = vmatprep.subr.bf16.mxu0 0
        %2188 = vmatpush1.bf16.msra.mxu0 %v2179
        %2189 = vmatprep.subr.bf16.mxu0 0
        %2190 = vmatpush1.bf16.msra.mxu0 0
        %2191 = vmatprep.subr.bf16.mxu0 0
        %2192 = vmatpush1.bf16.msra.mxu0 0
        %2193 = vmatprep.subr.bf16.mxu0 0
        %2194 = vmatpush1.bf16.msra.mxu0 0
        %2195 = vmatprep.subr.bf16.mxu0 0
        %2196 = vmatpush1.bf16.msra.mxu0 0
        %2197 = vmatprep.subr.bf16.mxu0 0
        %2198 = vmatpush1.bf16.msra.mxu0 0
        %2199 = vmatprep.subr.bf16.mxu0 0
        %2200 = vmatpush1.bf16.msra.mxu0 0
        %2201 = vmatprep.subr.bf16.mxu0 0
        %2202 = vmatpush1.bf16.msra.mxu0 0
        %2203 = vmatprep.subr.bf16.mxu0 0
        %2204 = vmatpush1.bf16.msra.mxu0 0
        %2205 = vmatprep.subr.bf16.mxu0 0
        %2206 = vmatpush1.bf16.msra.mxu0 0
        %2207 = vmatprep.subr.bf16.mxu0 0
        %2208 = vmatpush1.bf16.msra.mxu0 0
        %2209 = vmatprep.subr.bf16.mxu0 0
        %2210 = vmatpush1.bf16.msra.mxu0 0
        %2211 = vmatprep.subr.bf16.mxu0 0
        %2212 = vmatpush1.bf16.msra.mxu0 0
        %2213 = vmatprep.subr.bf16.mxu0 0
        %2214 = vmatpush1.bf16.msra.mxu0 0
        %2215 = vmatprep.subr.bf16.mxu0 0
        %2216 = vmatpush1.bf16.msra.mxu0 0
        %2217 = vmatprep.mubr.bf16.mxu0 0
        %2218 = vmatmul.mubr.bf16.gmra.mrb[0].mxu0 %v2183
        %v2219 = vpop.f32.mrb[0].mxu0
        %v2220 = vadd.f32 0.0, %v2219
        %v2221 = vpop.f32.mrb[0].mxu0
        %v2222 = vpop.f32.mrb[0].mxu0
        %v2223 = vpop.f32.mrb[0].mxu0
        %2224 = vdwg.mxu0
        %v2225 = vadd.f32 %v2158, %v2220
        %v2226 = vld [vmem:[#allocation21] sm:$0x1]
        %v2228 = vlaneseq
        %v2229 = vshrl.u32 %v2228, 7
        %v2230 = vsub.s32 0, %v2229
        %v2231 = vrot.slane %v2226, %v2230
        %v2233 = vadd.f32 %v2225, %v2231
        %v2234 = vmax.f32 %v2233, 0.0
        %v2235 = vsel %vm1810, %v2234, 0.0
        %2236 = vadd.xlane.f32.xlu0 %v2235
        %v2237 = vpop.xlane.xlu0 %2236
        %v2238 = vmul.f32 %v2237, %v2010
        %v2239 = vsub.f32 %v2234, %v2238
        %v2240 = vmul.f32 %v2239, %v2239
        %v2241 = vsel %vm1810, %v2240, 0.0
        %2242 = vadd.xlane.f32.xlu0 %v2241
        %v2243 = vpop.xlane.xlu0 %2242
        %v2244 = vmul.f32 %v2243, %v2010
        %v2245 = vadd.f32 %v2244, 1e-05
        %v2246 = vrsqrt.pop %v2245
        %v2247 = vmul.f32 %v2239, %v2246
        %v2248 = vld [vmem:[#allocation23] sm:$0x1]
        %v2250 = vlaneseq
        %v2251 = vshrl.u32 %v2250, 7
        %v2252 = vsub.s32 0, %v2251
        %v2253 = vrot.slane %v2248, %v2252
        %v2255 = vmul.f32 %v2247, %v2253
        %v2256 = vld [vmem:[#allocation24] sm:$0x1]
        %v2258 = vlaneseq
        %v2259 = vshrl.u32 %v2258, 7
        %v2260 = vsub.s32 0, %v2259
        %v2261 = vrot.slane %v2256, %v2260
        %v2263 = vadd.f32 %v2255, %v2261
        %v2264 = vld [vmem:[#allocation26] sm:$0x1]
        %v2265 = vld [vmem:[#allocation3] sm:$0x1]
        %2267 = vset.pattern.permute.xlu0 0
        %2268 = vperm.xlu0 %2267, %v2265
        %v2269 = vpop.permute.xlu0 %2268
        %v2271 = vlaneseq
        %v2272 = vshrl.u32 %v2271, 7
        %v2273 = vsub.s32 0, %v2272
        %v2274 = vrot.slane %v2269, %v2273
        %v2276 = vsel %vm1810, %v2264, 0
        %v2279 = vsel %vm1810, %v2263, 0
        %2281 = vmatprep.subr.mxu0 0.0
        %2282 = vmatpush1.xpose.msra.mxu0 %v2279
        %2283 = vmatprep.subr.mxu0 0.0
        %2284 = vmatpush1.xpose.msra.mxu0 0.0
        %2285 = vmatprep.subr.mxu0 0.0
        %2286 = vmatpush1.xpose.msra.mxu0 0.0
        %2287 = vmatprep.subr.mxu0 0.0
        %2288 = vmatpush1.xpose.msra.mxu0 0.0
        %2289 = vmatprep.subr.mxu0 0.0
        %2290 = vmatpush1.xpose.msra.mxu0 0.0
        %2291 = vmatprep.subr.mxu0 0.0
        %2292 = vmatpush1.xpose.msra.mxu0 0.0
        %2293 = vmatprep.subr.mxu0 0.0
        %2294 = vmatpush1.xpose.msra.mxu0 0.0
        %2295 = vmatprep.subr.mxu0 0.0
        %2296 = vmatpush1.xpose.msra.mxu0 0.0
        %2297 = vmatprep.subr.mxu0 0.0
        %2298 = vmatpush1.xpose.msra.mxu0 0.0
        %2299 = vmatprep.subr.mxu0 0.0
        %2300 = vmatpush1.xpose.msra.mxu0 0.0
        %2301 = vmatprep.subr.mxu0 0.0
        %2302 = vmatpush1.xpose.msra.mxu0 0.0
        %2303 = vmatprep.subr.mxu0 0.0
        %2304 = vmatpush1.xpose.msra.mxu0 0.0
        %2305 = vmatprep.subr.mxu0 0.0
        %2306 = vmatpush1.xpose.msra.mxu0 0.0
        %2307 = vmatprep.subr.mxu0 0.0
        %2308 = vmatpush1.xpose.msra.mxu0 0.0
        %2309 = vmatprep.subr.mxu0 0.0
        %2310 = vmatpush1.xpose.msra.mxu0 0.0
        %2311 = vmatprep.subr.mxu0 0.0
        %2312 = vmatpush1.xpose.msra.mxu0 0.0
        %2313 = vmatprep.subr.mxu0 0.0
        %2314 = vmatpush1.xpose.msra.mxu0 0.0
        %2315 = vmatprep.subr.mxu0 0.0
        %2316 = vmatpush1.xpose.msra.mxu0 0.0
        %2317 = vmatprep.subr.mxu0 0.0
        %2318 = vmatpush1.xpose.msra.mxu0 0.0
        %2319 = vmatprep.subr.mxu0 0.0
        %2320 = vmatpush1.xpose.msra.mxu0 0.0
        %2321 = vmatprep.subr.mxu0 0.0
        %2322 = vmatpush1.xpose.msra.mxu0 0.0
        %2323 = vmatprep.subr.mxu0 0.0
        %2324 = vmatpush1.xpose.msra.mxu0 0.0
        %2325 = vmatprep.subr.mxu0 0.0
        %2326 = vmatpush1.xpose.msra.mxu0 0.0
        %2327 = vmatprep.subr.mxu0 0.0
        %2328 = vmatpush1.xpose.msra.mxu0 0.0
        %2329 = vmatprep.subr.mxu0 0.0
        %2330 = vmatpush1.xpose.msra.mxu0 0.0
        %2331 = vmatprep.subr.mxu0 0.0
        %2332 = vmatpush1.xpose.msra.mxu0 0.0
        %2333 = vmatprep.subr.mxu0 0.0
        %2334 = vmatpush1.xpose.msra.mxu0 0.0
        %2335 = vmatprep.subr.mxu0 0.0
        %2336 = vmatpush1.xpose.msra.mxu0 0.0
        %2337 = vmatprep.subr.mxu0 0.0
        %2338 = vmatpush1.xpose.msra.mxu0 0.0
        %2339 = vmatprep.subr.mxu0 0.0
        %2340 = vmatpush1.xpose.msra.mxu0 0.0
        %2341 = vmatprep.subr.mxu0 0.0
        %2342 = vmatpush1.xpose.msra.mxu0 0.0
        %2343 = vmatprep.subr.mxu0 0.0
        %2344 = vmatpush1.xpose.msra.mxu0 0.0
        %2345 = vmatprep.mubr.f32.mxu0 0.0
        %2346 = vmatmul.mubr.f32.gmra.mrb[0].mxu0 %v2276
        %v2347 = vpop.f32.mrb[0].mxu0
        %v2348 = vadd.f32 %v2274, %v2347
        %v2349 = vpop.f32.mrb[0].mxu0
        %2350 = vdwg.mxu0
        %vm2351 = vcmask 57344
        %2352 = vst.msk [vmem:[%s1792] sm:$0x1] %vm2351, %v2348
        %v2353 = vlaneseq
        %v2354 = vand.u32 %v2353, 127
        %v2355 = vld [vmem:[%s1537] sm:$0xff]
        %v2356 = vld [vmem:[%s1537 + $0x8] sm:$0xff]
        %v2357 = vld [vmem:[%s1537 + $0x10] sm:$0xff]
        %v2358 = vld [vmem:[%s1537 + $0x18] sm:$0xff]
        %2359 = vset.pattern.permute.xlu0 0
        %2360 = vperm.xlu0 %2359, %v2355
        %v2361 = vpop.permute.xlu0 %2360
        %2362 = vset.pattern.permute.xlu0 0
        %2363 = vperm.xlu0 %2362, %v2356
        %v2364 = vpop.permute.xlu0 %2363
        %2365 = vset.pattern.permute.xlu0 0
        %2366 = vperm.xlu0 %2365, %v2357
        %v2367 = vpop.permute.xlu0 %2366
        %2368 = vset.pattern.permute.xlu0 0
        %2369 = vperm.xlu0 %2368, %v2358
        %v2370 = vpop.permute.xlu0 %2369
        %vm2371 = vcmp.eq.s32.totalorder %v2361, %v2354
        %vm2372 = vcmp.eq.s32.totalorder %v2364, %v2354
        %vm2373 = vcmp.eq.s32.totalorder %v2367, %v2354
        %vm2374 = vcmp.eq.s32.totalorder %v2370, %v2354
        %v2375 = vsel %vm2371, 1, 0
        %v2376 = vsel %vm2372, 1, 0
        %v2377 = vsel %vm2373, 1, 0
        %v2378 = vsel %vm2374, 1, 0
        %v2379 = vcvt.s32.f32 %v2375
        %v2380 = vcvt.s32.f32 %v2376
        %v2381 = vcvt.s32.f32 %v2377
        %v2382 = vcvt.s32.f32 %v2378
        %vm2383 = vcmask 64512
        %v2385 = vsel %vm2383, %v2379, 0
        %v2388 = vsel %vm2383, %v2380, 0
        %v2391 = vsel %vm2383, %v2381, 0
        %v2394 = vsel %vm2383, %v2382, 0
        %2396 = vmatprep.subr.mxu0 0.0
        %2397 = vmatpush1.msra.mxu0 %v1806
        %2398 = vmatprep.subr.mxu0 0.0
        %2399 = vmatpush1.msra.mxu0 0.0
        %2400 = vmatprep.subr.mxu0 0.0
        %2401 = vmatpush1.msra.mxu0 0.0
        %2402 = vmatprep.subr.mxu0 0.0
        %2403 = vmatpush1.msra.mxu0 0.0
        %2404 = vmatprep.subr.mxu0 0.0
        %2405 = vmatpush1.msra.mxu0 0.0
        %2406 = vmatprep.subr.mxu0 0.0
        %2407 = vmatpush1.msra.mxu0 0.0
        %2408 = vmatprep.subr.mxu0 0.0
        %2409 = vmatpush1.msra.mxu0 0.0
        %2410 = vmatprep.subr.mxu0 0.0
        %2411 = vmatpush1.msra.mxu0 0.0
        %2412 = vmatprep.subr.mxu0 0.0
        %2413 = vmatpush1.msra.mxu0 0.0
        %2414 = vmatprep.subr.mxu0 0.0
        %2415 = vmatpush1.msra.mxu0 0.0
        %2416 = vmatprep.subr.mxu0 0.0
        %2417 = vmatpush1.msra.mxu0 0.0
        %2418 = vmatprep.subr.mxu0 0.0
        %2419 = vmatpush1.msra.mxu0 0.0
        %2420 = vmatprep.subr.mxu0 0.0
        %2421 = vmatpush1.msra.mxu0 0.0
        %2422 = vmatprep.subr.mxu0 0.0
        %2423 = vmatpush1.msra.mxu0 0.0
        %2424 = vmatprep.subr.mxu0 0.0
        %2425 = vmatpush1.msra.mxu0 0.0
        %2426 = vmatprep.subr.mxu0 0.0
        %2427 = vmatpush1.msra.mxu0 0.0
        %2428 = vmatprep.subr.mxu0 0.0
        %2429 = vmatpush1.msra.mxu0 0.0
        %2430 = vmatprep.subr.mxu0 0.0
        %2431 = vmatpush1.msra.mxu0 0.0
        %2432 = vmatprep.subr.mxu0 0.0
        %2433 = vmatpush1.msra.mxu0 0.0
        %2434 = vmatprep.subr.mxu0 0.0
        %2435 = vmatpush1.msra.mxu0 0.0
        %2436 = vmatprep.subr.mxu0 0.0
        %2437 = vmatpush1.msra.mxu0 0.0
        %2438 = vmatprep.subr.mxu0 0.0
        %2439 = vmatpush1.msra.mxu0 0.0
        %2440 = vmatprep.subr.mxu0 0.0
        %2441 = vmatpush1.msra.mxu0 0.0
        %2442 = vmatprep.subr.mxu0 0.0
        %2443 = vmatpush1.msra.mxu0 0.0
        %2444 = vmatprep.subr.mxu0 0.0
        %2445 = vmatpush1.msra.mxu0 0.0
        %2446 = vmatprep.subr.mxu0 0.0
        %2447 = vmatpush1.msra.mxu0 0.0
        %2448 = vmatprep.subr.mxu0 0.0
        %2449 = vmatpush1.msra.mxu0 0.0
        %2450 = vmatprep.subr.mxu0 0.0
        %2451 = vmatpush1.msra.mxu0 0.0
        %2452 = vmatprep.subr.mxu0 0.0
        %2453 = vmatpush1.msra.mxu0 0.0
        %2454 = vmatprep.subr.mxu0 0.0
        %2455 = vmatpush1.msra.mxu0 0.0
        %2456 = vmatprep.subr.mxu0 0.0
        %2457 = vmatpush1.msra.mxu0 0.0
        %2458 = vmatprep.subr.mxu0 0.0
        %2459 = vmatpush1.msra.mxu0 0.0
        %2460 = vmatprep.mubr.f32.mxu0 0.0
        %2461 = vmatmul.mubr.f32.gmra.mrb[0].mxu0 %v2385
        %v2462 = vpop.f32.mrb[0].mxu0
        %v2463 = vadd.f32 0.0, %v2462
        %v2464 = vpop.f32.mrb[0].mxu0
        %2465 = vmatprep.mubr.f32.mxu0 0.0
        %2466 = vmatmul.mubr.f32.gmra.mrb[0].mxu0 %v2388
        %v2467 = vpop.f32.mrb[0].mxu0
        %v2468 = vadd.f32 0.0, %v2467
        %v2469 = vpop.f32.mrb[0].mxu0
        %2470 = vmatprep.mubr.f32.mxu0 0.0
        %2471 = vmatmul.mubr.f32.gmra.mrb[0].mxu0 %v2391
        %v2472 = vpop.f32.mrb[0].mxu0
        %v2473 = vadd.f32 0.0, %v2472
        %v2474 = vpop.f32.mrb[0].mxu0
        %2475 = vmatprep.mubr.f32.mxu0 0.0
        %2476 = vmatmul.mubr.f32.gmra.mrb[0].mxu0 %v2394
        %v2477 = vpop.f32.mrb[0].mxu0
        %v2478 = vadd.f32 0.0, %v2477
        %v2479 = vpop.f32.mrb[0].mxu0
        %2480 = vdwg.mxu0
        %2481 = vst.msk [vmem:[#allocation2] sm:$0x1] %vm1807, 0.0
        %2482 = vst.msk [vmem:[#allocation2 + $0x21] sm:$0x1] %vm1807, 0.0
        %2483 = vst.msk [vmem:[#allocation2 + $0x1] sm:$0xff] %vm1810, %v2463
        %2484 = vst.msk [vmem:[#allocation2 + $0x9] sm:$0xff] %vm1810, %v2468
        %2485 = vst.msk [vmem:[#allocation2 + $0x11] sm:$0xff] %vm1810, %v2473
        %2486 = vst.msk [vmem:[#allocation2 + $0x19] sm:$0xff] %vm1810, %v2478
        %v2487 = vld [vmem:[#allocation2] sm:$0xff]
        %v2488 = vld [vmem:[#allocation2 + $0x8] sm:$0xff]
        %v2489 = vld [vmem:[#allocation2 + $0x10] sm:$0xff]
        %v2490 = vld [vmem:[#allocation2 + $0x18] sm:$0xff]
        %v2491 = vpack.c.bf16 %v2488, %v2487
        %v2492 = vpack.c.bf16 %v2490, %v2489
        %v2493 = vld [vmem:[#allocation27] sm:$0xf]
        %v2494 = vld [vmem:[#allocation27 + $0x4] sm:$0xf]
        %v2495 = vld [vmem:[#allocation27 + $0x8] sm:$0xf]
        %v2496 = vld [vmem:[#allocation27 + $0xc] sm:$0xf]
        %v2497 = vld [vmem:[#allocation2 + $0x1] sm:$0xff]
        %v2498 = vld [vmem:[#allocation2 + $0x9] sm:$0xff]
        %v2499 = vld [vmem:[#allocation2 + $0x11] sm:$0xff]
        %v2500 = vld [vmem:[#allocation2 + $0x19] sm:$0xff]
        %v2501 = vpack.c.bf16 %v2498, %v2497
        %v2502 = vpack.c.bf16 %v2500, %v2499
        %s2503 = scalar_lea.vmem [#allocation27], 16
        %v2504 = vld [vmem:[%s2503] sm:$0xf]
        %v2505 = vld [vmem:[%s2503 + $0x4] sm:$0xf]
        %v2506 = vld [vmem:[%s2503 + $0x8] sm:$0xf]
        %v2507 = vld [vmem:[%s2503 + $0xc] sm:$0xf]
        %v2512 = vunpack.c.l.b16 %v2504
        %v2513 = vunpack.c.l.b16 %v2505
        %v2514 = vunpack.c.l.b16 %v2506
        %v2515 = vunpack.c.l.b16 %v2507
        %v2516 = vpack.c.b16 %v2513, %v2512
        %v2517 = vpack.c.b16 %v2515, %v2514
        %v2521 = vsel %vm1810, %v2501, 0
        %v2524 = vsel %vm1810, %v2502, 0
        %2526 = vmatprep.subr.bf16.mxu0 0
        %2527 = vmatpush1.bf16.msra.mxu0 %v2516
        %2528 = vmatprep.subr.bf16.mxu0 0
        %2529 = vmatpush1.bf16.msra.mxu0 %v2517
        %2530 = vmatprep.subr.bf16.mxu0 0
        %2531 = vmatpush1.bf16.msra.mxu0 0
        %2532 = vmatprep.subr.bf16.mxu0 0
        %2533 = vmatpush1.bf16.msra.mxu0 0
        %2534 = vmatprep.subr.bf16.mxu0 0
        %2535 = vmatpush1.bf16.msra.mxu0 0
        %2536 = vmatprep.subr.bf16.mxu0 0
        %2537 = vmatpush1.bf16.msra.mxu0 0
        %2538 = vmatprep.subr.bf16.mxu0 0
        %2539 = vmatpush1.bf16.msra.mxu0 0
        %2540 = vmatprep.subr.bf16.mxu0 0
        %2541 = vmatpush1.bf16.msra.mxu0 0
        %2542 = vmatprep.subr.bf16.mxu0 0
        %2543 = vmatpush1.bf16.msra.mxu0 0
        %2544 = vmatprep.subr.bf16.mxu0 0
        %2545 = vmatpush1.bf16.msra.mxu0 0
        %2546 = vmatprep.subr.bf16.mxu0 0
        %2547 = vmatpush1.bf16.msra.mxu0 0
        %2548 = vmatprep.subr.bf16.mxu0 0
        %2549 = vmatpush1.bf16.msra.mxu0 0
        %2550 = vmatprep.subr.bf16.mxu0 0
        %2551 = vmatpush1.bf16.msra.mxu0 0
        %2552 = vmatprep.subr.bf16.mxu0 0
        %2553 = vmatpush1.bf16.msra.mxu0 0
        %2554 = vmatprep.subr.bf16.mxu0 0
        %2555 = vmatpush1.bf16.msra.mxu0 0
        %2556 = vmatprep.subr.bf16.mxu0 0
        %2557 = vmatpush1.bf16.msra.mxu0 0
        %2558 = vmatprep.mubr.bf16.mxu0 0
        %2559 = vmatmul.mubr.bf16.gmra.mrb[0].mxu0 %v2521
        %v2560 = vpop.f32.mrb[0].mxu0
        %v2561 = vadd.f32 0.0, %v2560
        %v2562 = vpop.f32.mrb[0].mxu0
        %v2563 = vpop.f32.mrb[0].mxu0
        %v2564 = vadd.f32 0.0, %v2563
        %v2565 = vpop.f32.mrb[0].mxu0
        %2566 = vmatprep.mubr.bf16.mxu0 0
        %2567 = vmatmul.mubr.bf16.gmra.mrb[0].mxu0 %v2524
        %v2568 = vpop.f32.mrb[0].mxu0
        %v2569 = vadd.f32 0.0, %v2568
        %v2570 = vpop.f32.mrb[0].mxu0
        %v2571 = vpop.f32.mrb[0].mxu0
        %v2572 = vadd.f32 0.0, %v2571
        %v2573 = vpop.f32.mrb[0].mxu0
        %2574 = vdwg.mxu0
        %v2579 = vunpack.c.l.b16 %v2493
        %v2580 = vunpack.c.l.b16 %v2494
        %v2581 = vunpack.c.l.b16 %v2495
        %v2582 = vunpack.c.l.b16 %v2496
        %v2583 = vpack.c.b16 %v2580, %v2579
        %v2584 = vpack.c.b16 %v2582, %v2581
        %v2588 = vsel %vm1810, %v2491, 0
        %v2591 = vsel %vm1810, %v2492, 0
        %2593 = vmatprep.subr.bf16.mxu0 0
        %2594 = vmatpush1.bf16.msra.mxu0 %v2583
        %2595 = vmatprep.subr.bf16.mxu0 0
        %2596 = vmatpush1.bf16.msra.mxu0 %v2584
        %2597 = vmatprep.subr.bf16.mxu0 0
        %2598 = vmatpush1.bf16.msra.mxu0 0
        %2599 = vmatprep.subr.bf16.mxu0 0
        %2600 = vmatpush1.bf16.msra.mxu0 0
        %2601 = vmatprep.subr.bf16.mxu0 0
        %2602 = vmatpush1.bf16.msra.mxu0 0
        %2603 = vmatprep.subr.bf16.mxu0 0
        %2604 = vmatpush1.bf16.msra.mxu0 0
        %2605 = vmatprep.subr.bf16.mxu0 0
        %2606 = vmatpush1.bf16.msra.mxu0 0
        %2607 = vmatprep.subr.bf16.mxu0 0
        %2608 = vmatpush1.bf16.msra.mxu0 0
        %2609 = vmatprep.subr.bf16.mxu0 0
        %2610 = vmatpush1.bf16.msra.mxu0 0
        %2611 = vmatprep.subr.bf16.mxu0 0
        %2612 = vmatpush1.bf16.msra.mxu0 0
        %2613 = vmatprep.subr.bf16.mxu0 0
        %2614 = vmatpush1.bf16.msra.mxu0 0
        %2615 = vmatprep.subr.bf16.mxu0 0
        %2616 = vmatpush1.bf16.msra.mxu0 0
        %2617 = vmatprep.subr.bf16.mxu0 0
        %2618 = vmatpush1.bf16.msra.mxu0 0
        %2619 = vmatprep.subr.bf16.mxu0 0
        %2620 = vmatpush1.bf16.msra.mxu0 0
        %2621 = vmatprep.subr.bf16.mxu0 0
        %2622 = vmatpush1.bf16.msra.mxu0 0
        %2623 = vmatprep.subr.bf16.mxu0 0
        %2624 = vmatpush1.bf16.msra.mxu0 0
        %2625 = vmatprep.mubr.bf16.mxu0 0
        %2626 = vmatmul.mubr.bf16.gmra.mrb[0].mxu0 %v2588
        %v2627 = vpop.f32.mrb[0].mxu0
        %v2628 = vadd.f32 %v2561, %v2627
        %v2629 = vpop.f32.mrb[0].mxu0
        %v2630 = vpop.f32.mrb[0].mxu0
        %v2631 = vadd.f32 %v2564, %v2630
        %v2632 = vpop.f32.mrb[0].mxu0
        %2633 = vmatprep.mubr.bf16.mxu0 0
        %2634 = vmatmul.mubr.bf16.gmra.mrb[0].mxu0 %v2591
        %v2635 = vpop.f32.mrb[0].mxu0
        %v2636 = vadd.f32 %v2569, %v2635
        %v2637 = vpop.f32.mrb[0].mxu0
        %v2638 = vpop.f32.mrb[0].mxu0
        %v2639 = vadd.f32 %v2572, %v2638
        %v2640 = vpop.f32.mrb[0].mxu0
        %2641 = vdwg.mxu0
        %v2642 = vld [vmem:[#allocation2 + $0x2] sm:$0xff]
        %v2643 = vld [vmem:[#allocation2 + $0xa] sm:$0xff]
        %v2644 = vld [vmem:[#allocation2 + $0x12] sm:$0xff]
        %v2645 = vld [vmem:[#allocation2 + $0x1a] sm:$0xff]
        %v2646 = vpack.c.bf16 %v2643, %v2642
        %v2647 = vpack.c.bf16 %v2645, %v2644
        %s2648 = scalar_lea.vmem [#allocation27], 32
        %v2649 = vld [vmem:[%s2648] sm:$0xf]
        %v2650 = vld [vmem:[%s2648 + $0x4] sm:$0xf]
        %v2651 = vld [vmem:[%s2648 + $0x8] sm:$0xf]
        %v2652 = vld [vmem:[%s2648 + $0xc] sm:$0xf]
        %v2657 = vunpack.c.l.b16 %v2649
        %v2658 = vunpack.c.l.b16 %v2650
        %v2659 = vunpack.c.l.b16 %v2651
        %v2660 = vunpack.c.l.b16 %v2652
        %v2661 = vpack.c.b16 %v2658, %v2657
        %v2662 = vpack.c.b16 %v2660, %v2659
        %v2666 = vsel %vm1810, %v2646, 0
        %v2669 = vsel %vm1810, %v2647, 0
        %2671 = vmatprep.subr.bf16.mxu0 0
        %2672 = vmatpush1.bf16.msra.mxu0 %v2661
        %2673 = vmatprep.subr.bf16.mxu0 0
        %2674 = vmatpush1.bf16.msra.mxu0 %v2662
        %2675 = vmatprep.subr.bf16.mxu0 0
        %2676 = vmatpush1.bf16.msra.mxu0 0
        %2677 = vmatprep.subr.bf16.mxu0 0
        %2678 = vmatpush1.bf16.msra.mxu0 0
        %2679 = vmatprep.subr.bf16.mxu0 0
        %2680 = vmatpush1.bf16.msra.mxu0 0
        %2681 = vmatprep.subr.bf16.mxu0 0
        %2682 = vmatpush1.bf16.msra.mxu0 0
        %2683 = vmatprep.subr.bf16.mxu0 0
        %2684 = vmatpush1.bf16.msra.mxu0 0
        %2685 = vmatprep.subr.bf16.mxu0 0
        %2686 = vmatpush1.bf16.msra.mxu0 0
        %2687 = vmatprep.subr.bf16.mxu0 0
        %2688 = vmatpush1.bf16.msra.mxu0 0
        %2689 = vmatprep.subr.bf16.mxu0 0
        %2690 = vmatpush1.bf16.msra.mxu0 0
        %2691 = vmatprep.subr.bf16.mxu0 0
        %2692 = vmatpush1.bf16.msra.mxu0 0
        %2693 = vmatprep.subr.bf16.mxu0 0
        %2694 = vmatpush1.bf16.msra.mxu0 0
        %2695 = vmatprep.subr.bf16.mxu0 0
        %2696 = vmatpush1.bf16.msra.mxu0 0
        %2697 = vmatprep.subr.bf16.mxu0 0
        %2698 = vmatpush1.bf16.msra.mxu0 0
        %2699 = vmatprep.subr.bf16.mxu0 0
        %2700 = vmatpush1.bf16.msra.mxu0 0
        %2701 = vmatprep.subr.bf16.mxu0 0
        %2702 = vmatpush1.bf16.msra.mxu0 0
        %2703 = vmatprep.mubr.bf16.mxu0 0
        %2704 = vmatmul.mubr.bf16.gmra.mrb[0].mxu0 %v2666
        %v2705 = vpop.f32.mrb[0].mxu0
        %v2706 = vadd.f32 0.0, %v2705
        %v2707 = vpop.f32.mrb[0].mxu0
        %v2708 = vpop.f32.mrb[0].mxu0
        %v2709 = vadd.f32 0.0, %v2708
        %v2710 = vpop.f32.mrb[0].mxu0
        %2711 = vmatprep.mubr.bf16.mxu0 0
        %2712 = vmatmul.mubr.bf16.gmra.mrb[0].mxu0 %v2669
        %v2713 = vpop.f32.mrb[0].mxu0
        %v2714 = vadd.f32 0.0, %v2713
        %v2715 = vpop.f32.mrb[0].mxu0
        %v2716 = vpop.f32.mrb[0].mxu0
        %v2717 = vadd.f32 0.0, %v2716
        %v2718 = vpop.f32.mrb[0].mxu0
        %2719 = vdwg.mxu0
        %v2720 = vadd.f32 %v2628, %v2706
        %v2721 = vadd.f32 %v2631, %v2709
        %v2722 = vadd.f32 %v2636, %v2714
        %v2723 = vadd.f32 %v2639, %v2717
        %v2724 = vld [vmem:[#allocation29] sm:$0x1]
        %v2726 = vlaneseq
        %v2727 = vshrl.u32 %v2726, 7
        %v2728 = vsub.s32 0, %v2727
        %v2729 = vrot.slane %v2724, %v2728
        %v2731 = vadd.f32 %v2720, %v2729
        %v2732 = vadd.f32 %v2721, %v2729
        %v2733 = vadd.f32 %v2722, %v2729
        %v2734 = vadd.f32 %v2723, %v2729
        %v2735 = vmax.f32 %v2731, 0.0
        %v2736 = vmax.f32 %v2732, 0.0
        %v2737 = vmax.f32 %v2733, 0.0
        %v2738 = vmax.f32 %v2734, 0.0
        %v2739 = vsel %vm1810, %v2735, 0.0
        %2740 = vadd.xlane.f32.xlu0 %v2739
        %v2741 = vpop.xlane.xlu0 %2740
        %v2742 = vsel %vm1810, %v2736, 0.0
        %2743 = vadd.xlane.f32.xlu0 %v2742
        %v2744 = vpop.xlane.xlu0 %2743
        %v2745 = vsel %vm1810, %v2737, 0.0
        %2746 = vadd.xlane.f32.xlu0 %v2745
        %v2747 = vpop.xlane.xlu0 %2746
        %v2748 = vsel %vm1810, %v2738, 0.0
        %2749 = vadd.xlane.f32.xlu0 %v2748
        %v2750 = vpop.xlane.xlu0 %2749
        %v2751 = vmul.f32 %v2741, %v2010
        %v2752 = vmul.f32 %v2744, %v2010
        %v2753 = vmul.f32 %v2747, %v2010
        %v2754 = vmul.f32 %v2750, %v2010
        %v2755 = vsub.f32 %v2735, %v2751
        %v2756 = vsub.f32 %v2736, %v2752
        %v2757 = vsub.f32 %v2737, %v2753
        %v2758 = vsub.f32 %v2738, %v2754
        %v2759 = vmul.f32 %v2755, %v2755
        %v2760 = vmul.f32 %v2756, %v2756
        %v2761 = vmul.f32 %v2757, %v2757
        %v2762 = vmul.f32 %v2758, %v2758
        %v2763 = vsel %vm1810, %v2759, 0.0
        %2764 = vadd.xlane.f32.xlu0 %v2763
        %v2765 = vpop.xlane.xlu0 %2764
        %v2766 = vsel %vm1810, %v2760, 0.0
        %2767 = vadd.xlane.f32.xlu0 %v2766
        %v2768 = vpop.xlane.xlu0 %2767
        %v2769 = vsel %vm1810, %v2761, 0.0
        %2770 = vadd.xlane.f32.xlu0 %v2769
        %v2771 = vpop.xlane.xlu0 %2770
        %v2772 = vsel %vm1810, %v2762, 0.0
        %2773 = vadd.xlane.f32.xlu0 %v2772
        %v2774 = vpop.xlane.xlu0 %2773
        %v2775 = vmul.f32 %v2765, %v2010
        %v2776 = vmul.f32 %v2768, %v2010
        %v2777 = vmul.f32 %v2771, %v2010
        %v2778 = vmul.f32 %v2774, %v2010
        %v2779 = vadd.f32 %v2775, 1e-05
        %v2780 = vadd.f32 %v2776, 1e-05
        %v2781 = vadd.f32 %v2777, 1e-05
        %v2782 = vadd.f32 %v2778, 1e-05
        %v2783 = vrsqrt.pop %v2779
        %v2784 = vrsqrt.pop %v2780
        %v2785 = vrsqrt.pop %v2781
        %v2786 = vrsqrt.pop %v2782
        %v2787 = vmul.f32 %v2755, %v2783
        %v2788 = vmul.f32 %v2756, %v2784
        %v2789 = vmul.f32 %v2757, %v2785
        %v2790 = vmul.f32 %v2758, %v2786
        %v2791 = vld [vmem:[#allocation30] sm:$0x1]
        %v2793 = vlaneseq
        %v2794 = vshrl.u32 %v2793, 7
        %v2795 = vsub.s32 0, %v2794
        %v2796 = vrot.slane %v2791, %v2795
        %v2798 = vmul.f32 %v2787, %v2796
        %v2799 = vmul.f32 %v2788, %v2796
        %v2800 = vmul.f32 %v2789, %v2796
        %v2801 = vmul.f32 %v2790, %v2796
        %v2802 = vld [vmem:[#allocation32] sm:$0x1]
        %v2804 = vlaneseq
        %v2805 = vshrl.u32 %v2804, 7
        %v2806 = vsub.s32 0, %v2805
        %v2807 = vrot.slane %v2802, %v2806
        %v2809 = vadd.f32 %v2798, %v2807
        %v2810 = vadd.f32 %v2799, %v2807
        %v2811 = vadd.f32 %v2800, %v2807
        %v2812 = vadd.f32 %v2801, %v2807
        %2813 = vst.msk [vmem:[#allocation2] sm:$0x1] %vm1807, 0.0
        %2814 = vst.msk [vmem:[#allocation2 + $0x21] sm:$0x1] %vm1807, 0.0
        %2815 = vst.msk [vmem:[#allocation2 + $0x1] sm:$0xff] %vm1810, %v2809
        %2816 = vst.msk [vmem:[#allocation2 + $0x9] sm:$0xff] %vm1810, %v2810
        %2817 = vst.msk [vmem:[#allocation2 + $0x11] sm:$0xff] %vm1810, %v2811
        %2818 = vst.msk [vmem:[#allocation2 + $0x19] sm:$0xff] %vm1810, %v2812
        %v2819 = vld [vmem:[#allocation2] sm:$0xff]
        %v2820 = vld [vmem:[#allocation2 + $0x8] sm:$0xff]
        %v2821 = vld [vmem:[#allocation2 + $0x10] sm:$0xff]
        %v2822 = vld [vmem:[#allocation2 + $0x18] sm:$0xff]
        %v2823 = vpack.c.bf16 %v2820, %v2819
        %v2824 = vpack.c.bf16 %v2822, %v2821
        %v2825 = vld [vmem:[#allocation33] sm:$0xf]
        %v2826 = vld [vmem:[#allocation33 + $0x4] sm:$0xf]
        %v2827 = vld [vmem:[#allocation33 + $0x8] sm:$0xf]
        %v2828 = vld [vmem:[#allocation33 + $0xc] sm:$0xf]
        %v2829 = vld [vmem:[#allocation2 + $0x1] sm:$0xff]
        %v2830 = vld [vmem:[#allocation2 + $0x9] sm:$0xff]
        %v2831 = vld [vmem:[#allocation2 + $0x11] sm:$0xff]
        %v2832 = vld [vmem:[#allocation2 + $0x19] sm:$0xff]
        %v2833 = vpack.c.bf16 %v2830, %v2829
        %v2834 = vpack.c.bf16 %v2832, %v2831
        %s2835 = scalar_lea.vmem [#allocation33], 16
        %v2836 = vld [vmem:[%s2835] sm:$0xf]
        %v2837 = vld [vmem:[%s2835 + $0x4] sm:$0xf]
        %v2838 = vld [vmem:[%s2835 + $0x8] sm:$0xf]
        %v2839 = vld [vmem:[%s2835 + $0xc] sm:$0xf]
        %v2844 = vunpack.c.l.b16 %v2836
        %v2845 = vunpack.c.l.b16 %v2837
        %v2846 = vunpack.c.l.b16 %v2838
        %v2847 = vunpack.c.l.b16 %v2839
        %v2848 = vpack.c.b16 %v2845, %v2844
        %v2849 = vpack.c.b16 %v2847, %v2846
        %v2853 = vsel %vm1810, %v2833, 0
        %v2856 = vsel %vm1810, %v2834, 0
        %2858 = vmatprep.subr.bf16.mxu0 0
        %2859 = vmatpush1.bf16.msra.mxu0 %v2848
        %2860 = vmatprep.subr.bf16.mxu0 0
        %2861 = vmatpush1.bf16.msra.mxu0 %v2849
        %2862 = vmatprep.subr.bf16.mxu0 0
        %2863 = vmatpush1.bf16.msra.mxu0 0
        %2864 = vmatprep.subr.bf16.mxu0 0
        %2865 = vmatpush1.bf16.msra.mxu0 0
        %2866 = vmatprep.subr.bf16.mxu0 0
        %2867 = vmatpush1.bf16.msra.mxu0 0
        %2868 = vmatprep.subr.bf16.mxu0 0
        %2869 = vmatpush1.bf16.msra.mxu0 0
        %2870 = vmatprep.subr.bf16.mxu0 0
        %2871 = vmatpush1.bf16.msra.mxu0 0
        %2872 = vmatprep.subr.bf16.mxu0 0
        %2873 = vmatpush1.bf16.msra.mxu0 0
        %2874 = vmatprep.subr.bf16.mxu0 0
        %2875 = vmatpush1.bf16.msra.mxu0 0
        %2876 = vmatprep.subr.bf16.mxu0 0
        %2877 = vmatpush1.bf16.msra.mxu0 0
        %2878 = vmatprep.subr.bf16.mxu0 0
        %2879 = vmatpush1.bf16.msra.mxu0 0
        %2880 = vmatprep.subr.bf16.mxu0 0
        %2881 = vmatpush1.bf16.msra.mxu0 0
        %2882 = vmatprep.subr.bf16.mxu0 0
        %2883 = vmatpush1.bf16.msra.mxu0 0
        %2884 = vmatprep.subr.bf16.mxu0 0
        %2885 = vmatpush1.bf16.msra.mxu0 0
        %2886 = vmatprep.subr.bf16.mxu0 0
        %2887 = vmatpush1.bf16.msra.mxu0 0
        %2888 = vmatprep.subr.bf16.mxu0 0
        %2889 = vmatpush1.bf16.msra.mxu0 0
        %2890 = vmatprep.mubr.bf16.mxu0 0
        %2891 = vmatmul.mubr.bf16.gmra.mrb[0].mxu0 %v2853
        %v2892 = vpop.f32.mrb[0].mxu0
        %v2893 = vadd.f32 0.0, %v2892
        %v2894 = vpop.f32.mrb[0].mxu0
        %v2895 = vpop.f32.mrb[0].mxu0
        %v2896 = vadd.f32 0.0, %v2895
        %v2897 = vpop.f32.mrb[0].mxu0
        %2898 = vmatprep.mubr.bf16.mxu0 0
        %2899 = vmatmul.mubr.bf16.gmra.mrb[0].mxu0 %v2856
        %v2900 = vpop.f32.mrb[0].mxu0
        %v2901 = vadd.f32 0.0, %v2900
        %v2902 = vpop.f32.mrb[0].mxu0
        %v2903 = vpop.f32.mrb[0].mxu0
        %v2904 = vadd.f32 0.0, %v2903
        %v2905 = vpop.f32.mrb[0].mxu0
        %2906 = vdwg.mxu0
        %v2911 = vunpack.c.l.b16 %v2825
        %v2912 = vunpack.c.l.b16 %v2826
        %v2913 = vunpack.c.l.b16 %v2827
        %v2914 = vunpack.c.l.b16 %v2828
        %v2915 = vpack.c.b16 %v2912, %v2911
        %v2916 = vpack.c.b16 %v2914, %v2913
        %v2920 = vsel %vm1810, %v2823, 0
        %v2923 = vsel %vm1810, %v2824, 0
        %2925 = vmatprep.subr.bf16.mxu0 0
        %2926 = vmatpush1.bf16.msra.mxu0 %v2915
        %2927 = vmatprep.subr.bf16.mxu0 0
        %2928 = vmatpush1.bf16.msra.mxu0 %v2916
        %2929 = vmatprep.subr.bf16.mxu0 0
        %2930 = vmatpush1.bf16.msra.mxu0 0
        %2931 = vmatprep.subr.bf16.mxu0 0
        %2932 = vmatpush1.bf16.msra.mxu0 0
        %2933 = vmatprep.subr.bf16.mxu0 0
        %2934 = vmatpush1.bf16.msra.mxu0 0
        %2935 = vmatprep.subr.bf16.mxu0 0
        %2936 = vmatpush1.bf16.msra.mxu0 0
        %2937 = vmatprep.subr.bf16.mxu0 0
        %2938 = vmatpush1.bf16.msra.mxu0 0
        %2939 = vmatprep.subr.bf16.mxu0 0
        %2940 = vmatpush1.bf16.msra.mxu0 0
        %2941 = vmatprep.subr.bf16.mxu0 0
        %2942 = vmatpush1.bf16.msra.mxu0 0
        %2943 = vmatprep.subr.bf16.mxu0 0
        %2944 = vmatpush1.bf16.msra.mxu0 0
        %2945 = vmatprep.subr.bf16.mxu0 0
        %2946 = vmatpush1.bf16.msra.mxu0 0
        %2947 = vmatprep.subr.bf16.mxu0 0
        %2948 = vmatpush1.bf16.msra.mxu0 0
        %2949 = vmatprep.subr.bf16.mxu0 0
        %2950 = vmatpush1.bf16.msra.mxu0 0
        %2951 = vmatprep.subr.bf16.mxu0 0
        %2952 = vmatpush1.bf16.msra.mxu0 0
        %2953 = vmatprep.subr.bf16.mxu0 0
        %2954 = vmatpush1.bf16.msra.mxu0 0
        %2955 = vmatprep.subr.bf16.mxu0 0
        %2956 = vmatpush1.bf16.msra.mxu0 0
        %2957 = vmatprep.mubr.bf16.mxu0 0
        %2958 = vmatmul.mubr.bf16.gmra.mrb[0].mxu0 %v2920
        %v2959 = vpop.f32.mrb[0].mxu0
        %v2960 = vadd.f32 %v2893, %v2959
        %v2961 = vpop.f32.mrb[0].mxu0
        %v2962 = vpop.f32.mrb[0].mxu0
        %v2963 = vadd.f32 %v2896, %v2962
        %v2964 = vpop.f32.mrb[0].mxu0
        %2965 = vmatprep.mubr.bf16.mxu0 0
        %2966 = vmatmul.mubr.bf16.gmra.mrb[0].mxu0 %v2923
        %v2967 = vpop.f32.mrb[0].mxu0
        %v2968 = vadd.f32 %v2901, %v2967
        %v2969 = vpop.f32.mrb[0].mxu0
        %v2970 = vpop.f32.mrb[0].mxu0
        %v2971 = vadd.f32 %v2904, %v2970
        %v2972 = vpop.f32.mrb[0].mxu0
        %2973 = vdwg.mxu0
        %v2974 = vld [vmem:[#allocation2 + $0x2] sm:$0xff]
        %v2975 = vld [vmem:[#allocation2 + $0xa] sm:$0xff]
        %v2976 = vld [vmem:[#allocation2 + $0x12] sm:$0xff]
        %v2977 = vld [vmem:[#allocation2 + $0x1a] sm:$0xff]
        %v2978 = vpack.c.bf16 %v2975, %v2974
        %v2979 = vpack.c.bf16 %v2977, %v2976
        %s2980 = scalar_lea.vmem [#allocation33], 32
        %v2981 = vld [vmem:[%s2980] sm:$0xf]
        %v2982 = vld [vmem:[%s2980 + $0x4] sm:$0xf]
        %v2983 = vld [vmem:[%s2980 + $0x8] sm:$0xf]
        %v2984 = vld [vmem:[%s2980 + $0xc] sm:$0xf]
        %v2989 = vunpack.c.l.b16 %v2981
        %v2990 = vunpack.c.l.b16 %v2982
        %v2991 = vunpack.c.l.b16 %v2983
        %v2992 = vunpack.c.l.b16 %v2984
        %v2993 = vpack.c.b16 %v2990, %v2989
        %v2994 = vpack.c.b16 %v2992, %v2991
        %v2998 = vsel %vm1810, %v2978, 0
        %v3001 = vsel %vm1810, %v2979, 0
        %3003 = vmatprep.subr.bf16.mxu0 0
        %3004 = vmatpush1.bf16.msra.mxu0 %v2993
        %3005 = vmatprep.subr.bf16.mxu0 0
        %3006 = vmatpush1.bf16.msra.mxu0 %v2994
        %3007 = vmatprep.subr.bf16.mxu0 0
        %3008 = vmatpush1.bf16.msra.mxu0 0
        %3009 = vmatprep.subr.bf16.mxu0 0
        %3010 = vmatpush1.bf16.msra.mxu0 0
        %3011 = vmatprep.subr.bf16.mxu0 0
        %3012 = vmatpush1.bf16.msra.mxu0 0
        %3013 = vmatprep.subr.bf16.mxu0 0
        %3014 = vmatpush1.bf16.msra.mxu0 0
        %3015 = vmatprep.subr.bf16.mxu0 0
        %3016 = vmatpush1.bf16.msra.mxu0 0
        %3017 = vmatprep.subr.bf16.mxu0 0
        %3018 = vmatpush1.bf16.msra.mxu0 0
        %3019 = vmatprep.subr.bf16.mxu0 0
        %3020 = vmatpush1.bf16.msra.mxu0 0
        %3021 = vmatprep.subr.bf16.mxu0 0
        %3022 = vmatpush1.bf16.msra.mxu0 0
        %3023 = vmatprep.subr.bf16.mxu0 0
        %3024 = vmatpush1.bf16.msra.mxu0 0
        %3025 = vmatprep.subr.bf16.mxu0 0
        %3026 = vmatpush1.bf16.msra.mxu0 0
        %3027 = vmatprep.subr.bf16.mxu0 0
        %3028 = vmatpush1.bf16.msra.mxu0 0
        %3029 = vmatprep.subr.bf16.mxu0 0
        %3030 = vmatpush1.bf16.msra.mxu0 0
        %3031 = vmatprep.subr.bf16.mxu0 0
        %3032 = vmatpush1.bf16.msra.mxu0 0
        %3033 = vmatprep.subr.bf16.mxu0 0
        %3034 = vmatpush1.bf16.msra.mxu0 0
        %3035 = vmatprep.mubr.bf16.mxu0 0
        %3036 = vmatmul.mubr.bf16.gmra.mrb[0].mxu0 %v2998
        %v3037 = vpop.f32.mrb[0].mxu0
        %v3038 = vadd.f32 0.0, %v3037
        %v3039 = vpop.f32.mrb[0].mxu0
        %v3040 = vpop.f32.mrb[0].mxu0
        %v3041 = vadd.f32 0.0, %v3040
        %v3042 = vpop.f32.mrb[0].mxu0
        %3043 = vmatprep.mubr.bf16.mxu0 0
        %3044 = vmatmul.mubr.bf16.gmra.mrb[0].mxu0 %v3001
        %v3045 = vpop.f32.mrb[0].mxu0
        %v3046 = vadd.f32 0.0, %v3045
        %v3047 = vpop.f32.mrb[0].mxu0
        %v3048 = vpop.f32.mrb[0].mxu0
        %v3049 = vadd.f32 0.0, %v3048
        %v3050 = vpop.f32.mrb[0].mxu0
        %3051 = vdwg.mxu0
        %v3052 = vadd.f32 %v2960, %v3038
        %v3053 = vadd.f32 %v2963, %v3041
        %v3054 = vadd.f32 %v2968, %v3046
        %v3055 = vadd.f32 %v2971, %v3049
        %v3056 = vld [vmem:[#allocation35] sm:$0x1]
        %v3058 = vlaneseq
        %v3059 = vshrl.u32 %v3058, 7
        %v3060 = vsub.s32 0, %v3059
        %v3061 = vrot.slane %v3056, %v3060
        %v3063 = vadd.f32 %v3052, %v3061
        %v3064 = vadd.f32 %v3053, %v3061
        %v3065 = vadd.f32 %v3054, %v3061
        %v3066 = vadd.f32 %v3055, %v3061
        %v3067 = vmax.f32 %v3063, 0.0
        %v3068 = vmax.f32 %v3064, 0.0
        %v3069 = vmax.f32 %v3065, 0.0
        %v3070 = vmax.f32 %v3066, 0.0
        %v3071 = vsel %vm1810, %v3067, 0.0
        %3072 = vadd.xlane.f32.xlu0 %v3071
        %v3073 = vpop.xlane.xlu0 %3072
        %v3074 = vsel %vm1810, %v3068, 0.0
        %3075 = vadd.xlane.f32.xlu0 %v3074
        %v3076 = vpop.xlane.xlu0 %3075
        %v3077 = vsel %vm1810, %v3069, 0.0
        %3078 = vadd.xlane.f32.xlu0 %v3077
        %v3079 = vpop.xlane.xlu0 %3078
        %v3080 = vsel %vm1810, %v3070, 0.0
        %3081 = vadd.xlane.f32.xlu0 %v3080
        %v3082 = vpop.xlane.xlu0 %3081
        %v3083 = vmul.f32 %v3073, %v2010
        %v3084 = vmul.f32 %v3076, %v2010
        %v3085 = vmul.f32 %v3079, %v2010
        %v3086 = vmul.f32 %v3082, %v2010
        %v3087 = vsub.f32 %v3067, %v3083
        %v3088 = vsub.f32 %v3068, %v3084
        %v3089 = vsub.f32 %v3069, %v3085
        %v3090 = vsub.f32 %v3070, %v3086
        %v3091 = vmul.f32 %v3087, %v3087
        %v3092 = vmul.f32 %v3088, %v3088
        %v3093 = vmul.f32 %v3089, %v3089
        %v3094 = vmul.f32 %v3090, %v3090
        %v3095 = vsel %vm1810, %v3091, 0.0
        %3096 = vadd.xlane.f32.xlu0 %v3095
        %v3097 = vpop.xlane.xlu0 %3096
        %v3098 = vsel %vm1810, %v3092, 0.0
        %3099 = vadd.xlane.f32.xlu0 %v3098
        %v3100 = vpop.xlane.xlu0 %3099
        %v3101 = vsel %vm1810, %v3093, 0.0
        %3102 = vadd.xlane.f32.xlu0 %v3101
        %v3103 = vpop.xlane.xlu0 %3102
        %v3104 = vsel %vm1810, %v3094, 0.0
        %3105 = vadd.xlane.f32.xlu0 %v3104
        %v3106 = vpop.xlane.xlu0 %3105
        %v3107 = vmul.f32 %v3097, %v2010
        %v3108 = vmul.f32 %v3100, %v2010
        %v3109 = vmul.f32 %v3103, %v2010
        %v3110 = vmul.f32 %v3106, %v2010
        %v3111 = vadd.f32 %v3107, 1e-05
        %v3112 = vadd.f32 %v3108, 1e-05
        %v3113 = vadd.f32 %v3109, 1e-05
        %v3114 = vadd.f32 %v3110, 1e-05
        %v3115 = vrsqrt.pop %v3111
        %v3116 = vrsqrt.pop %v3112
        %v3117 = vrsqrt.pop %v3113
        %v3118 = vrsqrt.pop %v3114
        %v3119 = vmul.f32 %v3087, %v3115
        %v3120 = vmul.f32 %v3088, %v3116
        %v3121 = vmul.f32 %v3089, %v3117
        %v3122 = vmul.f32 %v3090, %v3118
        %v3123 = vld [vmem:[#allocation36] sm:$0x1]
        %v3125 = vlaneseq
        %v3126 = vshrl.u32 %v3125, 7
        %v3127 = vsub.s32 0, %v3126
        %v3128 = vrot.slane %v3123, %v3127
        %v3130 = vmul.f32 %v3119, %v3128
        %v3131 = vmul.f32 %v3120, %v3128
        %v3132 = vmul.f32 %v3121, %v3128
        %v3133 = vmul.f32 %v3122, %v3128
        %v3134 = vld [vmem:[#allocation38] sm:$0x1]
        %v3136 = vlaneseq
        %v3137 = vshrl.u32 %v3136, 7
        %v3138 = vsub.s32 0, %v3137
        %v3139 = vrot.slane %v3134, %v3138
        %v3141 = vadd.f32 %v3130, %v3139
        %v3142 = vadd.f32 %v3131, %v3139
        %v3143 = vadd.f32 %v3132, %v3139
        %v3144 = vadd.f32 %v3133, %v3139
        %v3145 = vld [vmem:[#allocation39] sm:$0x1]
        %v3146 = vld [vmem:[#allocation4] sm:$0x1]
        %3148 = vset.pattern.permute.xlu0 0
        %3149 = vperm.xlu0 %3148, %v3146
        %v3150 = vpop.permute.xlu0 %3149
        %v3152 = vlaneseq
        %v3153 = vshrl.u32 %v3152, 7
        %v3154 = vsub.s32 0, %v3153
        %v3155 = vrot.slane %v3150, %v3154
        %v3157 = vsel %vm1810, %v3145, 0
        %v3160 = vsel %vm1810, %v3141, 0
        %v3163 = vsel %vm1810, %v3142, 0
        %v3166 = vsel %vm1810, %v3143, 0
        %v3169 = vsel %vm1810, %v3144, 0
        %3171 = vmatprep.subr.mxu0 0.0
        %3172 = vmatpush1.xpose.msra.mxu0 %v3160
        %3173 = vmatprep.subr.mxu0 0.0
        %3174 = vmatpush1.xpose.msra.mxu0 %v3163
        %3175 = vmatprep.subr.mxu0 0.0
        %3176 = vmatpush1.xpose.msra.mxu0 %v3166
        %3177 = vmatprep.subr.mxu0 0.0
        %3178 = vmatpush1.xpose.msra.mxu0 %v3169
        %3179 = vmatprep.subr.mxu0 0.0
        %3180 = vmatpush1.xpose.msra.mxu0 0.0
        %3181 = vmatprep.subr.mxu0 0.0
        %3182 = vmatpush1.xpose.msra.mxu0 0.0
        %3183 = vmatprep.subr.mxu0 0.0
        %3184 = vmatpush1.xpose.msra.mxu0 0.0
        %3185 = vmatprep.subr.mxu0 0.0
        %3186 = vmatpush1.xpose.msra.mxu0 0.0
        %3187 = vmatprep.subr.mxu0 0.0
        %3188 = vmatpush1.xpose.msra.mxu0 0.0
        %3189 = vmatprep.subr.mxu0 0.0
        %3190 = vmatpush1.xpose.msra.mxu0 0.0
        %3191 = vmatprep.subr.mxu0 0.0
        %3192 = vmatpush1.xpose.msra.mxu0 0.0
        %3193 = vmatprep.subr.mxu0 0.0
        %3194 = vmatpush1.xpose.msra.mxu0 0.0
        %3195 = vmatprep.subr.mxu0 0.0
        %3196 = vmatpush1.xpose.msra.mxu0 0.0
        %3197 = vmatprep.subr.mxu0 0.0
        %3198 = vmatpush1.xpose.msra.mxu0 0.0
        %3199 = vmatprep.subr.mxu0 0.0
        %3200 = vmatpush1.xpose.msra.mxu0 0.0
        %3201 = vmatprep.subr.mxu0 0.0
        %3202 = vmatpush1.xpose.msra.mxu0 0.0
        %3203 = vmatprep.subr.mxu0 0.0
        %3204 = vmatpush1.xpose.msra.mxu0 0.0
        %3205 = vmatprep.subr.mxu0 0.0
        %3206 = vmatpush1.xpose.msra.mxu0 0.0
        %3207 = vmatprep.subr.mxu0 0.0
        %3208 = vmatpush1.xpose.msra.mxu0 0.0
        %3209 = vmatprep.subr.mxu0 0.0
        %3210 = vmatpush1.xpose.msra.mxu0 0.0
        %3211 = vmatprep.subr.mxu0 0.0
        %3212 = vmatpush1.xpose.msra.mxu0 0.0
        %3213 = vmatprep.subr.mxu0 0.0
        %3214 = vmatpush1.xpose.msra.mxu0 0.0
        %3215 = vmatprep.subr.mxu0 0.0
        %3216 = vmatpush1.xpose.msra.mxu0 0.0
        %3217 = vmatprep.subr.mxu0 0.0
        %3218 = vmatpush1.xpose.msra.mxu0 0.0
        %3219 = vmatprep.subr.mxu0 0.0
        %3220 = vmatpush1.xpose.msra.mxu0 0.0
        %3221 = vmatprep.subr.mxu0 0.0
        %3222 = vmatpush1.xpose.msra.mxu0 0.0
        %3223 = vmatprep.subr.mxu0 0.0
        %3224 = vmatpush1.xpose.msra.mxu0 0.0
        %3225 = vmatprep.subr.mxu0 0.0
        %3226 = vmatpush1.xpose.msra.mxu0 0.0
        %3227 = vmatprep.subr.mxu0 0.0
        %3228 = vmatpush1.xpose.msra.mxu0 0.0
        %3229 = vmatprep.subr.mxu0 0.0
        %3230 = vmatpush1.xpose.msra.mxu0 0.0
        %3231 = vmatprep.subr.mxu0 0.0
        %3232 = vmatpush1.xpose.msra.mxu0 0.0
        %3233 = vmatprep.subr.mxu0 0.0
        %3234 = vmatpush1.xpose.msra.mxu0 0.0
        %3235 = vmatprep.mubr.f32.mxu0 0.0
        %3236 = vmatmul.mubr.f32.gmra.mrb[0].mxu0 %v3157
        %v3237 = vpop.f32.mrb[0].mxu0
        %v3238 = vadd.f32 %v3155, %v3237
        %v3239 = vpop.f32.mrb[0].mxu0
        %3240 = vdwg.mxu0
        %3241 = vst.msk [vmem:[%s1798] sm:$0x1] %vm1807, %v3238
        %3242 = vst.msk [vmem:[#allocation2] sm:$0x1] %vm1807, 0.0
        %3243 = vst.msk [vmem:[#allocation2 + $0x21] sm:$0x1] %vm1807, 0.0
        %3244 = vst.msk [vmem:[#allocation2 + $0x1] sm:$0xff] %vm1810, %v2463
        %3245 = vst.msk [vmem:[#allocation2 + $0x9] sm:$0xff] %vm1810, %v2468
        %3246 = vst.msk [vmem:[#allocation2 + $0x11] sm:$0xff] %vm1810, %v2473
        %3247 = vst.msk [vmem:[#allocation2 + $0x19] sm:$0xff] %vm1810, %v2478
        %v3248 = vld [vmem:[#allocation2] sm:$0xff]
        %v3249 = vld [vmem:[#allocation2 + $0x8] sm:$0xff]
        %v3250 = vld [vmem:[#allocation2 + $0x10] sm:$0xff]
        %v3251 = vld [vmem:[#allocation2 + $0x18] sm:$0xff]
        %v3252 = vpack.c.bf16 %v3249, %v3248
        %v3253 = vpack.c.bf16 %v3251, %v3250
        %v3254 = vld [vmem:[#allocation41] sm:$0xf]
        %v3255 = vld [vmem:[#allocation41 + $0x4] sm:$0xf]
        %v3256 = vld [vmem:[#allocation41 + $0x8] sm:$0xf]
        %v3257 = vld [vmem:[#allocation41 + $0xc] sm:$0xf]
        %v3258 = vld [vmem:[#allocation2 + $0x1] sm:$0xff]
        %v3259 = vld [vmem:[#allocation2 + $0x9] sm:$0xff]
        %v3260 = vld [vmem:[#allocation2 + $0x11] sm:$0xff]
        %v3261 = vld [vmem:[#allocation2 + $0x19] sm:$0xff]
        %v3262 = vpack.c.bf16 %v3259, %v3258
        %v3263 = vpack.c.bf16 %v3261, %v3260
        %s3264 = scalar_lea.vmem [#allocation41], 16
        %v3265 = vld [vmem:[%s3264] sm:$0xf]
        %v3266 = vld [vmem:[%s3264 + $0x4] sm:$0xf]
        %v3267 = vld [vmem:[%s3264 + $0x8] sm:$0xf]
        %v3268 = vld [vmem:[%s3264 + $0xc] sm:$0xf]
        %v3273 = vunpack.c.l.b16 %v3265
        %v3274 = vunpack.c.l.b16 %v3266
        %v3275 = vunpack.c.l.b16 %v3267
        %v3276 = vunpack.c.l.b16 %v3268
        %v3277 = vpack.c.b16 %v3274, %v3273
        %v3278 = vpack.c.b16 %v3276, %v3275
        %v3282 = vsel %vm1810, %v3262, 0
        %v3285 = vsel %vm1810, %v3263, 0
        %3287 = vmatprep.subr.bf16.mxu0 0
        %3288 = vmatpush1.bf16.msra.mxu0 %v3277
        %3289 = vmatprep.subr.bf16.mxu0 0
        %3290 = vmatpush1.bf16.msra.mxu0 %v3278
        %3291 = vmatprep.subr.bf16.mxu0 0
        %3292 = vmatpush1.bf16.msra.mxu0 0
        %3293 = vmatprep.subr.bf16.mxu0 0
        %3294 = vmatpush1.bf16.msra.mxu0 0
        %3295 = vmatprep.subr.bf16.mxu0 0
        %3296 = vmatpush1.bf16.msra.mxu0 0
        %3297 = vmatprep.subr.bf16.mxu0 0
        %3298 = vmatpush1.bf16.msra.mxu0 0
        %3299 = vmatprep.subr.bf16.mxu0 0
        %3300 = vmatpush1.bf16.msra.mxu0 0
        %3301 = vmatprep.subr.bf16.mxu0 0
        %3302 = vmatpush1.bf16.msra.mxu0 0
        %3303 = vmatprep.subr.bf16.mxu0 0
        %3304 = vmatpush1.bf16.msra.mxu0 0
        %3305 = vmatprep.subr.bf16.mxu0 0
        %3306 = vmatpush1.bf16.msra.mxu0 0
        %3307 = vmatprep.subr.bf16.mxu0 0
        %3308 = vmatpush1.bf16.msra.mxu0 0
        %3309 = vmatprep.subr.bf16.mxu0 0
        %3310 = vmatpush1.bf16.msra.mxu0 0
        %3311 = vmatprep.subr.bf16.mxu0 0
        %3312 = vmatpush1.bf16.msra.mxu0 0
        %3313 = vmatprep.subr.bf16.mxu0 0
        %3314 = vmatpush1.bf16.msra.mxu0 0
        %3315 = vmatprep.subr.bf16.mxu0 0
        %3316 = vmatpush1.bf16.msra.mxu0 0
        %3317 = vmatprep.subr.bf16.mxu0 0
        %3318 = vmatpush1.bf16.msra.mxu0 0
        %3319 = vmatprep.mubr.bf16.mxu0 0
        %3320 = vmatmul.mubr.bf16.gmra.mrb[0].mxu0 %v3282
        %v3321 = vpop.f32.mrb[0].mxu0
        %v3322 = vadd.f32 0.0, %v3321
        %v3323 = vpop.f32.mrb[0].mxu0
        %v3324 = vpop.f32.mrb[0].mxu0
        %v3325 = vadd.f32 0.0, %v3324
        %v3326 = vpop.f32.mrb[0].mxu0
        %3327 = vmatprep.mubr.bf16.mxu0 0
        %3328 = vmatmul.mubr.bf16.gmra.mrb[0].mxu0 %v3285
        %v3329 = vpop.f32.mrb[0].mxu0
        %v3330 = vadd.f32 0.0, %v3329
        %v3331 = vpop.f32.mrb[0].mxu0
        %v3332 = vpop.f32.mrb[0].mxu0
        %v3333 = vadd.f32 0.0, %v3332
        %v3334 = vpop.f32.mrb[0].mxu0
        %3335 = vdwg.mxu0
        %v3340 = vunpack.c.l.b16 %v3254
        %v3341 = vunpack.c.l.b16 %v3255
        %v3342 = vunpack.c.l.b16 %v3256
        %v3343 = vunpack.c.l.b16 %v3257
        %v3344 = vpack.c.b16 %v3341, %v3340
        %v3345 = vpack.c.b16 %v3343, %v3342
        %v3349 = vsel %vm1810, %v3252, 0
        %v3352 = vsel %vm1810, %v3253, 0
        %3354 = vmatprep.subr.bf16.mxu0 0
        %3355 = vmatpush1.bf16.msra.mxu0 %v3344
        %3356 = vmatprep.subr.bf16.mxu0 0
        %3357 = vmatpush1.bf16.msra.mxu0 %v3345
        %3358 = vmatprep.subr.bf16.mxu0 0
        %3359 = vmatpush1.bf16.msra.mxu0 0
        %3360 = vmatprep.subr.bf16.mxu0 0
        %3361 = vmatpush1.bf16.msra.mxu0 0
        %3362 = vmatprep.subr.bf16.mxu0 0
        %3363 = vmatpush1.bf16.msra.mxu0 0
        %3364 = vmatprep.subr.bf16.mxu0 0
        %3365 = vmatpush1.bf16.msra.mxu0 0
        %3366 = vmatprep.subr.bf16.mxu0 0
        %3367 = vmatpush1.bf16.msra.mxu0 0
        %3368 = vmatprep.subr.bf16.mxu0 0
        %3369 = vmatpush1.bf16.msra.mxu0 0
        %3370 = vmatprep.subr.bf16.mxu0 0
        %3371 = vmatpush1.bf16.msra.mxu0 0
        %3372 = vmatprep.subr.bf16.mxu0 0
        %3373 = vmatpush1.bf16.msra.mxu0 0
        %3374 = vmatprep.subr.bf16.mxu0 0
        %3375 = vmatpush1.bf16.msra.mxu0 0
        %3376 = vmatprep.subr.bf16.mxu0 0
        %3377 = vmatpush1.bf16.msra.mxu0 0
        %3378 = vmatprep.subr.bf16.mxu0 0
        %3379 = vmatpush1.bf16.msra.mxu0 0
        %3380 = vmatprep.subr.bf16.mxu0 0
        %3381 = vmatpush1.bf16.msra.mxu0 0
        %3382 = vmatprep.subr.bf16.mxu0 0
        %3383 = vmatpush1.bf16.msra.mxu0 0
        %3384 = vmatprep.subr.bf16.mxu0 0
        %3385 = vmatpush1.bf16.msra.mxu0 0
        %3386 = vmatprep.mubr.bf16.mxu0 0
        %3387 = vmatmul.mubr.bf16.gmra.mrb[0].mxu0 %v3349
        %v3388 = vpop.f32.mrb[0].mxu0
        %v3389 = vadd.f32 %v3322, %v3388
        %v3390 = vpop.f32.mrb[0].mxu0
        %v3391 = vpop.f32.mrb[0].mxu0
        %v3392 = vadd.f32 %v3325, %v3391
        %v3393 = vpop.f32.mrb[0].mxu0
        %3394 = vmatprep.mubr.bf16.mxu0 0
        %3395 = vmatmul.mubr.bf16.gmra.mrb[0].mxu0 %v3352
        %v3396 = vpop.f32.mrb[0].mxu0
        %v3397 = vadd.f32 %v3330, %v3396
        %v3398 = vpop.f32.mrb[0].mxu0
        %v3399 = vpop.f32.mrb[0].mxu0
        %v3400 = vadd.f32 %v3333, %v3399
        %v3401 = vpop.f32.mrb[0].mxu0
        %3402 = vdwg.mxu0
        %v3403 = vld [vmem:[#allocation2 + $0x2] sm:$0xff]
        %v3404 = vld [vmem:[#allocation2 + $0xa] sm:$0xff]
        %v3405 = vld [vmem:[#allocation2 + $0x12] sm:$0xff]
        %v3406 = vld [vmem:[#allocation2 + $0x1a] sm:$0xff]
        %v3407 = vpack.c.bf16 %v3404, %v3403
        %v3408 = vpack.c.bf16 %v3406, %v3405
        %s3409 = scalar_lea.vmem [#allocation41], 32
        %v3410 = vld [vmem:[%s3409] sm:$0xf]
        %v3411 = vld [vmem:[%s3409 + $0x4] sm:$0xf]
        %v3412 = vld [vmem:[%s3409 + $0x8] sm:$0xf]
        %v3413 = vld [vmem:[%s3409 + $0xc] sm:$0xf]
        %v3418 = vunpack.c.l.b16 %v3410
        %v3419 = vunpack.c.l.b16 %v3411
        %v3420 = vunpack.c.l.b16 %v3412
        %v3421 = vunpack.c.l.b16 %v3413
        %v3422 = vpack.c.b16 %v3419, %v3418
        %v3423 = vpack.c.b16 %v3421, %v3420
        %v3427 = vsel %vm1810, %v3407, 0
        %v3430 = vsel %vm1810, %v3408, 0
        %3432 = vmatprep.subr.bf16.mxu0 0
        %3433 = vmatpush1.bf16.msra.mxu0 %v3422
        %3434 = vmatprep.subr.bf16.mxu0 0
        %3435 = vmatpush1.bf16.msra.mxu0 %v3423
        %3436 = vmatprep.subr.bf16.mxu0 0
        %3437 = vmatpush1.bf16.msra.mxu0 0
        %3438 = vmatprep.subr.bf16.mxu0 0
        %3439 = vmatpush1.bf16.msra.mxu0 0
        %3440 = vmatprep.subr.bf16.mxu0 0
        %3441 = vmatpush1.bf16.msra.mxu0 0
        %3442 = vmatprep.subr.bf16.mxu0 0
        %3443 = vmatpush1.bf16.msra.mxu0 0
        %3444 = vmatprep.subr.bf16.mxu0 0
        %3445 = vmatpush1.bf16.msra.mxu0 0
        %3446 = vmatprep.subr.bf16.mxu0 0
        %3447 = vmatpush1.bf16.msra.mxu0 0
        %3448 = vmatprep.subr.bf16.mxu0 0
        %3449 = vmatpush1.bf16.msra.mxu0 0
        %3450 = vmatprep.subr.bf16.mxu0 0
        %3451 = vmatpush1.bf16.msra.mxu0 0
        %3452 = vmatprep.subr.bf16.mxu0 0
        %3453 = vmatpush1.bf16.msra.mxu0 0
        %3454 = vmatprep.subr.bf16.mxu0 0
        %3455 = vmatpush1.bf16.msra.mxu0 0
        %3456 = vmatprep.subr.bf16.mxu0 0
        %3457 = vmatpush1.bf16.msra.mxu0 0
        %3458 = vmatprep.subr.bf16.mxu0 0
        %3459 = vmatpush1.bf16.msra.mxu0 0
        %3460 = vmatprep.subr.bf16.mxu0 0
        %3461 = vmatpush1.bf16.msra.mxu0 0
        %3462 = vmatprep.subr.bf16.mxu0 0
        %3463 = vmatpush1.bf16.msra.mxu0 0
        %3464 = vmatprep.mubr.bf16.mxu0 0
        %3465 = vmatmul.mubr.bf16.gmra.mrb[0].mxu0 %v3427
        %v3466 = vpop.f32.mrb[0].mxu0
        %v3467 = vadd.f32 0.0, %v3466
        %v3468 = vpop.f32.mrb[0].mxu0
        %v3469 = vpop.f32.mrb[0].mxu0
        %v3470 = vadd.f32 0.0, %v3469
        %v3471 = vpop.f32.mrb[0].mxu0
        %3472 = vmatprep.mubr.bf16.mxu0 0
        %3473 = vmatmul.mubr.bf16.gmra.mrb[0].mxu0 %v3430
        %v3474 = vpop.f32.mrb[0].mxu0
        %v3475 = vadd.f32 0.0, %v3474
        %v3476 = vpop.f32.mrb[0].mxu0
        %v3477 = vpop.f32.mrb[0].mxu0
        %v3478 = vadd.f32 0.0, %v3477
        %v3479 = vpop.f32.mrb[0].mxu0
        %3480 = vdwg.mxu0
        %v3481 = vadd.f32 %v3389, %v3467
        %v3482 = vadd.f32 %v3392, %v3470
        %v3483 = vadd.f32 %v3397, %v3475
        %v3484 = vadd.f32 %v3400, %v3478
        %v3485 = vld [vmem:[#allocation42] sm:$0x1]
        %v3487 = vlaneseq
        %v3488 = vshrl.u32 %v3487, 7
        %v3489 = vsub.s32 0, %v3488
        %v3490 = vrot.slane %v3485, %v3489
        %v3492 = vadd.f32 %v3481, %v3490
        %v3493 = vadd.f32 %v3482, %v3490
        %v3494 = vadd.f32 %v3483, %v3490
        %v3495 = vadd.f32 %v3484, %v3490
        %v3496 = vmax.f32 %v3492, 0.0
        %v3497 = vmax.f32 %v3493, 0.0
        %v3498 = vmax.f32 %v3494, 0.0
        %v3499 = vmax.f32 %v3495, 0.0
        %v3500 = vsel %vm1810, %v3496, 0.0
        %3501 = vadd.xlane.f32.xlu0 %v3500
        %v3502 = vpop.xlane.xlu0 %3501
        %v3503 = vsel %vm1810, %v3497, 0.0
        %3504 = vadd.xlane.f32.xlu0 %v3503
        %v3505 = vpop.xlane.xlu0 %3504
        %v3506 = vsel %vm1810, %v3498, 0.0
        %3507 = vadd.xlane.f32.xlu0 %v3506
        %v3508 = vpop.xlane.xlu0 %3507
        %v3509 = vsel %vm1810, %v3499, 0.0
        %3510 = vadd.xlane.f32.xlu0 %v3509
        %v3511 = vpop.xlane.xlu0 %3510
        %v3512 = vmul.f32 %v3502, %v2010
        %v3513 = vmul.f32 %v3505, %v2010
        %v3514 = vmul.f32 %v3508, %v2010
        %v3515 = vmul.f32 %v3511, %v2010
        %v3516 = vsub.f32 %v3496, %v3512
        %v3517 = vsub.f32 %v3497, %v3513
        %v3518 = vsub.f32 %v3498, %v3514
        %v3519 = vsub.f32 %v3499, %v3515
        %v3520 = vmul.f32 %v3516, %v3516
        %v3521 = vmul.f32 %v3517, %v3517
        %v3522 = vmul.f32 %v3518, %v3518
        %v3523 = vmul.f32 %v3519, %v3519
        %v3524 = vsel %vm1810, %v3520, 0.0
        %3525 = vadd.xlane.f32.xlu0 %v3524
        %v3526 = vpop.xlane.xlu0 %3525
        %v3527 = vsel %vm1810, %v3521, 0.0
        %3528 = vadd.xlane.f32.xlu0 %v3527
        %v3529 = vpop.xlane.xlu0 %3528
        %v3530 = vsel %vm1810, %v3522, 0.0
        %3531 = vadd.xlane.f32.xlu0 %v3530
        %v3532 = vpop.xlane.xlu0 %3531
        %v3533 = vsel %vm1810, %v3523, 0.0
        %3534 = vadd.xlane.f32.xlu0 %v3533
        %v3535 = vpop.xlane.xlu0 %3534
        %v3536 = vmul.f32 %v3526, %v2010
        %v3537 = vmul.f32 %v3529, %v2010
        %v3538 = vmul.f32 %v3532, %v2010
        %v3539 = vmul.f32 %v3535, %v2010
        %v3540 = vadd.f32 %v3536, 1e-05
        %v3541 = vadd.f32 %v3537, 1e-05
        %v3542 = vadd.f32 %v3538, 1e-05
        %v3543 = vadd.f32 %v3539, 1e-05
        %v3544 = vrsqrt.pop %v3540
        %v3545 = vrsqrt.pop %v3541
        %v3546 = vrsqrt.pop %v3542
        %v3547 = vrsqrt.pop %v3543
        %v3548 = vmul.f32 %v3516, %v3544
        %v3549 = vmul.f32 %v3517, %v3545
        %v3550 = vmul.f32 %v3518, %v3546
        %v3551 = vmul.f32 %v3519, %v3547
        %v3552 = vld [vmem:[#allocation44] sm:$0x1]
        %v3554 = vlaneseq
        %v3555 = vshrl.u32 %v3554, 7
        %v3556 = vsub.s32 0, %v3555
        %v3557 = vrot.slane %v3552, %v3556
        %v3559 = vmul.f32 %v3548, %v3557
        %v3560 = vmul.f32 %v3549, %v3557
        %v3561 = vmul.f32 %v3550, %v3557
        %v3562 = vmul.f32 %v3551, %v3557
        %v3563 = vld [vmem:[#allocation45] sm:$0x1]
        %v3565 = vlaneseq
        %v3566 = vshrl.u32 %v3565, 7
        %v3567 = vsub.s32 0, %v3566
        %v3568 = vrot.slane %v3563, %v3567
        %v3570 = vadd.f32 %v3559, %v3568
        %v3571 = vadd.f32 %v3560, %v3568
        %v3572 = vadd.f32 %v3561, %v3568
        %v3573 = vadd.f32 %v3562, %v3568
        %3574 = vst.msk [vmem:[#allocation2] sm:$0x1] %vm1807, 0.0
        %3575 = vst.msk [vmem:[#allocation2 + $0x21] sm:$0x1] %vm1807, 0.0
        %3576 = vst.msk [vmem:[#allocation2 + $0x1] sm:$0xff] %vm1810, %v3570
        %3577 = vst.msk [vmem:[#allocation2 + $0x9] sm:$0xff] %vm1810, %v3571
        %3578 = vst.msk [vmem:[#allocation2 + $0x11] sm:$0xff] %vm1810, %v3572
        %3579 = vst.msk [vmem:[#allocation2 + $0x19] sm:$0xff] %vm1810, %v3573
        %v3580 = vld [vmem:[#allocation2] sm:$0xff]
        %v3581 = vld [vmem:[#allocation2 + $0x8] sm:$0xff]
        %v3582 = vld [vmem:[#allocation2 + $0x10] sm:$0xff]
        %v3583 = vld [vmem:[#allocation2 + $0x18] sm:$0xff]
        %v3584 = vpack.c.bf16 %v3581, %v3580
        %v3585 = vpack.c.bf16 %v3583, %v3582
        %v3586 = vld [vmem:[#allocation47] sm:$0xf]
        %v3587 = vld [vmem:[#allocation47 + $0x4] sm:$0xf]
        %v3588 = vld [vmem:[#allocation47 + $0x8] sm:$0xf]
        %v3589 = vld [vmem:[#allocation47 + $0xc] sm:$0xf]
        %v3590 = vld [vmem:[#allocation2 + $0x1] sm:$0xff]
        %v3591 = vld [vmem:[#allocation2 + $0x9] sm:$0xff]
        %v3592 = vld [vmem:[#allocation2 + $0x11] sm:$0xff]
        %v3593 = vld [vmem:[#allocation2 + $0x19] sm:$0xff]
        %v3594 = vpack.c.bf16 %v3591, %v3590
        %v3595 = vpack.c.bf16 %v3593, %v3592
        %s3596 = scalar_lea.vmem [#allocation47], 16
        %v3597 = vld [vmem:[%s3596] sm:$0xf]
        %v3598 = vld [vmem:[%s3596 + $0x4] sm:$0xf]
        %v3599 = vld [vmem:[%s3596 + $0x8] sm:$0xf]
        %v3600 = vld [vmem:[%s3596 + $0xc] sm:$0xf]
        %v3605 = vunpack.c.l.b16 %v3597
        %v3606 = vunpack.c.l.b16 %v3598
        %v3607 = vunpack.c.l.b16 %v3599
        %v3608 = vunpack.c.l.b16 %v3600
        %v3609 = vpack.c.b16 %v3606, %v3605
        %v3610 = vpack.c.b16 %v3608, %v3607
        %v3614 = vsel %vm1810, %v3594, 0
        %v3617 = vsel %vm1810, %v3595, 0
        %3619 = vmatprep.subr.bf16.mxu0 0
        %3620 = vmatpush1.bf16.msra.mxu0 %v3609
        %3621 = vmatprep.subr.bf16.mxu0 0
        %3622 = vmatpush1.bf16.msra.mxu0 %v3610
        %3623 = vmatprep.subr.bf16.mxu0 0
        %3624 = vmatpush1.bf16.msra.mxu0 0
        %3625 = vmatprep.subr.bf16.mxu0 0
        %3626 = vmatpush1.bf16.msra.mxu0 0
        %3627 = vmatprep.subr.bf16.mxu0 0
        %3628 = vmatpush1.bf16.msra.mxu0 0
        %3629 = vmatprep.subr.bf16.mxu0 0
        %3630 = vmatpush1.bf16.msra.mxu0 0
        %3631 = vmatprep.subr.bf16.mxu0 0
        %3632 = vmatpush1.bf16.msra.mxu0 0
        %3633 = vmatprep.subr.bf16.mxu0 0
        %3634 = vmatpush1.bf16.msra.mxu0 0
        %3635 = vmatprep.subr.bf16.mxu0 0
        %3636 = vmatpush1.bf16.msra.mxu0 0
        %3637 = vmatprep.subr.bf16.mxu0 0
        %3638 = vmatpush1.bf16.msra.mxu0 0
        %3639 = vmatprep.subr.bf16.mxu0 0
        %3640 = vmatpush1.bf16.msra.mxu0 0
        %3641 = vmatprep.subr.bf16.mxu0 0
        %3642 = vmatpush1.bf16.msra.mxu0 0
        %3643 = vmatprep.subr.bf16.mxu0 0
        %3644 = vmatpush1.bf16.msra.mxu0 0
        %3645 = vmatprep.subr.bf16.mxu0 0
        %3646 = vmatpush1.bf16.msra.mxu0 0
        %3647 = vmatprep.subr.bf16.mxu0 0
        %3648 = vmatpush1.bf16.msra.mxu0 0
        %3649 = vmatprep.subr.bf16.mxu0 0
        %3650 = vmatpush1.bf16.msra.mxu0 0
        %3651 = vmatprep.mubr.bf16.mxu0 0
        %3652 = vmatmul.mubr.bf16.gmra.mrb[0].mxu0 %v3614
        %v3653 = vpop.f32.mrb[0].mxu0
        %v3654 = vadd.f32 0.0, %v3653
        %v3655 = vpop.f32.mrb[0].mxu0
        %v3656 = vpop.f32.mrb[0].mxu0
        %v3657 = vadd.f32 0.0, %v3656
        %v3658 = vpop.f32.mrb[0].mxu0
        %3659 = vmatprep.mubr.bf16.mxu0 0
        %3660 = vmatmul.mubr.bf16.gmra.mrb[0].mxu0 %v3617
        %v3661 = vpop.f32.mrb[0].mxu0
        %v3662 = vadd.f32 0.0, %v3661
        %v3663 = vpop.f32.mrb[0].mxu0
        %v3664 = vpop.f32.mrb[0].mxu0
        %v3665 = vadd.f32 0.0, %v3664
        %v3666 = vpop.f32.mrb[0].mxu0
        %3667 = vdwg.mxu0
        %v3672 = vunpack.c.l.b16 %v3586
        %v3673 = vunpack.c.l.b16 %v3587
        %v3674 = vunpack.c.l.b16 %v3588
        %v3675 = vunpack.c.l.b16 %v3589
        %v3676 = vpack.c.b16 %v3673, %v3672
        %v3677 = vpack.c.b16 %v3675, %v3674
        %v3681 = vsel %vm1810, %v3584, 0
        %v3684 = vsel %vm1810, %v3585, 0
        %3686 = vmatprep.subr.bf16.mxu0 0
        %3687 = vmatpush1.bf16.msra.mxu0 %v3676
        %3688 = vmatprep.subr.bf16.mxu0 0
        %3689 = vmatpush1.bf16.msra.mxu0 %v3677
        %3690 = vmatprep.subr.bf16.mxu0 0
        %3691 = vmatpush1.bf16.msra.mxu0 0
        %3692 = vmatprep.subr.bf16.mxu0 0
        %3693 = vmatpush1.bf16.msra.mxu0 0
        %3694 = vmatprep.subr.bf16.mxu0 0
        %3695 = vmatpush1.bf16.msra.mxu0 0
        %3696 = vmatprep.subr.bf16.mxu0 0
        %3697 = vmatpush1.bf16.msra.mxu0 0
        %3698 = vmatprep.subr.bf16.mxu0 0
        %3699 = vmatpush1.bf16.msra.mxu0 0
        %3700 = vmatprep.subr.bf16.mxu0 0
        %3701 = vmatpush1.bf16.msra.mxu0 0
        %3702 = vmatprep.subr.bf16.mxu0 0
        %3703 = vmatpush1.bf16.msra.mxu0 0
        %3704 = vmatprep.subr.bf16.mxu0 0
        %3705 = vmatpush1.bf16.msra.mxu0 0
        %3706 = vmatprep.subr.bf16.mxu0 0
        %3707 = vmatpush1.bf16.msra.mxu0 0
        %3708 = vmatprep.subr.bf16.mxu0 0
        %3709 = vmatpush1.bf16.msra.mxu0 0
        %3710 = vmatprep.subr.bf16.mxu0 0
        %3711 = vmatpush1.bf16.msra.mxu0 0
        %3712 = vmatprep.subr.bf16.mxu0 0
        %3713 = vmatpush1.bf16.msra.mxu0 0
        %3714 = vmatprep.subr.bf16.mxu0 0
        %3715 = vmatpush1.bf16.msra.mxu0 0
        %3716 = vmatprep.subr.bf16.mxu0 0
        %3717 = vmatpush1.bf16.msra.mxu0 0
        %3718 = vmatprep.mubr.bf16.mxu0 0
        %3719 = vmatmul.mubr.bf16.gmra.mrb[0].mxu0 %v3681
        %v3720 = vpop.f32.mrb[0].mxu0
        %v3721 = vadd.f32 %v3654, %v3720
        %v3722 = vpop.f32.mrb[0].mxu0
        %v3723 = vpop.f32.mrb[0].mxu0
        %v3724 = vadd.f32 %v3657, %v3723
        %v3725 = vpop.f32.mrb[0].mxu0
        %3726 = vmatprep.mubr.bf16.mxu0 0
        %3727 = vmatmul.mubr.bf16.gmra.mrb[0].mxu0 %v3684
        %v3728 = vpop.f32.mrb[0].mxu0
        %v3729 = vadd.f32 %v3662, %v3728
        %v3730 = vpop.f32.mrb[0].mxu0
        %v3731 = vpop.f32.mrb[0].mxu0
        %v3732 = vadd.f32 %v3665, %v3731
        %v3733 = vpop.f32.mrb[0].mxu0
        %3734 = vdwg.mxu0
        %v3735 = vld [vmem:[#allocation2 + $0x2] sm:$0xff]
        %v3736 = vld [vmem:[#allocation2 + $0xa] sm:$0xff]
        %v3737 = vld [vmem:[#allocation2 + $0x12] sm:$0xff]
        %v3738 = vld [vmem:[#allocation2 + $0x1a] sm:$0xff]
        %v3739 = vpack.c.bf16 %v3736, %v3735
        %v3740 = vpack.c.bf16 %v3738, %v3737
        %s3741 = scalar_lea.vmem [#allocation47], 32
        %v3742 = vld [vmem:[%s3741] sm:$0xf]
        %v3743 = vld [vmem:[%s3741 + $0x4] sm:$0xf]
        %v3744 = vld [vmem:[%s3741 + $0x8] sm:$0xf]
        %v3745 = vld [vmem:[%s3741 + $0xc] sm:$0xf]
        %v3750 = vunpack.c.l.b16 %v3742
        %v3751 = vunpack.c.l.b16 %v3743
        %v3752 = vunpack.c.l.b16 %v3744
        %v3753 = vunpack.c.l.b16 %v3745
        %v3754 = vpack.c.b16 %v3751, %v3750
        %v3755 = vpack.c.b16 %v3753, %v3752
        %v3759 = vsel %vm1810, %v3739, 0
        %v3762 = vsel %vm1810, %v3740, 0
        %3764 = vmatprep.subr.bf16.mxu0 0
        %3765 = vmatpush1.bf16.msra.mxu0 %v3754
        %3766 = vmatprep.subr.bf16.mxu0 0
        %3767 = vmatpush1.bf16.msra.mxu0 %v3755
        %3768 = vmatprep.subr.bf16.mxu0 0
        %3769 = vmatpush1.bf16.msra.mxu0 0
        %3770 = vmatprep.subr.bf16.mxu0 0
        %3771 = vmatpush1.bf16.msra.mxu0 0
        %3772 = vmatprep.subr.bf16.mxu0 0
        %3773 = vmatpush1.bf16.msra.mxu0 0
        %3774 = vmatprep.subr.bf16.mxu0 0
        %3775 = vmatpush1.bf16.msra.mxu0 0
        %3776 = vmatprep.subr.bf16.mxu0 0
        %3777 = vmatpush1.bf16.msra.mxu0 0
        %3778 = vmatprep.subr.bf16.mxu0 0
        %3779 = vmatpush1.bf16.msra.mxu0 0
        %3780 = vmatprep.subr.bf16.mxu0 0
        %3781 = vmatpush1.bf16.msra.mxu0 0
        %3782 = vmatprep.subr.bf16.mxu0 0
        %3783 = vmatpush1.bf16.msra.mxu0 0
        %3784 = vmatprep.subr.bf16.mxu0 0
        %3785 = vmatpush1.bf16.msra.mxu0 0
        %3786 = vmatprep.subr.bf16.mxu0 0
        %3787 = vmatpush1.bf16.msra.mxu0 0
        %3788 = vmatprep.subr.bf16.mxu0 0
        %3789 = vmatpush1.bf16.msra.mxu0 0
        %3790 = vmatprep.subr.bf16.mxu0 0
        %3791 = vmatpush1.bf16.msra.mxu0 0
        %3792 = vmatprep.subr.bf16.mxu0 0
        %3793 = vmatpush1.bf16.msra.mxu0 0
        %3794 = vmatprep.subr.bf16.mxu0 0
        %3795 = vmatpush1.bf16.msra.mxu0 0
        %3796 = vmatprep.mubr.bf16.mxu0 0
        %3797 = vmatmul.mubr.bf16.gmra.mrb[0].mxu0 %v3759
        %v3798 = vpop.f32.mrb[0].mxu0
        %v3799 = vadd.f32 0.0, %v3798
        %v3800 = vpop.f32.mrb[0].mxu0
        %v3801 = vpop.f32.mrb[0].mxu0
        %v3802 = vadd.f32 0.0, %v3801
        %v3803 = vpop.f32.mrb[0].mxu0
        %3804 = vmatprep.mubr.bf16.mxu0 0
        %3805 = vmatmul.mubr.bf16.gmra.mrb[0].mxu0 %v3762
        %v3806 = vpop.f32.mrb[0].mxu0
        %v3807 = vadd.f32 0.0, %v3806
        %v3808 = vpop.f32.mrb[0].mxu0
        %v3809 = vpop.f32.mrb[0].mxu0
        %v3810 = vadd.f32 0.0, %v3809
        %v3811 = vpop.f32.mrb[0].mxu0
        %3812 = vdwg.mxu0
        %v3813 = vadd.f32 %v3721, %v3799
        %v3814 = vadd.f32 %v3724, %v3802
        %v3815 = vadd.f32 %v3729, %v3807
        %v3816 = vadd.f32 %v3732, %v3810
        %v3817 = vld [vmem:[#allocation48] sm:$0x1]
        %v3819 = vlaneseq
        %v3820 = vshrl.u32 %v3819, 7
        %v3821 = vsub.s32 0, %v3820
        %v3822 = vrot.slane %v3817, %v3821
        %v3824 = vadd.f32 %v3813, %v3822
        %v3825 = vadd.f32 %v3814, %v3822
        %v3826 = vadd.f32 %v3815, %v3822
        %v3827 = vadd.f32 %v3816, %v3822
        %v3828 = vmax.f32 %v3824, 0.0
        %v3829 = vmax.f32 %v3825, 0.0
        %v3830 = vmax.f32 %v3826, 0.0
        %v3831 = vmax.f32 %v3827, 0.0
        %v3832 = vsel %vm1810, %v3828, 0.0
        %3833 = vadd.xlane.f32.xlu0 %v3832
        %v3834 = vpop.xlane.xlu0 %3833
        %v3835 = vsel %vm1810, %v3829, 0.0
        %3836 = vadd.xlane.f32.xlu0 %v3835
        %v3837 = vpop.xlane.xlu0 %3836
        %v3838 = vsel %vm1810, %v3830, 0.0
        %3839 = vadd.xlane.f32.xlu0 %v3838
        %v3840 = vpop.xlane.xlu0 %3839
        %v3841 = vsel %vm1810, %v3831, 0.0
        %3842 = vadd.xlane.f32.xlu0 %v3841
        %v3843 = vpop.xlane.xlu0 %3842
        %v3844 = vmul.f32 %v3834, %v2010
        %v3845 = vmul.f32 %v3837, %v2010
        %v3846 = vmul.f32 %v3840, %v2010
        %v3847 = vmul.f32 %v3843, %v2010
        %v3848 = vsub.f32 %v3828, %v3844
        %v3849 = vsub.f32 %v3829, %v3845
        %v3850 = vsub.f32 %v3830, %v3846
        %v3851 = vsub.f32 %v3831, %v3847
        %v3852 = vmul.f32 %v3848, %v3848
        %v3853 = vmul.f32 %v3849, %v3849
        %v3854 = vmul.f32 %v3850, %v3850
        %v3855 = vmul.f32 %v3851, %v3851
        %v3856 = vsel %vm1810, %v3852, 0.0
        %3857 = vadd.xlane.f32.xlu0 %v3856
        %v3858 = vpop.xlane.xlu0 %3857
        %v3859 = vsel %vm1810, %v3853, 0.0
        %3860 = vadd.xlane.f32.xlu0 %v3859
        %v3861 = vpop.xlane.xlu0 %3860
        %v3862 = vsel %vm1810, %v3854, 0.0
        %3863 = vadd.xlane.f32.xlu0 %v3862
        %v3864 = vpop.xlane.xlu0 %3863
        %v3865 = vsel %vm1810, %v3855, 0.0
        %3866 = vadd.xlane.f32.xlu0 %v3865
        %v3867 = vpop.xlane.xlu0 %3866
        %v3868 = vmul.f32 %v3858, %v2010
        %v3869 = vmul.f32 %v3861, %v2010
        %v3870 = vmul.f32 %v3864, %v2010
        %v3871 = vmul.f32 %v3867, %v2010
        %v3872 = vadd.f32 %v3868, 1e-05
        %v3873 = vadd.f32 %v3869, 1e-05
        %v3874 = vadd.f32 %v3870, 1e-05
        %v3875 = vadd.f32 %v3871, 1e-05
        %v3876 = vrsqrt.pop %v3872
        %v3877 = vrsqrt.pop %v3873
        %v3878 = vrsqrt.pop %v3874
        %v3879 = vrsqrt.pop %v3875
        %v3880 = vmul.f32 %v3848, %v3876
        %v3881 = vmul.f32 %v3849, %v3877
        %v3882 = vmul.f32 %v3850, %v3878
        %v3883 = vmul.f32 %v3851, %v3879
        %v3884 = vld [vmem:[#allocation50] sm:$0x1]
        %v3886 = vlaneseq
        %v3887 = vshrl.u32 %v3886, 7
        %v3888 = vsub.s32 0, %v3887
        %v3889 = vrot.slane %v3884, %v3888
        %v3891 = vmul.f32 %v3880, %v3889
        %v3892 = vmul.f32 %v3881, %v3889
        %v3893 = vmul.f32 %v3882, %v3889
        %v3894 = vmul.f32 %v3883, %v3889
        %v3895 = vld [vmem:[#allocation51] sm:$0x1]
        %v3897 = vlaneseq
        %v3898 = vshrl.u32 %v3897, 7
        %v3899 = vsub.s32 0, %v3898
        %v3900 = vrot.slane %v3895, %v3899
        %v3902 = vadd.f32 %v3891, %v3900
        %v3903 = vadd.f32 %v3892, %v3900
        %v3904 = vadd.f32 %v3893, %v3900
        %v3905 = vadd.f32 %v3894, %v3900
        %v3906 = vld [vmem:[#allocation53] sm:$0x1]
        %v3907 = vld [vmem:[#allocation5] sm:$0x1]
        %3909 = vset.pattern.permute.xlu0 0
        %3910 = vperm.xlu0 %3909, %v3907
        %v3911 = vpop.permute.xlu0 %3910
        %v3913 = vlaneseq
        %v3914 = vshrl.u32 %v3913, 7
        %v3915 = vsub.s32 0, %v3914
        %v3916 = vrot.slane %v3911, %v3915
        %v3918 = vsel %vm1810, %v3906, 0
        %v3921 = vsel %vm1810, %v3902, 0
        %v3924 = vsel %vm1810, %v3903, 0
        %v3927 = vsel %vm1810, %v3904, 0
        %v3930 = vsel %vm1810, %v3905, 0
        %3932 = vmatprep.subr.mxu0 0.0
        %3933 = vmatpush1.xpose.msra.mxu0 %v3921
        %3934 = vmatprep.subr.mxu0 0.0
        %3935 = vmatpush1.xpose.msra.mxu0 %v3924
        %3936 = vmatprep.subr.mxu0 0.0
        %3937 = vmatpush1.xpose.msra.mxu0 %v3927
        %3938 = vmatprep.subr.mxu0 0.0
        %3939 = vmatpush1.xpose.msra.mxu0 %v3930
        %3940 = vmatprep.subr.mxu0 0.0
        %3941 = vmatpush1.xpose.msra.mxu0 0.0
        %3942 = vmatprep.subr.mxu0 0.0
        %3943 = vmatpush1.xpose.msra.mxu0 0.0
        %3944 = vmatprep.subr.mxu0 0.0
        %3945 = vmatpush1.xpose.msra.mxu0 0.0
        %3946 = vmatprep.subr.mxu0 0.0
        %3947 = vmatpush1.xpose.msra.mxu0 0.0
        %3948 = vmatprep.subr.mxu0 0.0
        %3949 = vmatpush1.xpose.msra.mxu0 0.0
        %3950 = vmatprep.subr.mxu0 0.0
        %3951 = vmatpush1.xpose.msra.mxu0 0.0
        %3952 = vmatprep.subr.mxu0 0.0
        %3953 = vmatpush1.xpose.msra.mxu0 0.0
        %3954 = vmatprep.subr.mxu0 0.0
        %3955 = vmatpush1.xpose.msra.mxu0 0.0
        %3956 = vmatprep.subr.mxu0 0.0
        %3957 = vmatpush1.xpose.msra.mxu0 0.0
        %3958 = vmatprep.subr.mxu0 0.0
        %3959 = vmatpush1.xpose.msra.mxu0 0.0
        %3960 = vmatprep.subr.mxu0 0.0
        %3961 = vmatpush1.xpose.msra.mxu0 0.0
        %3962 = vmatprep.subr.mxu0 0.0
        %3963 = vmatpush1.xpose.msra.mxu0 0.0
        %3964 = vmatprep.subr.mxu0 0.0
        %3965 = vmatpush1.xpose.msra.mxu0 0.0
        %3966 = vmatprep.subr.mxu0 0.0
        %3967 = vmatpush1.xpose.msra.mxu0 0.0
        %3968 = vmatprep.subr.mxu0 0.0
        %3969 = vmatpush1.xpose.msra.mxu0 0.0
        %3970 = vmatprep.subr.mxu0 0.0
        %3971 = vmatpush1.xpose.msra.mxu0 0.0
        %3972 = vmatprep.subr.mxu0 0.0
        %3973 = vmatpush1.xpose.msra.mxu0 0.0
        %3974 = vmatprep.subr.mxu0 0.0
        %3975 = vmatpush1.xpose.msra.mxu0 0.0
        %3976 = vmatprep.subr.mxu0 0.0
        %3977 = vmatpush1.xpose.msra.mxu0 0.0
        %3978 = vmatprep.subr.mxu0 0.0
        %3979 = vmatpush1.xpose.msra.mxu0 0.0
        %3980 = vmatprep.subr.mxu0 0.0
        %3981 = vmatpush1.xpose.msra.mxu0 0.0
        %3982 = vmatprep.subr.mxu0 0.0
        %3983 = vmatpush1.xpose.msra.mxu0 0.0
        %3984 = vmatprep.subr.mxu0 0.0
        %3985 = vmatpush1.xpose.msra.mxu0 0.0
        %3986 = vmatprep.subr.mxu0 0.0
        %3987 = vmatpush1.xpose.msra.mxu0 0.0
        %3988 = vmatprep.subr.mxu0 0.0
        %3989 = vmatpush1.xpose.msra.mxu0 0.0
        %3990 = vmatprep.subr.mxu0 0.0
        %3991 = vmatpush1.xpose.msra.mxu0 0.0
        %3992 = vmatprep.subr.mxu0 0.0
        %3993 = vmatpush1.xpose.msra.mxu0 0.0
        %3994 = vmatprep.subr.mxu0 0.0
        %3995 = vmatpush1.xpose.msra.mxu0 0.0
        %3996 = vmatprep.mubr.f32.mxu0 0.0
        %3997 = vmatmul.mubr.f32.gmra.mrb[0].mxu0 %v3918
        %v3998 = vpop.f32.mrb[0].mxu0
        %v3999 = vadd.f32 %v3916, %v3998
        %v4000 = vpop.f32.mrb[0].mxu0
        %4001 = vdwg.mxu0
        %4002 = vst.msk [vmem:[%s1804] sm:$0x1] %vm1807, %v3999
        %v4003 = vld [vmem:[%s1546] sm:$0xff]
        %v4004 = vld [vmem:[%s1546 + $0x8] sm:$0xff]
        %v4005 = vld [vmem:[%s1546 + $0x10] sm:$0xff]
        %v4006 = vld [vmem:[%s1546 + $0x18] sm:$0xff]
        %v4007 = vld [vmem:[#allocation54] sm:$0x1]
        %4009 = vset.pattern.permute.xlu0 0
        %4010 = vperm.xlu0 %4009, %v4003
        %v4011 = vpop.permute.xlu0 %4010
        %4014 = vset.pattern.permute.xlu0 0
        %4015 = vperm.xlu0 %4014, %v4004
        %v4016 = vpop.permute.xlu0 %4015
        %4019 = vset.pattern.permute.xlu0 0
        %4020 = vperm.xlu0 %4019, %v4005
        %v4021 = vpop.permute.xlu0 %4020
        %4024 = vset.pattern.permute.xlu0 0
        %4025 = vperm.xlu0 %4024, %v4006
        %v4026 = vpop.permute.xlu0 %4025
        %v4029 = vlaneseq
        %v4030 = vshrl.u32 %v4029, 7
        %v4031 = vsub.s32 0, %v4030
        %v4032 = vrot.slane %v4007, %v4031
        %vm4034 = vcmp.gt.f32.partialorder %v4011, %v4032
        %vm4035 = vcmp.gt.f32.partialorder %v4016, %v4032
        %vm4036 = vcmp.gt.f32.partialorder %v4021, %v4032
        %vm4037 = vcmp.gt.f32.partialorder %v4026, %v4032
        %v4038 = vsel %vm4034, 1, 0
        %v4039 = vsel %vm4035, 1, 0
        %v4040 = vsel %vm4036, 1, 0
        %v4041 = vsel %vm4037, 1, 0
        %vm4042 = vcmask 113664
        %v4043 = vsel %vm4042, %v4038, 0
        %v4044 = vand.u32 %v4043, 65535
        %v4045 = vshrl.u32 %v4043, 16
        %v4046 = vcvt.s32.f32 %v4044
        %v4047 = vcvt.s32.f32 %v4045
        %4048 = vadd.xlane.f32.xlu0 %v4046
        %v4049 = vpop.xlane.xlu0 %4048
        %4050 = vadd.xlane.f32.xlu0 %v4047
        %v4051 = vpop.xlane.xlu0 %4050
        %v4052 = vcvt.f32.s32 %v4049
        %v4053 = vcvt.f32.s32 %v4051
        %v4054 = vshll.u32 %v4053, 16
        %v4055 = vadd.s32 %v4054, %v4052
        %v4056 = vsel %vm4042, %v4039, 0
        %v4057 = vand.u32 %v4056, 65535
        %v4058 = vshrl.u32 %v4056, 16
        %v4059 = vcvt.s32.f32 %v4057
        %v4060 = vcvt.s32.f32 %v4058
        %4061 = vadd.xlane.f32.xlu0 %v4059
        %v4062 = vpop.xlane.xlu0 %4061
        %4063 = vadd.xlane.f32.xlu0 %v4060
        %v4064 = vpop.xlane.xlu0 %4063
        %v4065 = vcvt.f32.s32 %v4062
        %v4066 = vcvt.f32.s32 %v4064
        %v4067 = vshll.u32 %v4066, 16
        %v4068 = vadd.s32 %v4067, %v4065
        %v4069 = vsel %vm4042, %v4040, 0
        %v4070 = vand.u32 %v4069, 65535
        %v4071 = vshrl.u32 %v4069, 16
        %v4072 = vcvt.s32.f32 %v4070
        %v4073 = vcvt.s32.f32 %v4071
        %4074 = vadd.xlane.f32.xlu0 %v4072
        %v4075 = vpop.xlane.xlu0 %4074
        %4076 = vadd.xlane.f32.xlu0 %v4073
        %v4077 = vpop.xlane.xlu0 %4076
        %v4078 = vcvt.f32.s32 %v4075
        %v4079 = vcvt.f32.s32 %v4077
        %v4080 = vshll.u32 %v4079, 16
        %v4081 = vadd.s32 %v4080, %v4078
        %v4082 = vsel %vm4042, %v4041, 0
        %v4083 = vand.u32 %v4082, 65535
        %v4084 = vshrl.u32 %v4082, 16
        %v4085 = vcvt.s32.f32 %v4083
        %v4086 = vcvt.s32.f32 %v4084
        %4087 = vadd.xlane.f32.xlu0 %v4085
        %v4088 = vpop.xlane.xlu0 %4087
        %4089 = vadd.xlane.f32.xlu0 %v4086
        %v4090 = vpop.xlane.xlu0 %4089
        %v4091 = vcvt.f32.s32 %v4088
        %v4092 = vcvt.f32.s32 %v4090
        %v4093 = vshll.u32 %v4092, 16
        %v4094 = vadd.s32 %v4093, %v4091
        %vm4095 = vcmp.eq.s32.totalorder %v4055, %v2354
        %vm4096 = vcmp.eq.s32.totalorder %v4068, %v2354
        %vm4097 = vcmp.eq.s32.totalorder %v4081, %v2354
        %vm4098 = vcmp.eq.s32.totalorder %v4094, %v2354
        %v4099 = vsel %vm4095, 1, 0
        %v4100 = vsel %vm4096, 1, 0
        %v4101 = vsel %vm4097, 1, 0
        %v4102 = vsel %vm4098, 1, 0
        %v4103 = vcvt.s32.f32 %v4099
        %v4104 = vcvt.s32.f32 %v4100
        %v4105 = vcvt.s32.f32 %v4101
        %v4106 = vcvt.s32.f32 %v4102
        %v4107 = vpack.c.bf16 %v4104, %v4103
        %v4108 = vpack.c.bf16 %v4106, %v4105
        %v4109 = vld [vmem:[#allocation57] sm:$0xf]
        %v4110 = vld [vmem:[#allocation57 + $0x4] sm:$0xf]
        %v4113 = vunpack.c.l.b16 %v4109
        %v4114 = vunpack.c.l.b16 %v4110
        %v4115 = vpack.c.b16 %v4114, %v4113
        %vm4117 = vcmask 130048
        %v4119 = vsel %vm4117, %v4107, 0
        %v4122 = vsel %vm4117, %v4108, 0
        %4124 = vmatprep.subr.bf16.mxu0 0
        %4125 = vmatpush1.bf16.msra.mxu0 %v4115
        %4126 = vmatprep.subr.bf16.mxu0 0
        %4127 = vmatpush1.bf16.msra.mxu0 0
        %4128 = vmatprep.subr.bf16.mxu0 0
        %4129 = vmatpush1.bf16.msra.mxu0 0
        %4130 = vmatprep.subr.bf16.mxu0 0
        %4131 = vmatpush1.bf16.msra.mxu0 0
        %4132 = vmatprep.subr.bf16.mxu0 0
        %4133 = vmatpush1.bf16.msra.mxu0 0
        %4134 = vmatprep.subr.bf16.mxu0 0
        %4135 = vmatpush1.bf16.msra.mxu0 0
        %4136 = vmatprep.subr.bf16.mxu0 0
        %4137 = vmatpush1.bf16.msra.mxu0 0
        %4138 = vmatprep.subr.bf16.mxu0 0
        %4139 = vmatpush1.bf16.msra.mxu0 0
        %4140 = vmatprep.subr.bf16.mxu0 0
        %4141 = vmatpush1.bf16.msra.mxu0 0
        %4142 = vmatprep.subr.bf16.mxu0 0
        %4143 = vmatpush1.bf16.msra.mxu0 0
        %4144 = vmatprep.subr.bf16.mxu0 0
        %4145 = vmatpush1.bf16.msra.mxu0 0
        %4146 = vmatprep.subr.bf16.mxu0 0
        %4147 = vmatpush1.bf16.msra.mxu0 0
        %4148 = vmatprep.subr.bf16.mxu0 0
        %4149 = vmatpush1.bf16.msra.mxu0 0
        %4150 = vmatprep.subr.bf16.mxu0 0
        %4151 = vmatpush1.bf16.msra.mxu0 0
        %4152 = vmatprep.subr.bf16.mxu0 0
        %4153 = vmatpush1.bf16.msra.mxu0 0
        %4154 = vmatprep.subr.bf16.mxu0 0
        %4155 = vmatpush1.bf16.msra.mxu0 0
        %4156 = vmatprep.mubr.bf16.mxu0 0
        %4157 = vmatmul.mubr.bf16.gmra.mrb[0].mxu0 %v4119
        %v4158 = vpop.f32.mrb[0].mxu0
        %v4159 = vadd.f32 0.0, %v4158
        %v4160 = vpop.f32.mrb[0].mxu0
        %v4161 = vpop.f32.mrb[0].mxu0
        %v4162 = vadd.f32 0.0, %v4161
        %v4163 = vpop.f32.mrb[0].mxu0
        %4164 = vmatprep.mubr.bf16.mxu0 0
        %4165 = vmatmul.mubr.bf16.gmra.mrb[0].mxu0 %v4122
        %v4166 = vpop.f32.mrb[0].mxu0
        %v4167 = vadd.f32 0.0, %v4166
        %v4168 = vpop.f32.mrb[0].mxu0
        %v4169 = vpop.f32.mrb[0].mxu0
        %v4170 = vadd.f32 0.0, %v4169
        %v4171 = vpop.f32.mrb[0].mxu0
        %4172 = vdwg.mxu0
        %v4173 = vadd.f32 %v2463, %v4159
        %v4174 = vadd.f32 %v2468, %v4162
        %v4175 = vadd.f32 %v2473, %v4167
        %v4176 = vadd.f32 %v2478, %v4170
        %v4177 = vld [vmem:[%s1555] sm:$0xff]
        %v4178 = vld [vmem:[%s1555 + $0x8] sm:$0xff]
        %v4179 = vld [vmem:[%s1555 + $0x10] sm:$0xff]
        %v4180 = vld [vmem:[%s1555 + $0x18] sm:$0xff]
        %v4181 = vld [vmem:[#allocation56] sm:$0x1]
        %4183 = vset.pattern.permute.xlu0 0
        %4184 = vperm.xlu0 %4183, %v4177
        %v4185 = vpop.permute.xlu0 %4184
        %4188 = vset.pattern.permute.xlu0 0
        %4189 = vperm.xlu0 %4188, %v4178
        %v4190 = vpop.permute.xlu0 %4189
        %4193 = vset.pattern.permute.xlu0 0
        %4194 = vperm.xlu0 %4193, %v4179
        %v4195 = vpop.permute.xlu0 %4194
        %4198 = vset.pattern.permute.xlu0 0
        %4199 = vperm.xlu0 %4198, %v4180
        %v4200 = vpop.permute.xlu0 %4199
        %v4203 = vlaneseq
        %v4204 = vshrl.u32 %v4203, 7
        %v4205 = vsub.s32 0, %v4204
        %v4206 = vrot.slane %v4181, %v4205
        %vm4208 = vcmp.gt.f32.partialorder %v4185, %v4206
        %vm4209 = vcmp.gt.f32.partialorder %v4190, %v4206
        %vm4210 = vcmp.gt.f32.partialorder %v4195, %v4206
        %vm4211 = vcmp.gt.f32.partialorder %v4200, %v4206
        %v4212 = vsel %vm4208, 1, 0
        %v4213 = vsel %vm4209, 1, 0
        %v4214 = vsel %vm4210, 1, 0
        %v4215 = vsel %vm4211, 1, 0
        %v4216 = vsel %vm4042, %v4212, 0
        %v4217 = vand.u32 %v4216, 65535
        %v4218 = vshrl.u32 %v4216, 16
        %v4219 = vcvt.s32.f32 %v4217
        %v4220 = vcvt.s32.f32 %v4218
        %4221 = vadd.xlane.f32.xlu0 %v4219
        %v4222 = vpop.xlane.xlu0 %4221
        %4223 = vadd.xlane.f32.xlu0 %v4220
        %v4224 = vpop.xlane.xlu0 %4223
        %v4225 = vcvt.f32.s32 %v4222
        %v4226 = vcvt.f32.s32 %v4224
        %v4227 = vshll.u32 %v4226, 16
        %v4228 = vadd.s32 %v4227, %v4225
        %v4229 = vsel %vm4042, %v4213, 0
        %v4230 = vand.u32 %v4229, 65535
        %v4231 = vshrl.u32 %v4229, 16
        %v4232 = vcvt.s32.f32 %v4230
        %v4233 = vcvt.s32.f32 %v4231
        %4234 = vadd.xlane.f32.xlu0 %v4232
        %v4235 = vpop.xlane.xlu0 %4234
        %4236 = vadd.xlane.f32.xlu0 %v4233
        %v4237 = vpop.xlane.xlu0 %4236
        %v4238 = vcvt.f32.s32 %v4235
        %v4239 = vcvt.f32.s32 %v4237
        %v4240 = vshll.u32 %v4239, 16
        %v4241 = vadd.s32 %v4240, %v4238
        %v4242 = vsel %vm4042, %v4214, 0
        %v4243 = vand.u32 %v4242, 65535
        %v4244 = vshrl.u32 %v4242, 16
        %v4245 = vcvt.s32.f32 %v4243
        %v4246 = vcvt.s32.f32 %v4244
        %4247 = vadd.xlane.f32.xlu0 %v4245
        %v4248 = vpop.xlane.xlu0 %4247
        %4249 = vadd.xlane.f32.xlu0 %v4246
        %v4250 = vpop.xlane.xlu0 %4249
        %v4251 = vcvt.f32.s32 %v4248
        %v4252 = vcvt.f32.s32 %v4250
        %v4253 = vshll.u32 %v4252, 16
        %v4254 = vadd.s32 %v4253, %v4251
        %v4255 = vsel %vm4042, %v4215, 0
        %v4256 = vand.u32 %v4255, 65535
        %v4257 = vshrl.u32 %v4255, 16
        %v4258 = vcvt.s32.f32 %v4256
        %v4259 = vcvt.s32.f32 %v4257
        %4260 = vadd.xlane.f32.xlu0 %v4258
        %v4261 = vpop.xlane.xlu0 %4260
        %4262 = vadd.xlane.f32.xlu0 %v4259
        %v4263 = vpop.xlane.xlu0 %4262
        %v4264 = vcvt.f32.s32 %v4261
        %v4265 = vcvt.f32.s32 %v4263
        %v4266 = vshll.u32 %v4265, 16
        %v4267 = vadd.s32 %v4266, %v4264
        %vm4268 = vcmp.eq.s32.totalorder %v4228, %v2354
        %vm4269 = vcmp.eq.s32.totalorder %v4241, %v2354
        %vm4270 = vcmp.eq.s32.totalorder %v4254, %v2354
        %vm4271 = vcmp.eq.s32.totalorder %v4267, %v2354
        %v4272 = vsel %vm4268, 1, 0
        %v4273 = vsel %vm4269, 1, 0
        %v4274 = vsel %vm4270, 1, 0
        %v4275 = vsel %vm4271, 1, 0
        %v4276 = vcvt.s32.f32 %v4272
        %v4277 = vcvt.s32.f32 %v4273
        %v4278 = vcvt.s32.f32 %v4274
        %v4279 = vcvt.s32.f32 %v4275
        %v4280 = vpack.c.bf16 %v4277, %v4276
        %v4281 = vpack.c.bf16 %v4279, %v4278
        %v4282 = vld [vmem:[#allocation59] sm:$0xf]
        %v4283 = vld [vmem:[#allocation59 + $0x4] sm:$0xf]
        %v4286 = vunpack.c.l.b16 %v4282
        %v4287 = vunpack.c.l.b16 %v4283
        %v4288 = vpack.c.b16 %v4287, %v4286
        %v4291 = vsel %vm4117, %v4280, 0
        %v4294 = vsel %vm4117, %v4281, 0
        %4296 = vmatprep.subr.bf16.mxu0 0
        %4297 = vmatpush1.bf16.msra.mxu0 %v4288
        %4298 = vmatprep.subr.bf16.mxu0 0
        %4299 = vmatpush1.bf16.msra.mxu0 0
        %4300 = vmatprep.subr.bf16.mxu0 0
        %4301 = vmatpush1.bf16.msra.mxu0 0
        %4302 = vmatprep.subr.bf16.mxu0 0
        %4303 = vmatpush1.bf16.msra.mxu0 0
        %4304 = vmatprep.subr.bf16.mxu0 0
        %4305 = vmatpush1.bf16.msra.mxu0 0
        %4306 = vmatprep.subr.bf16.mxu0 0
        %4307 = vmatpush1.bf16.msra.mxu0 0
        %4308 = vmatprep.subr.bf16.mxu0 0
        %4309 = vmatpush1.bf16.msra.mxu0 0
        %4310 = vmatprep.subr.bf16.mxu0 0
        %4311 = vmatpush1.bf16.msra.mxu0 0
        %4312 = vmatprep.subr.bf16.mxu0 0
        %4313 = vmatpush1.bf16.msra.mxu0 0
        %4314 = vmatprep.subr.bf16.mxu0 0
        %4315 = vmatpush1.bf16.msra.mxu0 0
        %4316 = vmatprep.subr.bf16.mxu0 0
        %4317 = vmatpush1.bf16.msra.mxu0 0
        %4318 = vmatprep.subr.bf16.mxu0 0
        %4319 = vmatpush1.bf16.msra.mxu0 0
        %4320 = vmatprep.subr.bf16.mxu0 0
        %4321 = vmatpush1.bf16.msra.mxu0 0
        %4322 = vmatprep.subr.bf16.mxu0 0
        %4323 = vmatpush1.bf16.msra.mxu0 0
        %4324 = vmatprep.subr.bf16.mxu0 0
        %4325 = vmatpush1.bf16.msra.mxu0 0
        %4326 = vmatprep.subr.bf16.mxu0 0
        %4327 = vmatpush1.bf16.msra.mxu0 0
        %4328 = vmatprep.mubr.bf16.mxu0 0
        %4329 = vmatmul.mubr.bf16.gmra.mrb[0].mxu0 %v4291
        %v4330 = vpop.f32.mrb[0].mxu0
        %v4331 = vadd.f32 0.0, %v4330
        %v4332 = vpop.f32.mrb[0].mxu0
        %v4333 = vpop.f32.mrb[0].mxu0
        %v4334 = vadd.f32 0.0, %v4333
        %v4335 = vpop.f32.mrb[0].mxu0
        %4336 = vmatprep.mubr.bf16.mxu0 0
        %4337 = vmatmul.mubr.bf16.gmra.mrb[0].mxu0 %v4294
        %v4338 = vpop.f32.mrb[0].mxu0
        %v4339 = vadd.f32 0.0, %v4338
        %v4340 = vpop.f32.mrb[0].mxu0
        %v4341 = vpop.f32.mrb[0].mxu0
        %v4342 = vadd.f32 0.0, %v4341
        %v4343 = vpop.f32.mrb[0].mxu0
        %4344 = vdwg.mxu0
        %v4345 = vmul.f32 %v4331, 1e-06
        %v4346 = vmul.f32 %v4334, 1e-06
        %v4347 = vmul.f32 %v4339, 1e-06
        %v4348 = vmul.f32 %v4342, 1e-06
        %v4349 = vadd.f32 %v4173, %v4345
        %v4350 = vadd.f32 %v4174, %v4346
        %v4351 = vadd.f32 %v4175, %v4347
        %v4352 = vadd.f32 %v4176, %v4348
        %4353 = vst.msk [vmem:[%s1786] sm:$0xff] %vm1810, %v4349
        %4354 = vst.msk [vmem:[%s1786 + $0x8] sm:$0xff] %vm1810, %v4350
        %4355 = vst.msk [vmem:[%s1786 + $0x10] sm:$0xff] %vm1810, %v4351
        %4356 = vst.msk [vmem:[%s1786 + $0x18] sm:$0xff] %vm1810, %v4352
        %s4357 = sand.u32 %s960, 1
        %s4358 = scalar_lea.sflag [#allocation8], %s4357
        %s4359 = sand.u32 %s960, 1
        %s4360 = smul.addr %s4359, 32
        %s4361 = scalar_lea.vmem [#allocation60], %s4360
        %s4362 = sand.u32 %s134, 1
        %s4363 = scalar_lea.sflag [#allocation62], %s4362
        %s4364 = sand.u32 %s986, 1
        %s4365 = scalar_lea.vmem [#allocation61], %s4364
        %s4366 = sand.u32 %s134, 1
        %s4367 = scalar_lea.sflag [#allocation62], %s4366
        %s4368 = sand.u32 %s1012, 1
        %s4369 = scalar_lea.vmem [#allocation63], %s4368
        %s4370 = sand.u32 %s1038, 1
        %s4371 = scalar_lea.sflag [#allocation65], %s4370
        %s4372 = sand.u32 %s1038, 1
        %s4373 = scalar_lea.vmem [#allocation64], %s4372
        // Predicated region
        $region313: #{tpu_custom_call.1} parent=171 // pred_check
          %p4374 = pneg %p970
        $region314: #{tpu_custom_call.1} parent=171 // pred_check_branch
          %4376 = sbr.rel (%p4374) target = $region316
        $region315: #{tpu_custom_call.1} parent=171 // pred_region
          %s4378 = ssub.s32 512, 512
          %4379 = vsyncadd %s4358, %s4378
          %s4380 = smul.addr %s134, 4
          %s4381 = smul.addr %s4380, 128
          %s4382 = scalar_lea.hbm %s77, %s4381
          %s4383 = sshll.u32 %s4361, 4
          %s4384 = int_to_ptr.vmem [resolvable:$true] %s4383
          %4389 = dma.vmem_to_hbm [thread:$0]  %s4384, 512, %s4382, %s4358, 128, 128, 8
        $region316: #{tpu_custom_call.1} parent=171 // pred_fallthru
          _
        // Predicated region
        $region317: #{tpu_custom_call.1} parent=171 // pred_check
          %p4390 = pneg %p996
        $region318: #{tpu_custom_call.1} parent=171 // pred_check_branch
          %4392 = sbr.rel (%p4390) target = $region320
        $region319: #{tpu_custom_call.1} parent=171 // pred_region
          %s4394 = ssub.s32 16, 16
          %4395 = vsyncadd %s4363, %s4394
          %s4396 = smul.addr %s134, 16
          %s4397 = scalar_lea.hbm %s79, %s4396
          %s4399 = sshll.u32 %s4365, 4
          %s4400 = int_to_ptr.vmem [resolvable:$true] %s4399
          %4402 = dma.vmem_to_hbm [thread:$0]  %s4400, 16, %s4397, %s4363
        $region320: #{tpu_custom_call.1} parent=171 // pred_fallthru
          _
        // Predicated region
        $region321: #{tpu_custom_call.1} parent=171 // pred_check
          %p4403 = pneg %p1022
        $region322: #{tpu_custom_call.1} parent=171 // pred_check_branch
          %4405 = sbr.rel (%p4403) target = $region324
        $region323: #{tpu_custom_call.1} parent=171 // pred_region
          %s4407 = ssub.s32 16, 16
          %4408 = vsyncadd %s4367, %s4407
          %s4409 = smul.addr %s134, 16
          %s4410 = scalar_lea.hbm %s81, %s4409
          %s4412 = sshll.u32 %s4369, 4
          %s4413 = int_to_ptr.vmem [resolvable:$true] %s4412
          %4415 = dma.vmem_to_hbm [thread:$0]  %s4413, 16, %s4410, %s4367
        $region324: #{tpu_custom_call.1} parent=171 // pred_fallthru
          _
        // Predicated region
        $region325: #{tpu_custom_call.1} parent=171 // pred_check
          %p4416 = pneg %p1048
        $region326: #{tpu_custom_call.1} parent=171 // pred_check_branch
          %4418 = sbr.rel (%p4416) target = $region328
        $region327: #{tpu_custom_call.1} parent=171 // pred_region
          %s4420 = ssub.s32 16, 16
          %4421 = vsyncadd %s4371, %s4420
          %s4422 = smul.addr %s134, 16
          %s4423 = scalar_lea.hbm %s83, %s4422
          %s4425 = sshll.u32 %s4373, 4
          %s4426 = int_to_ptr.vmem [resolvable:$true] %s4425
          %4428 = dma.vmem_to_hbm [thread:$0]  %s4426, 16, %s4423, %s4371
        $region328: #{tpu_custom_call.1} parent=171 // pred_fallthru
          _
      $region172: #{tpu_custom_call.1} parent=5 // pred_fallthru
        _
      %p4429 = scmp.le.s32.totalorder 2, %s129
      // Predicated region
      $region329: #{tpu_custom_call.1} parent=5 // pred_check
        %p4430 = pneg %p4429
      $region330: #{tpu_custom_call.1} parent=5 // pred_check_branch
        %4432 = sbr.rel (%p4430) target = $region332
      $region331: #{tpu_custom_call.1} parent=5 // pred_region
        %s4433 = ssub.s32 %s129, 2
        // Predicated region
        $region333: #{tpu_custom_call.1} parent=331 // pred_check
          %p4434 = pneg %p976
        $region334: #{tpu_custom_call.1} parent=331 // pred_check_branch
          %4436 = sbr.rel (%p4434) target = $region336
        $region335: #{tpu_custom_call.1} parent=331 // pred_region
          %s4437 = sand.u32 %s961, 1
          %s4438 = scalar_lea.sflag [#allocation8], %s4437
          %s4439 = sand.u32 %s961, 1
          %s4440 = smul.addr %s4439, 32
          %s4441 = scalar_lea.vmem [#allocation60], %s4440
          %4442 = dma.done %s4438, 512
        $region336: #{tpu_custom_call.1} parent=331 // pred_fallthru
          _
        // Predicated region
        $region337: #{tpu_custom_call.1} parent=331 // pred_check
          %p4443 = pneg %p1002
        $region338: #{tpu_custom_call.1} parent=331 // pred_check_branch
          %4445 = sbr.rel (%p4443) target = $region340
        $region339: #{tpu_custom_call.1} parent=331 // pred_region
          %s4446 = sand.u32 %s135, 1
          %s4447 = scalar_lea.sflag [#allocation62], %s4446
          %s4448 = sand.u32 %s987, 1
          %s4449 = scalar_lea.vmem [#allocation61], %s4448
          %4450 = dma.done %s4447, 16
        $region340: #{tpu_custom_call.1} parent=331 // pred_fallthru
          _
        // Predicated region
        $region341: #{tpu_custom_call.1} parent=331 // pred_check
          %p4451 = pneg %p1028
        $region342: #{tpu_custom_call.1} parent=331 // pred_check_branch
          %4453 = sbr.rel (%p4451) target = $region344
        $region343: #{tpu_custom_call.1} parent=331 // pred_region
          %s4454 = sand.u32 %s135, 1
          %s4455 = scalar_lea.sflag [#allocation62], %s4454
          %s4456 = sand.u32 %s1013, 1
          %s4457 = scalar_lea.vmem [#allocation63], %s4456
          %4458 = dma.done %s4455, 16
        $region344: #{tpu_custom_call.1} parent=331 // pred_fallthru
          _
        // Predicated region
        $region345: #{tpu_custom_call.1} parent=331 // pred_check
          %p4459 = pneg %p1054
        $region346: #{tpu_custom_call.1} parent=331 // pred_check_branch
          %4461 = sbr.rel (%p4459) target = $region348
        $region347: #{tpu_custom_call.1} parent=331 // pred_region
          %s4462 = sand.u32 %s1039, 1
          %s4463 = scalar_lea.sflag [#allocation65], %s4462
          %s4464 = sand.u32 %s1039, 1
          %s4465 = scalar_lea.vmem [#allocation64], %s4464
          %4466 = dma.done %s4463, 16
        $region348: #{tpu_custom_call.1} parent=331 // pred_fallthru
          _
      $region332: #{tpu_custom_call.1} parent=5 // pred_fallthru
        _
    $region6: #{tpu_custom_call.1} parent=1 // loop_footer
      %s133 = sadd.s32 1, %s129
    $region7: #{tpu_custom_call.1} parent=1 // loop_footer_branch
      %128 = sbr.rel target = $region3
    $region8: #{tpu_custom_call.1} parent=1 // loop_exit
      _
    %4467 = vsyncpa [#allocation7], 1
    %s4468 = scalar_lea.sflag [#allocation7], 1
    %4469 = vsyncpa %s4468, 1
    %4470 = vsyncpa [#allocation10], 1
    %s4471 = scalar_lea.sflag [#allocation10], 1
    %4472 = vsyncpa %s4471, 1
    %4473 = vsyncpa [#allocation13], 1
    %s4474 = scalar_lea.sflag [#allocation13], 1
    %4475 = vsyncpa %s4474, 1
    %4476 = vsyncpa [#allocation16], 1
    %4477 = vsyncpa [#allocation19], 1
    %4478 = vsyncpa [#allocation22], 1
    %4479 = vsyncpa [#allocation25], 1
    %4480 = vsyncpa [#allocation28], 1
    %4481 = vsyncpa [#allocation31], 1
    %4482 = vsyncpa [#allocation34], 1
    %4483 = vsyncpa [#allocation37], 1
    %4484 = vsyncpa [#allocation40], 1
    %4485 = vsyncpa [#allocation43], 1
    %4486 = vsyncpa [#allocation46], 1
    %4487 = vsyncpa [#allocation49], 1
    %4488 = vsyncpa [#allocation52], 1
    %4489 = vsyncpa [#allocation55], 1
    %4490 = vsyncpa [#allocation58], 1
    %4491 = vsyncpa [#allocation8], 1
    %s4492 = scalar_lea.sflag [#allocation8], 1
    %4493 = vsyncpa %s4492, 1
    %4494 = vsyncpa [#allocation62], 1
    %s4495 = scalar_lea.sflag [#allocation62], 1
    %4496 = vsyncpa %s4495, 1
    %4497 = vsyncpa [#allocation65], 1
    %s4498 = scalar_lea.sflag [#allocation65], 1
    %4499 = vsyncpa %s4498, 1

</llo_original>
